<compile_context>
chip_gen: v5e
topology: v5e:2x2
jax: 0.10.0
libtpu: 0.0.40
codegen_flags: <defaults>
</compile_context>

<pallas_src>
import functools

import jax
import jax.numpy as jnp
from jax import lax
from jax.experimental import pallas as pl
from jax.experimental.pallas import tpu as pltpu

_ACT_DTYPE = jnp.bfloat16          # inter-block activation storage dtype


def _round_up(x, m):
    return (x + m - 1) // m * m


def _vmem_limit_bytes():
    """Generation-aware scoped-VMEM limit."""
    cap = 128 * 1024 * 1024
    try:
        cap = int(getattr(pltpu.get_tpu_info(), "vmem_capacity_bytes", cap))
    except Exception:
        pass
    if cap <= 64 * 1024 * 1024:          # v7x-class: 64 MiB per TensorCore
        return 40 * 1024 * 1024
    return 64 * 1024 * 1024              # v5e / v6e: 128 MiB physical


def _pick_row_tile(H, W, Cp, C4p, vmem_limit):
    """Largest divisor TH of H whose *accounted* live set fits the VMEM budget."""
    bf, f32 = 2, 4
    # double-buffered bf16 GEMM weights + small per-channel vectors
    w_bytes = 2 * 2 * Cp * C4p * bf + 4 * 64 * Cp * f32
    budget = vmem_limit - w_bytes - 4 * 1024 * 1024      # pipeline / misc headroom
    best = None
    for th in range(1, H + 1):
        if H % th or (th != H and th < 4):
            continue
        slab = 2 * (th + 6) * W * Cp * bf      # double-buffered bf16 halo slab
        outb = 2 * th * W * Cp * bf            # double-buffered bf16 output tile
        shift = 3 * (th + 6) * W * Cp * bf     # ~3 live shifted conv views
        acc = th * W * Cp * f32                # conv accumulator
        lnt = 2 * th * W * Cp * f32            # LN centered + y
        ybf = th * W * Cp * bf                 # bf16 GEMM1 lhs
        hbf = th * W * C4p * (f32 + bf)        # GEMM1 out + bf16 cast
        zbf = th * W * Cp * f32                # GEMM2 out
        if slab + outb + shift + acc + lnt + ybf + hbf + zbf <= budget:
            best = th
    if best is None:
        for th in range(1, H + 1):
            if H % th == 0 and (th == H or th >= 4):
                best = th
                break
    return best


# --------------------------- the per-block kernel ---------------------------
def _cxblock_kernel(true_c,
                    x_hbm, dww_ref, dwb_ref, lnw_ref, lnb_ref,
                    w1_ref, b1_ref, w2_ref, b2_ref, gamma_ref,
                    out_ref, slab_ref, sem_ref):
    # Per grid step = one TH-row tile of one batch element.
    #   x_hbm    : (B, H, W, Cp) bf16 activation, stays in HBM (pl.ANY)
    #   dww_ref  : (49, Cp) bf16 depthwise weights, row k = (ki, kj)
    #   dwb/lnw/lnb/b2/gamma : (1, Cp) f32 ;  b1 : (1, 4Cp) f32
    #   w1_ref   : (Cp, 4Cp) bf16 ;  w2_ref : (4Cp, Cp) bf16
    #   out_ref  : (1, TH, W, Cp) bf16
    #   slab_ref : (2, TH+6, W, Cp) bf16 double-buffered halo slab
    #   sem_ref  : DMA semaphores (2,)
    _, TH, W, Cp = out_ref.shape
    _, H, _, _ = x_hbm.shape
    n_th = H // TH
    b = pl.program_id(0)
    t = pl.program_id(1)
    slot = t & 1
    nslot = 1 - slot
    first_rows = min(TH + 3, H)          # rows fetched for the first (top) tile

    def halo_copy(kind, tt, sl):
        # slab row r  <->  input row tt*TH - 3 + r ; rows outside [0, H) are
        # zero-filled at compute time (edge mask below).
        if kind == "first":              # tile 0: input rows [0, first_rows)
            src = x_hbm.at[b, pl.ds(0, first_rows), :, :]
            dst = slab_ref.at[sl, pl.ds(3, first_rows), :, :]
        elif kind == "last":             # last tile: input rows [tt*TH-3, H)
            src = x_hbm.at[b, pl.ds(tt * TH - 3, TH + 3), :, :]
            dst = slab_ref.at[sl, pl.ds(0, TH + 3), :, :]
        else:                            # interior tile: full TH+6 rows
            src = x_hbm.at[b, pl.ds(tt * TH - 3, TH + 6), :, :]
            dst = slab_ref.at[sl, pl.ds(0, TH + 6), :, :]
        return pltpu.make_async_copy(src, dst, sem_ref.at[sl])

    # ---- prime this batch element's first tile (per-b => megacore-safe) -----
    @pl.when(t == 0)
    def _():
        halo_copy("first", t, slot).start()

    # ---- prefetch the NEXT row tile of the same batch element ---------------
    if n_th >= 3:
        @pl.when(t + 1 < n_th - 1)
        def _():
            halo_copy("interior", t + 1, nslot).start()
    if n_th >= 2:
        @pl.when(t + 1 == n_th - 1)
        def _():
            halo_copy("last", t + 1, nslot).start()

    # ---- wait for the DMA that filled the current slot ----------------------
    @pl.when(t == 0)
    def _():
        halo_copy("first", t, slot).wait()
    if n_th >= 3:
        @pl.when((t > 0) & (t < n_th - 1))
        def _():
            halo_copy("interior", t, slot).wait()
    if n_th >= 2:
        @pl.when(t == n_th - 1)
        def _():
            halo_copy("last", t, slot).wait()

    # ---- zero the out-of-image halo rows (top of first tile / bottom of last)
    xslab = slab_ref[slot]                                  # (TH+6, W, Cp) bf16
    row = lax.broadcasted_iota(jnp.int32, (TH + 6, 1, 1), 0)
    edge = ((row < 3) & (t == 0)) | ((row >= TH + 3) & (t == n_th - 1))
    xs = jnp.where(edge, jnp.zeros((), xslab.dtype), xslab)

    # ---- depthwise 7x7 conv: hoist the 7 W (sublane) shifts ------------------
    # Column zero-padding is built in-kernel via one concat; each shifted view is
    # reused by 7 free row (leading-dim) taps.  Tap multiplies are bf16, the
    # accumulator is f32 (preserves 49-term accumulation accuracy).
    zpad = jnp.zeros((TH + 6, 3, Cp), xs.dtype)
    xsp = jnp.concatenate([zpad, xs, zpad], axis=1)          # (TH+6, W+6, Cp)

    dww = dww_ref[...]                                       # (49, Cp) bf16
    acc = jnp.zeros((TH, W, Cp), jnp.float32)
    for kj in range(7):
        xk = xs if kj == 3 else xsp[:, kj:kj + W, :]         # (TH+6, W, Cp)
        for ki in range(7):
            acc = acc + xk[ki:ki + TH] * dww[ki * 7 + kj]
    acc = acc + dwb_ref[0]

    # ---- LayerNorm over the true C channels (padded lanes are exactly 0) -----
    inv_c = jnp.float32(1.0 / true_c)
    mean = jnp.sum(acc, axis=-1, keepdims=True) * inv_c
    cen = acc - mean
    if Cp != true_c:
        lane = lax.broadcasted_iota(jnp.int32, (1, 1, Cp), 2)
        cen_v = jnp.where(lane < true_c, cen, 0.0)
    else:
        cen_v = cen
    var = jnp.sum(cen_v * cen_v, axis=-1, keepdims=True) * inv_c
    y = cen * lax.rsqrt(var + 1e-6) * lnw_ref[0] + lnb_ref[0]

    # ---- pointwise MLP: Linear(C,4C) -> GELU(exact) -> Linear(4C,C) ----------
    # bf16 MXU operands, f32 accumulation.  NOTE: the (TH,W,Cp)->(TH*W,Cp)
    # re-tiling is free when W % 8 == 0 (true for these backbones' feature maps).
    y2 = y.reshape(TH * W, Cp).astype(jnp.bfloat16)
    h = jnp.dot(y2, w1_ref[...], preferred_element_type=jnp.float32) + b1_ref[0]
    g = h * (0.5 + 0.5 * lax.erf(h * 0.7071067811865476))    # folded exact GELU
    z = jnp.dot(g.astype(jnp.bfloat16), w2_ref[...],
                preferred_element_type=jnp.float32) + b2_ref[0]
    z = (z * gamma_ref[0]).reshape(TH, W, Cp)

    # ---- layer scale + residual (residual re-read from the bf16 slab) --------
    out_ref[0] = (xs[3:3 + TH].astype(jnp.float32) + z).astype(out_ref.dtype)


# ------------------------------ block wrapper -------------------------------
def _prep_params(p, Cp, C4p):
    """Zero-pad params to lane-padded channel dims; cast MXU/VPU weights to bf16."""
    def pad2(a, r, c):
        return jnp.pad(a, ((0, r - a.shape[0]), (0, c - a.shape[1])))
    return dict(
        dw_w=pad2(p["dw_w"], 49, Cp).astype(jnp.bfloat16),
        dw_b=pad2(p["dw_b"], 1, Cp).astype(jnp.float32),
        ln_w=pad2(p["ln_w"], 1, Cp).astype(jnp.float32),
        ln_b=pad2(p["ln_b"], 1, Cp).astype(jnp.float32),
        w1=pad2(p["w1"], Cp, C4p).astype(jnp.bfloat16),
        b1=pad2(p["b1"], 1, C4p).astype(jnp.float32),
        w2=pad2(p["w2"], C4p, Cp).astype(jnp.bfloat16),
        b2=pad2(p["b2"], 1, Cp).astype(jnp.float32),
        gamma=pad2(p["gamma"], 1, Cp).astype(jnp.float32),
    )


def _cxblock_call(x_act, pp, true_c, th, vmem_limit):
    """One CxBlock on channel-padded bf16 NHWC activation (B, H, W, Cp)."""
    B, H, W, Cp = x_act.shape
    C4p = pp["w1"].shape[1]
    n_th = H // th

    hw = B * H * W
    cost = pl.CostEstimate(
        flops=int(hw * (2 * 49 * Cp + 4 * Cp * C4p + 16 * Cp + 8 * C4p)),
        transcendentals=int(hw * C4p),
        bytes_accessed=int(2 * 2 * hw * Cp + 2 * B * 6 * n_th * W * Cp
                           + 2 * 2 * Cp * C4p + 4 * 64 * Cp),
    )

    kern = functools.partial(_cxblock_kernel, true_c)
    return pl.pallas_call(
        kern,
        out_shape=jax.ShapeDtypeStruct((B, H, W, Cp), x_act.dtype),
        grid_spec=pltpu.PrefetchScalarGridSpec(
            num_scalar_prefetch=0,
            grid=(B, n_th),
            in_specs=[
                pl.BlockSpec(memory_space=pl.ANY),               # activation, HBM
                pl.BlockSpec((49, Cp), lambda b, t: (0, 0)),     # dw_w (bf16)
                pl.BlockSpec((1, Cp), lambda b, t: (0, 0)),      # dw_b
                pl.BlockSpec((1, Cp), lambda b, t: (0, 0)),      # ln_w
                pl.BlockSpec((1, Cp), lambda b, t: (0, 0)),      # ln_b
                pl.BlockSpec((Cp, C4p), lambda b, t: (0, 0)),    # w1 (bf16)
                pl.BlockSpec((1, C4p), lambda b, t: (0, 0)),     # b1
                pl.BlockSpec((C4p, Cp), lambda b, t: (0, 0)),    # w2 (bf16)
                pl.BlockSpec((1, Cp), lambda b, t: (0, 0)),      # b2
                pl.BlockSpec((1, Cp), lambda b, t: (0, 0)),      # gamma
            ],
            out_specs=pl.BlockSpec((1, th, W, Cp), lambda b, t: (b, t, 0, 0)),
            scratch_shapes=[
                pltpu.VMEM((2, th + 6, W, Cp), x_act.dtype),     # dbl-buffered slab
                pltpu.SemaphoreType.DMA((2,)),
            ],
        ),
        # t axis must stay sequential on one core so the per-batch prime /
        # prefetch / wait DMA pairing is megacore-safe; the batch axis feeds
        # the second TensorCore on v7x.
        compiler_params=pltpu.CompilerParams(
            dimension_semantics=("parallel", "arbitrary"),
            vmem_limit_bytes=vmem_limit),
        cost_estimate=cost,
    )(x_act, pp["dw_w"], pp["dw_b"], pp["ln_w"], pp["ln_b"],
      pp["w1"], pp["b1"], pp["w2"], pp["b2"], pp["gamma"])


def cxlayer_forward(x_nchw, block_params, row_tile=None):
    """CxLayer.forward with downsample=None: run `depth` CxBlocks, return `out`."""
    B, C, H, W = x_nchw.shape
    Cp = _round_up(C, 128)
    C4p = _round_up(4 * C, 128)

    vmem_limit = _vmem_limit_bytes()
    th = row_tile if row_tile is not None else _pick_row_tile(H, W, Cp, C4p, vmem_limit)
    assert H % th == 0, "row_tile must divide H"
    assert th == H or th >= 4, "row_tile must be >= 4 (or equal to H)"

    x = jnp.transpose(x_nchw, (0, 2, 3, 1))                    # NCHW -> NHWC
    if Cp != C:
        x = jnp.pad(x, ((0, 0), (0, 0), (0, 0), (0, Cp - C)))  # lane-pad channels
    x = x.astype(_ACT_DTYPE)                                   # bf16 inter-block acts

    for p in block_params:
        pp = _prep_params(p, Cp, C4p)
        x = _cxblock_call(x, pp, C, th, vmem_limit)

    x = x[..., :C].astype(x_nchw.dtype)
    return jnp.transpose(x, (0, 3, 1, 2))                      # NHWC -> NCHW
    # TODO(synk): `downsample` is None in this instantiation; no downsample module
    # class is provided by the reference, so the (out, x) path is omitted.


def init_block_params(key, dim, layer_scale_init_value=1e-6):
    ks = jax.random.split(key, 4)
    C = dim
    return dict(
        dw_w=jax.random.normal(ks[0], (49, C), jnp.float32) * 0.1,
        dw_b=jax.random.normal(ks[1], (1, C), jnp.float32) * 0.02,
        ln_w=jnp.ones((1, C), jnp.float32),
        ln_b=jnp.zeros((1, C), jnp.float32),
        w1=jax.random.normal(ks[2], (C, 4 * C), jnp.float32) * 0.05,
        b1=jnp.zeros((1, 4 * C), jnp.float32),
        w2=jax.random.normal(ks[3], (4 * C, C), jnp.float32) * 0.05,
        b2=jnp.zeros((1, C), jnp.float32),
        gamma=jnp.full((1, C), layer_scale_init_value, jnp.float32),
    )


# ---------------- pure-JAX reference (for correctness check) ----------------
def _ref_block(x_nhwc, p):
    B, H, W, C = x_nhwc.shape
    dw = p["dw_w"].reshape(7, 7, 1, C)
    conv = jax.lax.conv_general_dilated(
        x_nhwc, dw, window_strides=(1, 1), padding=((3, 3), (3, 3)),
        dimension_numbers=("NHWC", "HWIO", "NHWC"), feature_group_count=C)
    conv = conv + p["dw_b"][0]
    mean = jnp.mean(conv, axis=-1, keepdims=True)
    var = jnp.mean((conv - mean) ** 2, axis=-1, keepdims=True)
    y = (conv - mean) / jnp.sqrt(var + 1e-6)
    y = y * p["ln_w"][0] + p["ln_b"][0]
    h = y @ p["w1"] + p["b1"][0]
    h = 0.5 * h * (1.0 + jax.lax.erf(h * 0.7071067811865476))
    z = h @ p["w2"] + p["b2"][0]
    z = z * p["gamma"][0]
    return x_nhwc + z


def _ref_layer(x_nchw, block_params):
    x = jnp.transpose(x_nchw, (0, 2, 3, 1))
    for p in block_params:
        x = _ref_block(x, p)
    return jnp.transpose(x, (0, 3, 1, 2))


if __name__ == "__main__":
    key = jax.random.PRNGKey(0)
    B, C, H, W = 2, 4, 16, 16          # dim_in = 4
    depth = 2

    k_x, k_p = jax.random.split(key)
    x = jax.random.normal(k_x, (B, C, H, W), jnp.float32)
    # layer_scale_init_value=1.0 so the MLP path actually contributes to the
    # output and the check is meaningful (module default is 1e-6).
    block_params = [
        init_block_params(k, C, layer_scale_init_value=1.0)
        for k in jax.random.split(k_p, depth)
    ]

    ref = _ref_layer(x, block_params)

    # Exercise all halo-DMA paths: n_th=4 (interior tiles), n_th=2, n_th=1 (auto).
    for rt in (4, 8, None):
        fwd = jax.jit(functools.partial(cxlayer_forward, row_tile=rt))
        out = jax.block_until_ready(fwd(x, block_params))
        assert out.shape == (B, C, H, W)
        err = float(jnp.max(jnp.abs(out - ref)))
        assert jnp.allclose(out, ref, atol=2e-2, rtol=2e-2), \
            f"mismatch vs ref (row_tile={rt}): {err}"

    print("KERNEL_OK")
</pallas_src>

<mosaic_0001>
module attributes {stable_mosaic.version = 11 : i64} {
  func.func @_cxblock_kernel(%arg0: i32, %arg1: i32, %arg2: memref<2x16x16x128xbf16, #tpu.memory_space<any>>, %arg3: memref<49x128xbf16, #tpu.memory_space<vmem>>, %arg4: memref<1x128xf32, #tpu.memory_space<vmem>>, %arg5: memref<1x128xf32, #tpu.memory_space<vmem>>, %arg6: memref<1x128xf32, #tpu.memory_space<vmem>>, %arg7: memref<128x128xbf16, #tpu.memory_space<vmem>>, %arg8: memref<1x128xf32, #tpu.memory_space<vmem>>, %arg9: memref<128x128xbf16, #tpu.memory_space<vmem>>, %arg10: memref<1x128xf32, #tpu.memory_space<vmem>>, %arg11: memref<1x128xf32, #tpu.memory_space<vmem>>, %arg12: memref<1x4x16x128xbf16, #tpu.memory_space<vmem>>, %arg13: memref<2x10x16x128xbf16, #tpu.memory_space<vmem>>, %arg14: memref<2x!tpu.dma_semaphore, #tpu.memory_space<semaphore_mem>>) attributes {dimension_semantics = [#tpu.dimension_semantics<parallel>, #tpu.dimension_semantics<arbitrary>], iteration_bounds = array<i64: 2, 4>, scalar_prefetch = 0 : i64, scratch_operands = 2 : i64, tpu.core_type = #tpu.core_type<tc>, window_params = [{}, {pipeline_mode = #tpu.pipeline_mode<synchronous>, transform_indices = @transform_1, window_bounds = array<i64: 49, 128>}, {pipeline_mode = #tpu.pipeline_mode<synchronous>, transform_indices = @transform_2, window_bounds = array<i64: 1, 128>}, {pipeline_mode = #tpu.pipeline_mode<synchronous>, transform_indices = @transform_3, window_bounds = array<i64: 1, 128>}, {pipeline_mode = #tpu.pipeline_mode<synchronous>, transform_indices = @transform_4, window_bounds = array<i64: 1, 128>}, {pipeline_mode = #tpu.pipeline_mode<synchronous>, transform_indices = @transform_5, window_bounds = array<i64: 128, 128>}, {pipeline_mode = #tpu.pipeline_mode<synchronous>, transform_indices = @transform_6, window_bounds = array<i64: 1, 128>}, {pipeline_mode = #tpu.pipeline_mode<synchronous>, transform_indices = @transform_7, window_bounds = array<i64: 128, 128>}, {pipeline_mode = #tpu.pipeline_mode<synchronous>, transform_indices = @transform_8, window_bounds = array<i64: 1, 128>}, {pipeline_mode = #tpu.pipeline_mode<synchronous>, transform_indices = @transform_9, window_bounds = array<i64: 1, 128>}, {transform_indices = @transform_10, window_bounds = array<i64: 1, 4, 16, 128>}]} {
    %c1_i32 = arith.constant 1 : i32
    %0 = arith.andi %arg1, %c1_i32 : i32
    %c1_i32_0 = arith.constant 1 : i32
    %1 = arith.subi %c1_i32_0, %0 : i32
    %c0_i32 = arith.constant 0 : i32
    %2 = arith.cmpi eq, %arg1, %c0_i32 : i32
    %3 = arith.extui %2 : i1 to i32
    %c0_i32_1 = arith.constant 0 : i32
    %4 = arith.cmpi ne, %3, %c0_i32_1 : i32
    scf.if %4 {
      %c0_i32_54 = arith.constant 0 : i32
      %c0_i32_55 = arith.constant 0 : i32
      %c0_i32_56 = arith.constant 0 : i32
      %521 = tpu.memref_slice %arg2[%arg0, %c0_i32_54, %c0_i32_55, %c0_i32_56] : memref<2x16x16x128xbf16, #tpu.memory_space<any>> -> memref<1x7x16x128xbf16, #tpu.memory_space<any>>
      %522 = tpu.memref_squeeze %521 : memref<1x7x16x128xbf16, #tpu.memory_space<any>> -> memref<7x16x128xbf16, #tpu.memory_space<any>>
      %c3_i32_57 = arith.constant 3 : i32
      %c0_i32_58 = arith.constant 0 : i32
      %c0_i32_59 = arith.constant 0 : i32
      %523 = tpu.memref_slice %arg13[%0, %c3_i32_57, %c0_i32_58, %c0_i32_59] : memref<2x10x16x128xbf16, #tpu.memory_space<vmem>> -> memref<1x7x16x128xbf16, #tpu.memory_space<vmem>>
      %524 = tpu.memref_squeeze %523 : memref<1x7x16x128xbf16, #tpu.memory_space<vmem>> -> memref<7x16x128xbf16, #tpu.memory_space<vmem>>
      %525 = tpu.memref_slice %arg14[%0] : memref<2x!tpu.dma_semaphore, #tpu.memory_space<semaphore_mem>> -> memref<1x!tpu.dma_semaphore, #tpu.memory_space<semaphore_mem>>
      %526 = tpu.memref_squeeze %525 : memref<1x!tpu.dma_semaphore, #tpu.memory_space<semaphore_mem>> -> memref<!tpu.dma_semaphore, #tpu.memory_space<semaphore_mem>>
      tpu.enqueue_dma source(%522 : memref<7x16x128xbf16, #tpu.memory_space<any>>) target(%524 : memref<7x16x128xbf16, #tpu.memory_space<vmem>>) target_semaphore(%526 : memref<!tpu.dma_semaphore, #tpu.memory_space<semaphore_mem>>)
    } else {
    }
    %c1_i32_2 = arith.constant 1 : i32
    %5 = arith.addi %arg1, %c1_i32_2 : i32
    %c3_i32 = arith.constant 3 : i32
    %6 = arith.cmpi slt, %5, %c3_i32 : i32
    %7 = arith.extui %6 : i1 to i32
    %c0_i32_3 = arith.constant 0 : i32
    %8 = arith.cmpi ne, %7, %c0_i32_3 : i32
    scf.if %8 {
      %c1_i32_54 = arith.constant 1 : i32
      %521 = arith.addi %arg1, %c1_i32_54 : i32
      %c4_i32_55 = arith.constant 4 : i32
      %522 = arith.muli %521, %c4_i32_55 : i32
      %c3_i32_56 = arith.constant 3 : i32
      %523 = arith.subi %522, %c3_i32_56 : i32
      %c0_i32_57 = arith.constant 0 : i32
      %c0_i32_58 = arith.constant 0 : i32
      %524 = tpu.memref_slice %arg2[%arg0, %523, %c0_i32_57, %c0_i32_58] : memref<2x16x16x128xbf16, #tpu.memory_space<any>> -> memref<1x10x16x128xbf16, #tpu.memory_space<any>>
      %525 = tpu.memref_squeeze %524 : memref<1x10x16x128xbf16, #tpu.memory_space<any>> -> memref<10x16x128xbf16, #tpu.memory_space<any>>
      %c0_i32_59 = arith.constant 0 : i32
      %c0_i32_60 = arith.constant 0 : i32
      %c0_i32_61 = arith.constant 0 : i32
      %526 = tpu.memref_slice %arg13[%1, %c0_i32_59, %c0_i32_60, %c0_i32_61] : memref<2x10x16x128xbf16, #tpu.memory_space<vmem>> -> memref<1x10x16x128xbf16, #tpu.memory_space<vmem>>
      %527 = tpu.memref_squeeze %526 : memref<1x10x16x128xbf16, #tpu.memory_space<vmem>> -> memref<10x16x128xbf16, #tpu.memory_space<vmem>>
      %528 = tpu.memref_slice %arg14[%1] : memref<2x!tpu.dma_semaphore, #tpu.memory_space<semaphore_mem>> -> memref<1x!tpu.dma_semaphore, #tpu.memory_space<semaphore_mem>>
      %529 = tpu.memref_squeeze %528 : memref<1x!tpu.dma_semaphore, #tpu.memory_space<semaphore_mem>> -> memref<!tpu.dma_semaphore, #tpu.memory_space<semaphore_mem>>
      tpu.enqueue_dma source(%525 : memref<10x16x128xbf16, #tpu.memory_space<any>>) target(%527 : memref<10x16x128xbf16, #tpu.memory_space<vmem>>) target_semaphore(%529 : memref<!tpu.dma_semaphore, #tpu.memory_space<semaphore_mem>>)
    } else {
    }
    %c1_i32_4 = arith.constant 1 : i32
    %9 = arith.addi %arg1, %c1_i32_4 : i32
    %c3_i32_5 = arith.constant 3 : i32
    %10 = arith.cmpi eq, %9, %c3_i32_5 : i32
    %11 = arith.extui %10 : i1 to i32
    %c0_i32_6 = arith.constant 0 : i32
    %12 = arith.cmpi ne, %11, %c0_i32_6 : i32
    scf.if %12 {
      %c1_i32_54 = arith.constant 1 : i32
      %521 = arith.addi %arg1, %c1_i32_54 : i32
      %c4_i32_55 = arith.constant 4 : i32
      %522 = arith.muli %521, %c4_i32_55 : i32
      %c3_i32_56 = arith.constant 3 : i32
      %523 = arith.subi %522, %c3_i32_56 : i32
      %c0_i32_57 = arith.constant 0 : i32
      %c0_i32_58 = arith.constant 0 : i32
      %524 = tpu.memref_slice %arg2[%arg0, %523, %c0_i32_57, %c0_i32_58] : memref<2x16x16x128xbf16, #tpu.memory_space<any>> -> memref<1x7x16x128xbf16, #tpu.memory_space<any>>
      %525 = tpu.memref_squeeze %524 : memref<1x7x16x128xbf16, #tpu.memory_space<any>> -> memref<7x16x128xbf16, #tpu.memory_space<any>>
      %c0_i32_59 = arith.constant 0 : i32
      %c0_i32_60 = arith.constant 0 : i32
      %c0_i32_61 = arith.constant 0 : i32
      %526 = tpu.memref_slice %arg13[%1, %c0_i32_59, %c0_i32_60, %c0_i32_61] : memref<2x10x16x128xbf16, #tpu.memory_space<vmem>> -> memref<1x7x16x128xbf16, #tpu.memory_space<vmem>>
      %527 = tpu.memref_squeeze %526 : memref<1x7x16x128xbf16, #tpu.memory_space<vmem>> -> memref<7x16x128xbf16, #tpu.memory_space<vmem>>
      %528 = tpu.memref_slice %arg14[%1] : memref<2x!tpu.dma_semaphore, #tpu.memory_space<semaphore_mem>> -> memref<1x!tpu.dma_semaphore, #tpu.memory_space<semaphore_mem>>
      %529 = tpu.memref_squeeze %528 : memref<1x!tpu.dma_semaphore, #tpu.memory_space<semaphore_mem>> -> memref<!tpu.dma_semaphore, #tpu.memory_space<semaphore_mem>>
      tpu.enqueue_dma source(%525 : memref<7x16x128xbf16, #tpu.memory_space<any>>) target(%527 : memref<7x16x128xbf16, #tpu.memory_space<vmem>>) target_semaphore(%529 : memref<!tpu.dma_semaphore, #tpu.memory_space<semaphore_mem>>)
    } else {
    }
    %c0_i32_7 = arith.constant 0 : i32
    %13 = arith.cmpi eq, %arg1, %c0_i32_7 : i32
    %14 = arith.extui %13 : i1 to i32
    %c0_i32_8 = arith.constant 0 : i32
    %15 = arith.cmpi ne, %14, %c0_i32_8 : i32
    scf.if %15 {
      %c0_i32_54 = arith.constant 0 : i32
      %c0_i32_55 = arith.constant 0 : i32
      %c0_i32_56 = arith.constant 0 : i32
      %521 = tpu.memref_slice %arg2[%arg0, %c0_i32_54, %c0_i32_55, %c0_i32_56] : memref<2x16x16x128xbf16, #tpu.memory_space<any>> -> memref<1x7x16x128xbf16, #tpu.memory_space<any>>
      %522 = tpu.memref_squeeze %521 : memref<1x7x16x128xbf16, #tpu.memory_space<any>> -> memref<7x16x128xbf16, #tpu.memory_space<any>>
      %c3_i32_57 = arith.constant 3 : i32
      %c0_i32_58 = arith.constant 0 : i32
      %c0_i32_59 = arith.constant 0 : i32
      %523 = tpu.memref_slice %arg13[%0, %c3_i32_57, %c0_i32_58, %c0_i32_59] : memref<2x10x16x128xbf16, #tpu.memory_space<vmem>> -> memref<1x7x16x128xbf16, #tpu.memory_space<vmem>>
      %524 = tpu.memref_squeeze %523 : memref<1x7x16x128xbf16, #tpu.memory_space<vmem>> -> memref<7x16x128xbf16, #tpu.memory_space<vmem>>
      %525 = tpu.memref_slice %arg14[%0] : memref<2x!tpu.dma_semaphore, #tpu.memory_space<semaphore_mem>> -> memref<1x!tpu.dma_semaphore, #tpu.memory_space<semaphore_mem>>
      %526 = tpu.memref_squeeze %525 : memref<1x!tpu.dma_semaphore, #tpu.memory_space<semaphore_mem>> -> memref<!tpu.dma_semaphore, #tpu.memory_space<semaphore_mem>>
      tpu.wait_dma2 semaphore(%526 : memref<!tpu.dma_semaphore, #tpu.memory_space<semaphore_mem>>) src(%522 : memref<7x16x128xbf16, #tpu.memory_space<any>>) dst(%524 : memref<7x16x128xbf16, #tpu.memory_space<vmem>>)
    } else {
    }
    %c0_i32_9 = arith.constant 0 : i32
    %16 = arith.cmpi sgt, %arg1, %c0_i32_9 : i32
    %c3_i32_10 = arith.constant 3 : i32
    %17 = arith.cmpi slt, %arg1, %c3_i32_10 : i32
    %18 = arith.andi %16, %17 : i1
    %19 = arith.extui %18 : i1 to i32
    %c0_i32_11 = arith.constant 0 : i32
    %20 = arith.cmpi ne, %19, %c0_i32_11 : i32
    scf.if %20 {
      %c4_i32_54 = arith.constant 4 : i32
      %521 = arith.muli %arg1, %c4_i32_54 : i32
      %c3_i32_55 = arith.constant 3 : i32
      %522 = arith.subi %521, %c3_i32_55 : i32
      %c0_i32_56 = arith.constant 0 : i32
      %c0_i32_57 = arith.constant 0 : i32
      %523 = tpu.memref_slice %arg2[%arg0, %522, %c0_i32_56, %c0_i32_57] : memref<2x16x16x128xbf16, #tpu.memory_space<any>> -> memref<1x10x16x128xbf16, #tpu.memory_space<any>>
      %524 = tpu.memref_squeeze %523 : memref<1x10x16x128xbf16, #tpu.memory_space<any>> -> memref<10x16x128xbf16, #tpu.memory_space<any>>
      %c0_i32_58 = arith.constant 0 : i32
      %c0_i32_59 = arith.constant 0 : i32
      %c0_i32_60 = arith.constant 0 : i32
      %525 = tpu.memref_slice %arg13[%0, %c0_i32_58, %c0_i32_59, %c0_i32_60] : memref<2x10x16x128xbf16, #tpu.memory_space<vmem>> -> memref<1x10x16x128xbf16, #tpu.memory_space<vmem>>
      %526 = tpu.memref_squeeze %525 : memref<1x10x16x128xbf16, #tpu.memory_space<vmem>> -> memref<10x16x128xbf16, #tpu.memory_space<vmem>>
      %527 = tpu.memref_slice %arg14[%0] : memref<2x!tpu.dma_semaphore, #tpu.memory_space<semaphore_mem>> -> memref<1x!tpu.dma_semaphore, #tpu.memory_space<semaphore_mem>>
      %528 = tpu.memref_squeeze %527 : memref<1x!tpu.dma_semaphore, #tpu.memory_space<semaphore_mem>> -> memref<!tpu.dma_semaphore, #tpu.memory_space<semaphore_mem>>
      tpu.wait_dma2 semaphore(%528 : memref<!tpu.dma_semaphore, #tpu.memory_space<semaphore_mem>>) src(%524 : memref<10x16x128xbf16, #tpu.memory_space<any>>) dst(%526 : memref<10x16x128xbf16, #tpu.memory_space<vmem>>)
    } else {
    }
    %c3_i32_12 = arith.constant 3 : i32
    %21 = arith.cmpi eq, %arg1, %c3_i32_12 : i32
    %22 = arith.extui %21 : i1 to i32
    %c0_i32_13 = arith.constant 0 : i32
    %23 = arith.cmpi ne, %22, %c0_i32_13 : i32
    scf.if %23 {
      %c4_i32_54 = arith.constant 4 : i32
      %521 = arith.muli %arg1, %c4_i32_54 : i32
      %c3_i32_55 = arith.constant 3 : i32
      %522 = arith.subi %521, %c3_i32_55 : i32
      %c0_i32_56 = arith.constant 0 : i32
      %c0_i32_57 = arith.constant 0 : i32
      %523 = tpu.memref_slice %arg2[%arg0, %522, %c0_i32_56, %c0_i32_57] : memref<2x16x16x128xbf16, #tpu.memory_space<any>> -> memref<1x7x16x128xbf16, #tpu.memory_space<any>>
      %524 = tpu.memref_squeeze %523 : memref<1x7x16x128xbf16, #tpu.memory_space<any>> -> memref<7x16x128xbf16, #tpu.memory_space<any>>
      %c0_i32_58 = arith.constant 0 : i32
      %c0_i32_59 = arith.constant 0 : i32
      %c0_i32_60 = arith.constant 0 : i32
      %525 = tpu.memref_slice %arg13[%0, %c0_i32_58, %c0_i32_59, %c0_i32_60] : memref<2x10x16x128xbf16, #tpu.memory_space<vmem>> -> memref<1x7x16x128xbf16, #tpu.memory_space<vmem>>
      %526 = tpu.memref_squeeze %525 : memref<1x7x16x128xbf16, #tpu.memory_space<vmem>> -> memref<7x16x128xbf16, #tpu.memory_space<vmem>>
      %527 = tpu.memref_slice %arg14[%0] : memref<2x!tpu.dma_semaphore, #tpu.memory_space<semaphore_mem>> -> memref<1x!tpu.dma_semaphore, #tpu.memory_space<semaphore_mem>>
      %528 = tpu.memref_squeeze %527 : memref<1x!tpu.dma_semaphore, #tpu.memory_space<semaphore_mem>> -> memref<!tpu.dma_semaphore, #tpu.memory_space<semaphore_mem>>
      tpu.wait_dma2 semaphore(%528 : memref<!tpu.dma_semaphore, #tpu.memory_space<semaphore_mem>>) src(%524 : memref<7x16x128xbf16, #tpu.memory_space<any>>) dst(%526 : memref<7x16x128xbf16, #tpu.memory_space<vmem>>)
    } else {
    }
    %24 = arith.index_cast %0 : i32 to index
    %c0 = arith.constant 0 : index
    %c0_14 = arith.constant 0 : index
    %c0_15 = arith.constant 0 : index
    %25 = vector.load %arg13[%24, %c0, %c0_14, %c0_15] : memref<2x10x16x128xbf16, #tpu.memory_space<vmem>>, vector<1x10x16x128xbf16>
    %26 = vector.shape_cast %25 : vector<1x10x16x128xbf16> to vector<10x16x128xbf16>
    %27 = tpu.iota {dimensions = array<i32: 0>} : vector<10x1x1xi32>
    %c3_i32_16 = arith.constant 3 : i32
    %28 = vector.broadcast %c3_i32_16 : i32 to vector<10x1x1xi32>
    %29 = arith.cmpi slt, %27, %28 : vector<10x1x1xi32>
    %c0_i32_17 = arith.constant 0 : i32
    %30 = arith.cmpi eq, %arg1, %c0_i32_17 : i32
    %31 = vector.broadcast %30 : i1 to vector<10x1x1xi1>
    %32 = arith.andi %29, %31 : vector<10x1x1xi1>
    %c7_i32 = arith.constant 7 : i32
    %33 = vector.broadcast %c7_i32 : i32 to vector<10x1x1xi32>
    %34 = arith.cmpi sge, %27, %33 : vector<10x1x1xi32>
    %c3_i32_18 = arith.constant 3 : i32
    %35 = arith.cmpi eq, %arg1, %c3_i32_18 : i32
    %36 = vector.broadcast %35 : i1 to vector<10x1x1xi1>
    %37 = arith.andi %34, %36 : vector<10x1x1xi1>
    %38 = arith.ori %32, %37 : vector<10x1x1xi1>
    %cst = arith.constant 0.000000e+00 : bf16
    %39 = vector.shape_cast %38 : vector<10x1x1xi1> to vector<10x1x1xi1>
    %40 = vector.broadcast %39 : vector<10x1x1xi1> to vector<10x16x128xi1>
    %41 = vector.broadcast %cst : bf16 to vector<10x16x128xbf16>
    %42 = arith.select %40, %41, %26 : vector<10x16x128xi1>, vector<10x16x128xbf16>
    %cst_19 = arith.constant 0.000000e+00 : bf16
    %43 = vector.broadcast %cst_19 : bf16 to vector<10x3x128xbf16>
    %44 = tpu.concatenate %43, %42, %43 in 1 : vector<10x3x128xbf16>, vector<10x16x128xbf16>, vector<10x3x128xbf16> -> vector<10x22x128xbf16>
    %c0_20 = arith.constant 0 : index
    %c0_21 = arith.constant 0 : index
    %45 = vector.load %arg3[%c0_20, %c0_21] : memref<49x128xbf16, #tpu.memory_space<vmem>>, vector<49x128xbf16>
    %cst_22 = arith.constant 0.000000e+00 : f32
    %46 = vector.broadcast %cst_22 : f32 to vector<4x16x128xf32>
    %47 = vector.extract_strided_slice %44 {offsets = [0, 0, 0], sizes = [10, 16, 128], strides = [1, 1, 1]} : vector<10x22x128xbf16> to vector<10x16x128xbf16>
    %48 = vector.extract_strided_slice %47 {offsets = [0, 0, 0], sizes = [4, 16, 128], strides = [1, 1, 1]} : vector<10x16x128xbf16> to vector<4x16x128xbf16>
    %49 = vector.extract_strided_slice %45 {offsets = [0, 0], sizes = [1, 128], strides = [1, 1]} : vector<49x128xbf16> to vector<1x128xbf16>
    %50 = vector.shape_cast %49 : vector<1x128xbf16> to vector<128xbf16>
    %51 = vector.shape_cast %50 : vector<128xbf16> to vector<1x1x128xbf16>
    %52 = vector.broadcast %51 : vector<1x1x128xbf16> to vector<4x16x128xbf16>
    %53 = arith.mulf %48, %52 : vector<4x16x128xbf16>
    %54 = arith.extf %53 : vector<4x16x128xbf16> to vector<4x16x128xf32>
    %55 = arith.addf %46, %54 : vector<4x16x128xf32>
    %56 = vector.extract_strided_slice %47 {offsets = [1, 0, 0], sizes = [4, 16, 128], strides = [1, 1, 1]} : vector<10x16x128xbf16> to vector<4x16x128xbf16>
    %57 = vector.extract_strided_slice %45 {offsets = [7, 0], sizes = [1, 128], strides = [1, 1]} : vector<49x128xbf16> to vector<1x128xbf16>
    %58 = vector.shape_cast %57 : vector<1x128xbf16> to vector<128xbf16>
    %59 = vector.shape_cast %58 : vector<128xbf16> to vector<1x1x128xbf16>
    %60 = vector.broadcast %59 : vector<1x1x128xbf16> to vector<4x16x128xbf16>
    %61 = arith.mulf %56, %60 : vector<4x16x128xbf16>
    %62 = arith.extf %61 : vector<4x16x128xbf16> to vector<4x16x128xf32>
    %63 = arith.addf %55, %62 : vector<4x16x128xf32>
    %64 = vector.extract_strided_slice %47 {offsets = [2, 0, 0], sizes = [4, 16, 128], strides = [1, 1, 1]} : vector<10x16x128xbf16> to vector<4x16x128xbf16>
    %65 = vector.extract_strided_slice %45 {offsets = [14, 0], sizes = [1, 128], strides = [1, 1]} : vector<49x128xbf16> to vector<1x128xbf16>
    %66 = vector.shape_cast %65 : vector<1x128xbf16> to vector<128xbf16>
    %67 = vector.shape_cast %66 : vector<128xbf16> to vector<1x1x128xbf16>
    %68 = vector.broadcast %67 : vector<1x1x128xbf16> to vector<4x16x128xbf16>
    %69 = arith.mulf %64, %68 : vector<4x16x128xbf16>
    %70 = arith.extf %69 : vector<4x16x128xbf16> to vector<4x16x128xf32>
    %71 = arith.addf %63, %70 : vector<4x16x128xf32>
    %72 = vector.extract_strided_slice %47 {offsets = [3, 0, 0], sizes = [4, 16, 128], strides = [1, 1, 1]} : vector<10x16x128xbf16> to vector<4x16x128xbf16>
    %73 = vector.extract_strided_slice %45 {offsets = [21, 0], sizes = [1, 128], strides = [1, 1]} : vector<49x128xbf16> to vector<1x128xbf16>
    %74 = vector.shape_cast %73 : vector<1x128xbf16> to vector<128xbf16>
    %75 = vector.shape_cast %74 : vector<128xbf16> to vector<1x1x128xbf16>
    %76 = vector.broadcast %75 : vector<1x1x128xbf16> to vector<4x16x128xbf16>
    %77 = arith.mulf %72, %76 : vector<4x16x128xbf16>
    %78 = arith.extf %77 : vector<4x16x128xbf16> to vector<4x16x128xf32>
    %79 = arith.addf %71, %78 : vector<4x16x128xf32>
    %80 = vector.extract_strided_slice %47 {offsets = [4, 0, 0], sizes = [4, 16, 128], strides = [1, 1, 1]} : vector<10x16x128xbf16> to vector<4x16x128xbf16>
    %81 = vector.extract_strided_slice %45 {offsets = [28, 0], sizes = [1, 128], strides = [1, 1]} : vector<49x128xbf16> to vector<1x128xbf16>
    %82 = vector.shape_cast %81 : vector<1x128xbf16> to vector<128xbf16>
    %83 = vector.shape_cast %82 : vector<128xbf16> to vector<1x1x128xbf16>
    %84 = vector.broadcast %83 : vector<1x1x128xbf16> to vector<4x16x128xbf16>
    %85 = arith.mulf %80, %84 : vector<4x16x128xbf16>
    %86 = arith.extf %85 : vector<4x16x128xbf16> to vector<4x16x128xf32>
    %87 = arith.addf %79, %86 : vector<4x16x128xf32>
    %88 = vector.extract_strided_slice %47 {offsets = [5, 0, 0], sizes = [4, 16, 128], strides = [1, 1, 1]} : vector<10x16x128xbf16> to vector<4x16x128xbf16>
    %89 = vector.extract_strided_slice %45 {offsets = [35, 0], sizes = [1, 128], strides = [1, 1]} : vector<49x128xbf16> to vector<1x128xbf16>
    %90 = vector.shape_cast %89 : vector<1x128xbf16> to vector<128xbf16>
    %91 = vector.shape_cast %90 : vector<128xbf16> to vector<1x1x128xbf16>
    %92 = vector.broadcast %91 : vector<1x1x128xbf16> to vector<4x16x128xbf16>
    %93 = arith.mulf %88, %92 : vector<4x16x128xbf16>
    %94 = arith.extf %93 : vector<4x16x128xbf16> to vector<4x16x128xf32>
    %95 = arith.addf %87, %94 : vector<4x16x128xf32>
    %96 = vector.extract_strided_slice %47 {offsets = [6, 0, 0], sizes = [4, 16, 128], strides = [1, 1, 1]} : vector<10x16x128xbf16> to vector<4x16x128xbf16>
    %97 = vector.extract_strided_slice %45 {offsets = [42, 0], sizes = [1, 128], strides = [1, 1]} : vector<49x128xbf16> to vector<1x128xbf16>
    %98 = vector.shape_cast %97 : vector<1x128xbf16> to vector<128xbf16>
    %99 = vector.shape_cast %98 : vector<128xbf16> to vector<1x1x128xbf16>
    %100 = vector.broadcast %99 : vector<1x1x128xbf16> to vector<4x16x128xbf16>
    %101 = arith.mulf %96, %100 : vector<4x16x128xbf16>
    %102 = arith.extf %101 : vector<4x16x128xbf16> to vector<4x16x128xf32>
    %103 = arith.addf %95, %102 : vector<4x16x128xf32>
    %104 = vector.extract_strided_slice %44 {offsets = [0, 1, 0], sizes = [10, 16, 128], strides = [1, 1, 1]} : vector<10x22x128xbf16> to vector<10x16x128xbf16>
    %105 = vector.extract_strided_slice %104 {offsets = [0, 0, 0], sizes = [4, 16, 128], strides = [1, 1, 1]} : vector<10x16x128xbf16> to vector<4x16x128xbf16>
    %106 = vector.extract_strided_slice %45 {offsets = [1, 0], sizes = [1, 128], strides = [1, 1]} : vector<49x128xbf16> to vector<1x128xbf16>
    %107 = vector.shape_cast %106 : vector<1x128xbf16> to vector<128xbf16>
    %108 = vector.shape_cast %107 : vector<128xbf16> to vector<1x1x128xbf16>
    %109 = vector.broadcast %108 : vector<1x1x128xbf16> to vector<4x16x128xbf16>
    %110 = arith.mulf %105, %109 : vector<4x16x128xbf16>
    %111 = arith.extf %110 : vector<4x16x128xbf16> to vector<4x16x128xf32>
    %112 = arith.addf %103, %111 : vector<4x16x128xf32>
    %113 = vector.extract_strided_slice %104 {offsets = [1, 0, 0], sizes = [4, 16, 128], strides = [1, 1, 1]} : vector<10x16x128xbf16> to vector<4x16x128xbf16>
    %114 = vector.extract_strided_slice %45 {offsets = [8, 0], sizes = [1, 128], strides = [1, 1]} : vector<49x128xbf16> to vector<1x128xbf16>
    %115 = vector.shape_cast %114 : vector<1x128xbf16> to vector<128xbf16>
    %116 = vector.shape_cast %115 : vector<128xbf16> to vector<1x1x128xbf16>
    %117 = vector.broadcast %116 : vector<1x1x128xbf16> to vector<4x16x128xbf16>
    %118 = arith.mulf %113, %117 : vector<4x16x128xbf16>
    %119 = arith.extf %118 : vector<4x16x128xbf16> to vector<4x16x128xf32>
    %120 = arith.addf %112, %119 : vector<4x16x128xf32>
    %121 = vector.extract_strided_slice %104 {offsets = [2, 0, 0], sizes = [4, 16, 128], strides = [1, 1, 1]} : vector<10x16x128xbf16> to vector<4x16x128xbf16>
    %122 = vector.extract_strided_slice %45 {offsets = [15, 0], sizes = [1, 128], strides = [1, 1]} : vector<49x128xbf16> to vector<1x128xbf16>
    %123 = vector.shape_cast %122 : vector<1x128xbf16> to vector<128xbf16>
    %124 = vector.shape_cast %123 : vector<128xbf16> to vector<1x1x128xbf16>
    %125 = vector.broadcast %124 : vector<1x1x128xbf16> to vector<4x16x128xbf16>
    %126 = arith.mulf %121, %125 : vector<4x16x128xbf16>
    %127 = arith.extf %126 : vector<4x16x128xbf16> to vector<4x16x128xf32>
    %128 = arith.addf %120, %127 : vector<4x16x128xf32>
    %129 = vector.extract_strided_slice %104 {offsets = [3, 0, 0], sizes = [4, 16, 128], strides = [1, 1, 1]} : vector<10x16x128xbf16> to vector<4x16x128xbf16>
    %130 = vector.extract_strided_slice %45 {offsets = [22, 0], sizes = [1, 128], strides = [1, 1]} : vector<49x128xbf16> to vector<1x128xbf16>
    %131 = vector.shape_cast %130 : vector<1x128xbf16> to vector<128xbf16>
    %132 = vector.shape_cast %131 : vector<128xbf16> to vector<1x1x128xbf16>
    %133 = vector.broadcast %132 : vector<1x1x128xbf16> to vector<4x16x128xbf16>
    %134 = arith.mulf %129, %133 : vector<4x16x128xbf16>
    %135 = arith.extf %134 : vector<4x16x128xbf16> to vector<4x16x128xf32>
    %136 = arith.addf %128, %135 : vector<4x16x128xf32>
    %137 = vector.extract_strided_slice %104 {offsets = [4, 0, 0], sizes = [4, 16, 128], strides = [1, 1, 1]} : vector<10x16x128xbf16> to vector<4x16x128xbf16>
    %138 = vector.extract_strided_slice %45 {offsets = [29, 0], sizes = [1, 128], strides = [1, 1]} : vector<49x128xbf16> to vector<1x128xbf16>
    %139 = vector.shape_cast %138 : vector<1x128xbf16> to vector<128xbf16>
    %140 = vector.shape_cast %139 : vector<128xbf16> to vector<1x1x128xbf16>
    %141 = vector.broadcast %140 : vector<1x1x128xbf16> to vector<4x16x128xbf16>
    %142 = arith.mulf %137, %141 : vector<4x16x128xbf16>
    %143 = arith.extf %142 : vector<4x16x128xbf16> to vector<4x16x128xf32>
    %144 = arith.addf %136, %143 : vector<4x16x128xf32>
    %145 = vector.extract_strided_slice %104 {offsets = [5, 0, 0], sizes = [4, 16, 128], strides = [1, 1, 1]} : vector<10x16x128xbf16> to vector<4x16x128xbf16>
    %146 = vector.extract_strided_slice %45 {offsets = [36, 0], sizes = [1, 128], strides = [1, 1]} : vector<49x128xbf16> to vector<1x128xbf16>
    %147 = vector.shape_cast %146 : vector<1x128xbf16> to vector<128xbf16>
    %148 = vector.shape_cast %147 : vector<128xbf16> to vector<1x1x128xbf16>
    %149 = vector.broadcast %148 : vector<1x1x128xbf16> to vector<4x16x128xbf16>
    %150 = arith.mulf %145, %149 : vector<4x16x128xbf16>
    %151 = arith.extf %150 : vector<4x16x128xbf16> to vector<4x16x128xf32>
    %152 = arith.addf %144, %151 : vector<4x16x128xf32>
    %153 = vector.extract_strided_slice %104 {offsets = [6, 0, 0], sizes = [4, 16, 128], strides = [1, 1, 1]} : vector<10x16x128xbf16> to vector<4x16x128xbf16>
    %154 = vector.extract_strided_slice %45 {offsets = [43, 0], sizes = [1, 128], strides = [1, 1]} : vector<49x128xbf16> to vector<1x128xbf16>
    %155 = vector.shape_cast %154 : vector<1x128xbf16> to vector<128xbf16>
    %156 = vector.shape_cast %155 : vector<128xbf16> to vector<1x1x128xbf16>
    %157 = vector.broadcast %156 : vector<1x1x128xbf16> to vector<4x16x128xbf16>
    %158 = arith.mulf %153, %157 : vector<4x16x128xbf16>
    %159 = arith.extf %158 : vector<4x16x128xbf16> to vector<4x16x128xf32>
    %160 = arith.addf %152, %159 : vector<4x16x128xf32>
    %161 = vector.extract_strided_slice %44 {offsets = [0, 2, 0], sizes = [10, 16, 128], strides = [1, 1, 1]} : vector<10x22x128xbf16> to vector<10x16x128xbf16>
    %162 = vector.extract_strided_slice %161 {offsets = [0, 0, 0], sizes = [4, 16, 128], strides = [1, 1, 1]} : vector<10x16x128xbf16> to vector<4x16x128xbf16>
    %163 = vector.extract_strided_slice %45 {offsets = [2, 0], sizes = [1, 128], strides = [1, 1]} : vector<49x128xbf16> to vector<1x128xbf16>
    %164 = vector.shape_cast %163 : vector<1x128xbf16> to vector<128xbf16>
    %165 = vector.shape_cast %164 : vector<128xbf16> to vector<1x1x128xbf16>
    %166 = vector.broadcast %165 : vector<1x1x128xbf16> to vector<4x16x128xbf16>
    %167 = arith.mulf %162, %166 : vector<4x16x128xbf16>
    %168 = arith.extf %167 : vector<4x16x128xbf16> to vector<4x16x128xf32>
    %169 = arith.addf %160, %168 : vector<4x16x128xf32>
    %170 = vector.extract_strided_slice %161 {offsets = [1, 0, 0], sizes = [4, 16, 128], strides = [1, 1, 1]} : vector<10x16x128xbf16> to vector<4x16x128xbf16>
    %171 = vector.extract_strided_slice %45 {offsets = [9, 0], sizes = [1, 128], strides = [1, 1]} : vector<49x128xbf16> to vector<1x128xbf16>
    %172 = vector.shape_cast %171 : vector<1x128xbf16> to vector<128xbf16>
    %173 = vector.shape_cast %172 : vector<128xbf16> to vector<1x1x128xbf16>
    %174 = vector.broadcast %173 : vector<1x1x128xbf16> to vector<4x16x128xbf16>
    %175 = arith.mulf %170, %174 : vector<4x16x128xbf16>
    %176 = arith.extf %175 : vector<4x16x128xbf16> to vector<4x16x128xf32>
    %177 = arith.addf %169, %176 : vector<4x16x128xf32>
    %178 = vector.extract_strided_slice %161 {offsets = [2, 0, 0], sizes = [4, 16, 128], strides = [1, 1, 1]} : vector<10x16x128xbf16> to vector<4x16x128xbf16>
    %179 = vector.extract_strided_slice %45 {offsets = [16, 0], sizes = [1, 128], strides = [1, 1]} : vector<49x128xbf16> to vector<1x128xbf16>
    %180 = vector.shape_cast %179 : vector<1x128xbf16> to vector<128xbf16>
    %181 = vector.shape_cast %180 : vector<128xbf16> to vector<1x1x128xbf16>
    %182 = vector.broadcast %181 : vector<1x1x128xbf16> to vector<4x16x128xbf16>
    %183 = arith.mulf %178, %182 : vector<4x16x128xbf16>
    %184 = arith.extf %183 : vector<4x16x128xbf16> to vector<4x16x128xf32>
    %185 = arith.addf %177, %184 : vector<4x16x128xf32>
    %186 = vector.extract_strided_slice %161 {offsets = [3, 0, 0], sizes = [4, 16, 128], strides = [1, 1, 1]} : vector<10x16x128xbf16> to vector<4x16x128xbf16>
    %187 = vector.extract_strided_slice %45 {offsets = [23, 0], sizes = [1, 128], strides = [1, 1]} : vector<49x128xbf16> to vector<1x128xbf16>
    %188 = vector.shape_cast %187 : vector<1x128xbf16> to vector<128xbf16>
    %189 = vector.shape_cast %188 : vector<128xbf16> to vector<1x1x128xbf16>
    %190 = vector.broadcast %189 : vector<1x1x128xbf16> to vector<4x16x128xbf16>
    %191 = arith.mulf %186, %190 : vector<4x16x128xbf16>
    %192 = arith.extf %191 : vector<4x16x128xbf16> to vector<4x16x128xf32>
    %193 = arith.addf %185, %192 : vector<4x16x128xf32>
    %194 = vector.extract_strided_slice %161 {offsets = [4, 0, 0], sizes = [4, 16, 128], strides = [1, 1, 1]} : vector<10x16x128xbf16> to vector<4x16x128xbf16>
    %195 = vector.extract_strided_slice %45 {offsets = [30, 0], sizes = [1, 128], strides = [1, 1]} : vector<49x128xbf16> to vector<1x128xbf16>
    %196 = vector.shape_cast %195 : vector<1x128xbf16> to vector<128xbf16>
    %197 = vector.shape_cast %196 : vector<128xbf16> to vector<1x1x128xbf16>
    %198 = vector.broadcast %197 : vector<1x1x128xbf16> to vector<4x16x128xbf16>
    %199 = arith.mulf %194, %198 : vector<4x16x128xbf16>
    %200 = arith.extf %199 : vector<4x16x128xbf16> to vector<4x16x128xf32>
    %201 = arith.addf %193, %200 : vector<4x16x128xf32>
    %202 = vector.extract_strided_slice %161 {offsets = [5, 0, 0], sizes = [4, 16, 128], strides = [1, 1, 1]} : vector<10x16x128xbf16> to vector<4x16x128xbf16>
    %203 = vector.extract_strided_slice %45 {offsets = [37, 0], sizes = [1, 128], strides = [1, 1]} : vector<49x128xbf16> to vector<1x128xbf16>
    %204 = vector.shape_cast %203 : vector<1x128xbf16> to vector<128xbf16>
    %205 = vector.shape_cast %204 : vector<128xbf16> to vector<1x1x128xbf16>
    %206 = vector.broadcast %205 : vector<1x1x128xbf16> to vector<4x16x128xbf16>
    %207 = arith.mulf %202, %206 : vector<4x16x128xbf16>
    %208 = arith.extf %207 : vector<4x16x128xbf16> to vector<4x16x128xf32>
    %209 = arith.addf %201, %208 : vector<4x16x128xf32>
    %210 = vector.extract_strided_slice %161 {offsets = [6, 0, 0], sizes = [4, 16, 128], strides = [1, 1, 1]} : vector<10x16x128xbf16> to vector<4x16x128xbf16>
    %211 = vector.extract_strided_slice %45 {offsets = [44, 0], sizes = [1, 128], strides = [1, 1]} : vector<49x128xbf16> to vector<1x128xbf16>
    %212 = vector.shape_cast %211 : vector<1x128xbf16> to vector<128xbf16>
    %213 = vector.shape_cast %212 : vector<128xbf16> to vector<1x1x128xbf16>
    %214 = vector.broadcast %213 : vector<1x1x128xbf16> to vector<4x16x128xbf16>
    %215 = arith.mulf %210, %214 : vector<4x16x128xbf16>
    %216 = arith.extf %215 : vector<4x16x128xbf16> to vector<4x16x128xf32>
    %217 = arith.addf %209, %216 : vector<4x16x128xf32>
    %218 = vector.extract_strided_slice %42 {offsets = [0, 0, 0], sizes = [4, 16, 128], strides = [1, 1, 1]} : vector<10x16x128xbf16> to vector<4x16x128xbf16>
    %219 = vector.extract_strided_slice %45 {offsets = [3, 0], sizes = [1, 128], strides = [1, 1]} : vector<49x128xbf16> to vector<1x128xbf16>
    %220 = vector.shape_cast %219 : vector<1x128xbf16> to vector<128xbf16>
    %221 = vector.shape_cast %220 : vector<128xbf16> to vector<1x1x128xbf16>
    %222 = vector.broadcast %221 : vector<1x1x128xbf16> to vector<4x16x128xbf16>
    %223 = arith.mulf %218, %222 : vector<4x16x128xbf16>
    %224 = arith.extf %223 : vector<4x16x128xbf16> to vector<4x16x128xf32>
    %225 = arith.addf %217, %224 : vector<4x16x128xf32>
    %226 = vector.extract_strided_slice %42 {offsets = [1, 0, 0], sizes = [4, 16, 128], strides = [1, 1, 1]} : vector<10x16x128xbf16> to vector<4x16x128xbf16>
    %227 = vector.extract_strided_slice %45 {offsets = [10, 0], sizes = [1, 128], strides = [1, 1]} : vector<49x128xbf16> to vector<1x128xbf16>
    %228 = vector.shape_cast %227 : vector<1x128xbf16> to vector<128xbf16>
    %229 = vector.shape_cast %228 : vector<128xbf16> to vector<1x1x128xbf16>
    %230 = vector.broadcast %229 : vector<1x1x128xbf16> to vector<4x16x128xbf16>
    %231 = arith.mulf %226, %230 : vector<4x16x128xbf16>
    %232 = arith.extf %231 : vector<4x16x128xbf16> to vector<4x16x128xf32>
    %233 = arith.addf %225, %232 : vector<4x16x128xf32>
    %234 = vector.extract_strided_slice %42 {offsets = [2, 0, 0], sizes = [4, 16, 128], strides = [1, 1, 1]} : vector<10x16x128xbf16> to vector<4x16x128xbf16>
    %235 = vector.extract_strided_slice %45 {offsets = [17, 0], sizes = [1, 128], strides = [1, 1]} : vector<49x128xbf16> to vector<1x128xbf16>
    %236 = vector.shape_cast %235 : vector<1x128xbf16> to vector<128xbf16>
    %237 = vector.shape_cast %236 : vector<128xbf16> to vector<1x1x128xbf16>
    %238 = vector.broadcast %237 : vector<1x1x128xbf16> to vector<4x16x128xbf16>
    %239 = arith.mulf %234, %238 : vector<4x16x128xbf16>
    %240 = arith.extf %239 : vector<4x16x128xbf16> to vector<4x16x128xf32>
    %241 = arith.addf %233, %240 : vector<4x16x128xf32>
    %242 = vector.extract_strided_slice %42 {offsets = [3, 0, 0], sizes = [4, 16, 128], strides = [1, 1, 1]} : vector<10x16x128xbf16> to vector<4x16x128xbf16>
    %243 = vector.extract_strided_slice %45 {offsets = [24, 0], sizes = [1, 128], strides = [1, 1]} : vector<49x128xbf16> to vector<1x128xbf16>
    %244 = vector.shape_cast %243 : vector<1x128xbf16> to vector<128xbf16>
    %245 = vector.shape_cast %244 : vector<128xbf16> to vector<1x1x128xbf16>
    %246 = vector.broadcast %245 : vector<1x1x128xbf16> to vector<4x16x128xbf16>
    %247 = arith.mulf %242, %246 : vector<4x16x128xbf16>
    %248 = arith.extf %247 : vector<4x16x128xbf16> to vector<4x16x128xf32>
    %249 = arith.addf %241, %248 : vector<4x16x128xf32>
    %250 = vector.extract_strided_slice %42 {offsets = [4, 0, 0], sizes = [4, 16, 128], strides = [1, 1, 1]} : vector<10x16x128xbf16> to vector<4x16x128xbf16>
    %251 = vector.extract_strided_slice %45 {offsets = [31, 0], sizes = [1, 128], strides = [1, 1]} : vector<49x128xbf16> to vector<1x128xbf16>
    %252 = vector.shape_cast %251 : vector<1x128xbf16> to vector<128xbf16>
    %253 = vector.shape_cast %252 : vector<128xbf16> to vector<1x1x128xbf16>
    %254 = vector.broadcast %253 : vector<1x1x128xbf16> to vector<4x16x128xbf16>
    %255 = arith.mulf %250, %254 : vector<4x16x128xbf16>
    %256 = arith.extf %255 : vector<4x16x128xbf16> to vector<4x16x128xf32>
    %257 = arith.addf %249, %256 : vector<4x16x128xf32>
    %258 = vector.extract_strided_slice %42 {offsets = [5, 0, 0], sizes = [4, 16, 128], strides = [1, 1, 1]} : vector<10x16x128xbf16> to vector<4x16x128xbf16>
    %259 = vector.extract_strided_slice %45 {offsets = [38, 0], sizes = [1, 128], strides = [1, 1]} : vector<49x128xbf16> to vector<1x128xbf16>
    %260 = vector.shape_cast %259 : vector<1x128xbf16> to vector<128xbf16>
    %261 = vector.shape_cast %260 : vector<128xbf16> to vector<1x1x128xbf16>
    %262 = vector.broadcast %261 : vector<1x1x128xbf16> to vector<4x16x128xbf16>
    %263 = arith.mulf %258, %262 : vector<4x16x128xbf16>
    %264 = arith.extf %263 : vector<4x16x128xbf16> to vector<4x16x128xf32>
    %265 = arith.addf %257, %264 : vector<4x16x128xf32>
    %266 = vector.extract_strided_slice %42 {offsets = [6, 0, 0], sizes = [4, 16, 128], strides = [1, 1, 1]} : vector<10x16x128xbf16> to vector<4x16x128xbf16>
    %267 = vector.extract_strided_slice %45 {offsets = [45, 0], sizes = [1, 128], strides = [1, 1]} : vector<49x128xbf16> to vector<1x128xbf16>
    %268 = vector.shape_cast %267 : vector<1x128xbf16> to vector<128xbf16>
    %269 = vector.shape_cast %268 : vector<128xbf16> to vector<1x1x128xbf16>
    %270 = vector.broadcast %269 : vector<1x1x128xbf16> to vector<4x16x128xbf16>
    %271 = arith.mulf %266, %270 : vector<4x16x128xbf16>
    %272 = arith.extf %271 : vector<4x16x128xbf16> to vector<4x16x128xf32>
    %273 = arith.addf %265, %272 : vector<4x16x128xf32>
    %274 = vector.extract_strided_slice %44 {offsets = [0, 4, 0], sizes = [10, 16, 128], strides = [1, 1, 1]} : vector<10x22x128xbf16> to vector<10x16x128xbf16>
    %275 = vector.extract_strided_slice %274 {offsets = [0, 0, 0], sizes = [4, 16, 128], strides = [1, 1, 1]} : vector<10x16x128xbf16> to vector<4x16x128xbf16>
    %276 = vector.extract_strided_slice %45 {offsets = [4, 0], sizes = [1, 128], strides = [1, 1]} : vector<49x128xbf16> to vector<1x128xbf16>
    %277 = vector.shape_cast %276 : vector<1x128xbf16> to vector<128xbf16>
    %278 = vector.shape_cast %277 : vector<128xbf16> to vector<1x1x128xbf16>
    %279 = vector.broadcast %278 : vector<1x1x128xbf16> to vector<4x16x128xbf16>
    %280 = arith.mulf %275, %279 : vector<4x16x128xbf16>
    %281 = arith.extf %280 : vector<4x16x128xbf16> to vector<4x16x128xf32>
    %282 = arith.addf %273, %281 : vector<4x16x128xf32>
    %283 = vector.extract_strided_slice %274 {offsets = [1, 0, 0], sizes = [4, 16, 128], strides = [1, 1, 1]} : vector<10x16x128xbf16> to vector<4x16x128xbf16>
    %284 = vector.extract_strided_slice %45 {offsets = [11, 0], sizes = [1, 128], strides = [1, 1]} : vector<49x128xbf16> to vector<1x128xbf16>
    %285 = vector.shape_cast %284 : vector<1x128xbf16> to vector<128xbf16>
    %286 = vector.shape_cast %285 : vector<128xbf16> to vector<1x1x128xbf16>
    %287 = vector.broadcast %286 : vector<1x1x128xbf16> to vector<4x16x128xbf16>
    %288 = arith.mulf %283, %287 : vector<4x16x128xbf16>
    %289 = arith.extf %288 : vector<4x16x128xbf16> to vector<4x16x128xf32>
    %290 = arith.addf %282, %289 : vector<4x16x128xf32>
    %291 = vector.extract_strided_slice %274 {offsets = [2, 0, 0], sizes = [4, 16, 128], strides = [1, 1, 1]} : vector<10x16x128xbf16> to vector<4x16x128xbf16>
    %292 = vector.extract_strided_slice %45 {offsets = [18, 0], sizes = [1, 128], strides = [1, 1]} : vector<49x128xbf16> to vector<1x128xbf16>
    %293 = vector.shape_cast %292 : vector<1x128xbf16> to vector<128xbf16>
    %294 = vector.shape_cast %293 : vector<128xbf16> to vector<1x1x128xbf16>
    %295 = vector.broadcast %294 : vector<1x1x128xbf16> to vector<4x16x128xbf16>
    %296 = arith.mulf %291, %295 : vector<4x16x128xbf16>
    %297 = arith.extf %296 : vector<4x16x128xbf16> to vector<4x16x128xf32>
    %298 = arith.addf %290, %297 : vector<4x16x128xf32>
    %299 = vector.extract_strided_slice %274 {offsets = [3, 0, 0], sizes = [4, 16, 128], strides = [1, 1, 1]} : vector<10x16x128xbf16> to vector<4x16x128xbf16>
    %300 = vector.extract_strided_slice %45 {offsets = [25, 0], sizes = [1, 128], strides = [1, 1]} : vector<49x128xbf16> to vector<1x128xbf16>
    %301 = vector.shape_cast %300 : vector<1x128xbf16> to vector<128xbf16>
    %302 = vector.shape_cast %301 : vector<128xbf16> to vector<1x1x128xbf16>
    %303 = vector.broadcast %302 : vector<1x1x128xbf16> to vector<4x16x128xbf16>
    %304 = arith.mulf %299, %303 : vector<4x16x128xbf16>
    %305 = arith.extf %304 : vector<4x16x128xbf16> to vector<4x16x128xf32>
    %306 = arith.addf %298, %305 : vector<4x16x128xf32>
    %307 = vector.extract_strided_slice %274 {offsets = [4, 0, 0], sizes = [4, 16, 128], strides = [1, 1, 1]} : vector<10x16x128xbf16> to vector<4x16x128xbf16>
    %308 = vector.extract_strided_slice %45 {offsets = [32, 0], sizes = [1, 128], strides = [1, 1]} : vector<49x128xbf16> to vector<1x128xbf16>
    %309 = vector.shape_cast %308 : vector<1x128xbf16> to vector<128xbf16>
    %310 = vector.shape_cast %309 : vector<128xbf16> to vector<1x1x128xbf16>
    %311 = vector.broadcast %310 : vector<1x1x128xbf16> to vector<4x16x128xbf16>
    %312 = arith.mulf %307, %311 : vector<4x16x128xbf16>
    %313 = arith.extf %312 : vector<4x16x128xbf16> to vector<4x16x128xf32>
    %314 = arith.addf %306, %313 : vector<4x16x128xf32>
    %315 = vector.extract_strided_slice %274 {offsets = [5, 0, 0], sizes = [4, 16, 128], strides = [1, 1, 1]} : vector<10x16x128xbf16> to vector<4x16x128xbf16>
    %316 = vector.extract_strided_slice %45 {offsets = [39, 0], sizes = [1, 128], strides = [1, 1]} : vector<49x128xbf16> to vector<1x128xbf16>
    %317 = vector.shape_cast %316 : vector<1x128xbf16> to vector<128xbf16>
    %318 = vector.shape_cast %317 : vector<128xbf16> to vector<1x1x128xbf16>
    %319 = vector.broadcast %318 : vector<1x1x128xbf16> to vector<4x16x128xbf16>
    %320 = arith.mulf %315, %319 : vector<4x16x128xbf16>
    %321 = arith.extf %320 : vector<4x16x128xbf16> to vector<4x16x128xf32>
    %322 = arith.addf %314, %321 : vector<4x16x128xf32>
    %323 = vector.extract_strided_slice %274 {offsets = [6, 0, 0], sizes = [4, 16, 128], strides = [1, 1, 1]} : vector<10x16x128xbf16> to vector<4x16x128xbf16>
    %324 = vector.extract_strided_slice %45 {offsets = [46, 0], sizes = [1, 128], strides = [1, 1]} : vector<49x128xbf16> to vector<1x128xbf16>
    %325 = vector.shape_cast %324 : vector<1x128xbf16> to vector<128xbf16>
    %326 = vector.shape_cast %325 : vector<128xbf16> to vector<1x1x128xbf16>
    %327 = vector.broadcast %326 : vector<1x1x128xbf16> to vector<4x16x128xbf16>
    %328 = arith.mulf %323, %327 : vector<4x16x128xbf16>
    %329 = arith.extf %328 : vector<4x16x128xbf16> to vector<4x16x128xf32>
    %330 = arith.addf %322, %329 : vector<4x16x128xf32>
    %331 = vector.extract_strided_slice %44 {offsets = [0, 5, 0], sizes = [10, 16, 128], strides = [1, 1, 1]} : vector<10x22x128xbf16> to vector<10x16x128xbf16>
    %332 = vector.extract_strided_slice %331 {offsets = [0, 0, 0], sizes = [4, 16, 128], strides = [1, 1, 1]} : vector<10x16x128xbf16> to vector<4x16x128xbf16>
    %333 = vector.extract_strided_slice %45 {offsets = [5, 0], sizes = [1, 128], strides = [1, 1]} : vector<49x128xbf16> to vector<1x128xbf16>
    %334 = vector.shape_cast %333 : vector<1x128xbf16> to vector<128xbf16>
    %335 = vector.shape_cast %334 : vector<128xbf16> to vector<1x1x128xbf16>
    %336 = vector.broadcast %335 : vector<1x1x128xbf16> to vector<4x16x128xbf16>
    %337 = arith.mulf %332, %336 : vector<4x16x128xbf16>
    %338 = arith.extf %337 : vector<4x16x128xbf16> to vector<4x16x128xf32>
    %339 = arith.addf %330, %338 : vector<4x16x128xf32>
    %340 = vector.extract_strided_slice %331 {offsets = [1, 0, 0], sizes = [4, 16, 128], strides = [1, 1, 1]} : vector<10x16x128xbf16> to vector<4x16x128xbf16>
    %341 = vector.extract_strided_slice %45 {offsets = [12, 0], sizes = [1, 128], strides = [1, 1]} : vector<49x128xbf16> to vector<1x128xbf16>
    %342 = vector.shape_cast %341 : vector<1x128xbf16> to vector<128xbf16>
    %343 = vector.shape_cast %342 : vector<128xbf16> to vector<1x1x128xbf16>
    %344 = vector.broadcast %343 : vector<1x1x128xbf16> to vector<4x16x128xbf16>
    %345 = arith.mulf %340, %344 : vector<4x16x128xbf16>
    %346 = arith.extf %345 : vector<4x16x128xbf16> to vector<4x16x128xf32>
    %347 = arith.addf %339, %346 : vector<4x16x128xf32>
    %348 = vector.extract_strided_slice %331 {offsets = [2, 0, 0], sizes = [4, 16, 128], strides = [1, 1, 1]} : vector<10x16x128xbf16> to vector<4x16x128xbf16>
    %349 = vector.extract_strided_slice %45 {offsets = [19, 0], sizes = [1, 128], strides = [1, 1]} : vector<49x128xbf16> to vector<1x128xbf16>
    %350 = vector.shape_cast %349 : vector<1x128xbf16> to vector<128xbf16>
    %351 = vector.shape_cast %350 : vector<128xbf16> to vector<1x1x128xbf16>
    %352 = vector.broadcast %351 : vector<1x1x128xbf16> to vector<4x16x128xbf16>
    %353 = arith.mulf %348, %352 : vector<4x16x128xbf16>
    %354 = arith.extf %353 : vector<4x16x128xbf16> to vector<4x16x128xf32>
    %355 = arith.addf %347, %354 : vector<4x16x128xf32>
    %356 = vector.extract_strided_slice %331 {offsets = [3, 0, 0], sizes = [4, 16, 128], strides = [1, 1, 1]} : vector<10x16x128xbf16> to vector<4x16x128xbf16>
    %357 = vector.extract_strided_slice %45 {offsets = [26, 0], sizes = [1, 128], strides = [1, 1]} : vector<49x128xbf16> to vector<1x128xbf16>
    %358 = vector.shape_cast %357 : vector<1x128xbf16> to vector<128xbf16>
    %359 = vector.shape_cast %358 : vector<128xbf16> to vector<1x1x128xbf16>
    %360 = vector.broadcast %359 : vector<1x1x128xbf16> to vector<4x16x128xbf16>
    %361 = arith.mulf %356, %360 : vector<4x16x128xbf16>
    %362 = arith.extf %361 : vector<4x16x128xbf16> to vector<4x16x128xf32>
    %363 = arith.addf %355, %362 : vector<4x16x128xf32>
    %364 = vector.extract_strided_slice %331 {offsets = [4, 0, 0], sizes = [4, 16, 128], strides = [1, 1, 1]} : vector<10x16x128xbf16> to vector<4x16x128xbf16>
    %365 = vector.extract_strided_slice %45 {offsets = [33, 0], sizes = [1, 128], strides = [1, 1]} : vector<49x128xbf16> to vector<1x128xbf16>
    %366 = vector.shape_cast %365 : vector<1x128xbf16> to vector<128xbf16>
    %367 = vector.shape_cast %366 : vector<128xbf16> to vector<1x1x128xbf16>
    %368 = vector.broadcast %367 : vector<1x1x128xbf16> to vector<4x16x128xbf16>
    %369 = arith.mulf %364, %368 : vector<4x16x128xbf16>
    %370 = arith.extf %369 : vector<4x16x128xbf16> to vector<4x16x128xf32>
    %371 = arith.addf %363, %370 : vector<4x16x128xf32>
    %372 = vector.extract_strided_slice %331 {offsets = [5, 0, 0], sizes = [4, 16, 128], strides = [1, 1, 1]} : vector<10x16x128xbf16> to vector<4x16x128xbf16>
    %373 = vector.extract_strided_slice %45 {offsets = [40, 0], sizes = [1, 128], strides = [1, 1]} : vector<49x128xbf16> to vector<1x128xbf16>
    %374 = vector.shape_cast %373 : vector<1x128xbf16> to vector<128xbf16>
    %375 = vector.shape_cast %374 : vector<128xbf16> to vector<1x1x128xbf16>
    %376 = vector.broadcast %375 : vector<1x1x128xbf16> to vector<4x16x128xbf16>
    %377 = arith.mulf %372, %376 : vector<4x16x128xbf16>
    %378 = arith.extf %377 : vector<4x16x128xbf16> to vector<4x16x128xf32>
    %379 = arith.addf %371, %378 : vector<4x16x128xf32>
    %380 = vector.extract_strided_slice %331 {offsets = [6, 0, 0], sizes = [4, 16, 128], strides = [1, 1, 1]} : vector<10x16x128xbf16> to vector<4x16x128xbf16>
    %381 = vector.extract_strided_slice %45 {offsets = [47, 0], sizes = [1, 128], strides = [1, 1]} : vector<49x128xbf16> to vector<1x128xbf16>
    %382 = vector.shape_cast %381 : vector<1x128xbf16> to vector<128xbf16>
    %383 = vector.shape_cast %382 : vector<128xbf16> to vector<1x1x128xbf16>
    %384 = vector.broadcast %383 : vector<1x1x128xbf16> to vector<4x16x128xbf16>
    %385 = arith.mulf %380, %384 : vector<4x16x128xbf16>
    %386 = arith.extf %385 : vector<4x16x128xbf16> to vector<4x16x128xf32>
    %387 = arith.addf %379, %386 : vector<4x16x128xf32>
    %388 = vector.extract_strided_slice %44 {offsets = [0, 6, 0], sizes = [10, 16, 128], strides = [1, 1, 1]} : vector<10x22x128xbf16> to vector<10x16x128xbf16>
    %389 = vector.extract_strided_slice %388 {offsets = [0, 0, 0], sizes = [4, 16, 128], strides = [1, 1, 1]} : vector<10x16x128xbf16> to vector<4x16x128xbf16>
    %390 = vector.extract_strided_slice %45 {offsets = [6, 0], sizes = [1, 128], strides = [1, 1]} : vector<49x128xbf16> to vector<1x128xbf16>
    %391 = vector.shape_cast %390 : vector<1x128xbf16> to vector<128xbf16>
    %392 = vector.shape_cast %391 : vector<128xbf16> to vector<1x1x128xbf16>
    %393 = vector.broadcast %392 : vector<1x1x128xbf16> to vector<4x16x128xbf16>
    %394 = arith.mulf %389, %393 : vector<4x16x128xbf16>
    %395 = arith.extf %394 : vector<4x16x128xbf16> to vector<4x16x128xf32>
    %396 = arith.addf %387, %395 : vector<4x16x128xf32>
    %397 = vector.extract_strided_slice %388 {offsets = [1, 0, 0], sizes = [4, 16, 128], strides = [1, 1, 1]} : vector<10x16x128xbf16> to vector<4x16x128xbf16>
    %398 = vector.extract_strided_slice %45 {offsets = [13, 0], sizes = [1, 128], strides = [1, 1]} : vector<49x128xbf16> to vector<1x128xbf16>
    %399 = vector.shape_cast %398 : vector<1x128xbf16> to vector<128xbf16>
    %400 = vector.shape_cast %399 : vector<128xbf16> to vector<1x1x128xbf16>
    %401 = vector.broadcast %400 : vector<1x1x128xbf16> to vector<4x16x128xbf16>
    %402 = arith.mulf %397, %401 : vector<4x16x128xbf16>
    %403 = arith.extf %402 : vector<4x16x128xbf16> to vector<4x16x128xf32>
    %404 = arith.addf %396, %403 : vector<4x16x128xf32>
    %405 = vector.extract_strided_slice %388 {offsets = [2, 0, 0], sizes = [4, 16, 128], strides = [1, 1, 1]} : vector<10x16x128xbf16> to vector<4x16x128xbf16>
    %406 = vector.extract_strided_slice %45 {offsets = [20, 0], sizes = [1, 128], strides = [1, 1]} : vector<49x128xbf16> to vector<1x128xbf16>
    %407 = vector.shape_cast %406 : vector<1x128xbf16> to vector<128xbf16>
    %408 = vector.shape_cast %407 : vector<128xbf16> to vector<1x1x128xbf16>
    %409 = vector.broadcast %408 : vector<1x1x128xbf16> to vector<4x16x128xbf16>
    %410 = arith.mulf %405, %409 : vector<4x16x128xbf16>
    %411 = arith.extf %410 : vector<4x16x128xbf16> to vector<4x16x128xf32>
    %412 = arith.addf %404, %411 : vector<4x16x128xf32>
    %413 = vector.extract_strided_slice %388 {offsets = [3, 0, 0], sizes = [4, 16, 128], strides = [1, 1, 1]} : vector<10x16x128xbf16> to vector<4x16x128xbf16>
    %414 = vector.extract_strided_slice %45 {offsets = [27, 0], sizes = [1, 128], strides = [1, 1]} : vector<49x128xbf16> to vector<1x128xbf16>
    %415 = vector.shape_cast %414 : vector<1x128xbf16> to vector<128xbf16>
    %416 = vector.shape_cast %415 : vector<128xbf16> to vector<1x1x128xbf16>
    %417 = vector.broadcast %416 : vector<1x1x128xbf16> to vector<4x16x128xbf16>
    %418 = arith.mulf %413, %417 : vector<4x16x128xbf16>
    %419 = arith.extf %418 : vector<4x16x128xbf16> to vector<4x16x128xf32>
    %420 = arith.addf %412, %419 : vector<4x16x128xf32>
    %421 = vector.extract_strided_slice %388 {offsets = [4, 0, 0], sizes = [4, 16, 128], strides = [1, 1, 1]} : vector<10x16x128xbf16> to vector<4x16x128xbf16>
    %422 = vector.extract_strided_slice %45 {offsets = [34, 0], sizes = [1, 128], strides = [1, 1]} : vector<49x128xbf16> to vector<1x128xbf16>
    %423 = vector.shape_cast %422 : vector<1x128xbf16> to vector<128xbf16>
    %424 = vector.shape_cast %423 : vector<128xbf16> to vector<1x1x128xbf16>
    %425 = vector.broadcast %424 : vector<1x1x128xbf16> to vector<4x16x128xbf16>
    %426 = arith.mulf %421, %425 : vector<4x16x128xbf16>
    %427 = arith.extf %426 : vector<4x16x128xbf16> to vector<4x16x128xf32>
    %428 = arith.addf %420, %427 : vector<4x16x128xf32>
    %429 = vector.extract_strided_slice %388 {offsets = [5, 0, 0], sizes = [4, 16, 128], strides = [1, 1, 1]} : vector<10x16x128xbf16> to vector<4x16x128xbf16>
    %430 = vector.extract_strided_slice %45 {offsets = [41, 0], sizes = [1, 128], strides = [1, 1]} : vector<49x128xbf16> to vector<1x128xbf16>
    %431 = vector.shape_cast %430 : vector<1x128xbf16> to vector<128xbf16>
    %432 = vector.shape_cast %431 : vector<128xbf16> to vector<1x1x128xbf16>
    %433 = vector.broadcast %432 : vector<1x1x128xbf16> to vector<4x16x128xbf16>
    %434 = arith.mulf %429, %433 : vector<4x16x128xbf16>
    %435 = arith.extf %434 : vector<4x16x128xbf16> to vector<4x16x128xf32>
    %436 = arith.addf %428, %435 : vector<4x16x128xf32>
    %437 = vector.extract_strided_slice %388 {offsets = [6, 0, 0], sizes = [4, 16, 128], strides = [1, 1, 1]} : vector<10x16x128xbf16> to vector<4x16x128xbf16>
    %438 = vector.extract_strided_slice %45 {offsets = [48, 0], sizes = [1, 128], strides = [1, 1]} : vector<49x128xbf16> to vector<1x128xbf16>
    %439 = vector.shape_cast %438 : vector<1x128xbf16> to vector<128xbf16>
    %440 = vector.shape_cast %439 : vector<128xbf16> to vector<1x1x128xbf16>
    %441 = vector.broadcast %440 : vector<1x1x128xbf16> to vector<4x16x128xbf16>
    %442 = arith.mulf %437, %441 : vector<4x16x128xbf16>
    %443 = arith.extf %442 : vector<4x16x128xbf16> to vector<4x16x128xf32>
    %444 = arith.addf %436, %443 : vector<4x16x128xf32>
    %c0_23 = arith.constant 0 : index
    %c0_24 = arith.constant 0 : index
    %445 = vector.load %arg4[%c0_23, %c0_24] : memref<1x128xf32, #tpu.memory_space<vmem>>, vector<1x128xf32>
    %446 = vector.shape_cast %445 : vector<1x128xf32> to vector<128xf32>
    %447 = vector.shape_cast %446 : vector<128xf32> to vector<1x1x128xf32>
    %448 = vector.broadcast %447 : vector<1x1x128xf32> to vector<4x16x128xf32>
    %449 = arith.addf %444, %448 : vector<4x16x128xf32>
    %cst_25 = arith.constant dense<0.000000e+00> : vector<4x16xf32>
    %450 = vector.multi_reduction <add>, %449, %cst_25 [2] : vector<4x16x128xf32> to vector<4x16xf32>
    %451 = vector.shape_cast %450 : vector<4x16xf32> to vector<4x16x1xf32>
    %cst_26 = arith.constant 2.500000e-01 : f32
    %452 = vector.broadcast %cst_26 : f32 to vector<4x16x1xf32>
    %453 = arith.mulf %451, %452 : vector<4x16x1xf32>
    %454 = vector.broadcast %453 : vector<4x16x1xf32> to vector<4x16x128xf32>
    %455 = arith.subf %449, %454 : vector<4x16x128xf32>
    %456 = tpu.iota {dimensions = array<i32: 2>} : vector<1x1x128xi32>
    %c4_i32 = arith.constant 4 : i32
    %457 = vector.broadcast %c4_i32 : i32 to vector<1x1x128xi32>
    %458 = arith.cmpi slt, %456, %457 : vector<1x1x128xi32>
    %cst_27 = arith.constant 0.000000e+00 : f32
    %459 = vector.shape_cast %458 : vector<1x1x128xi1> to vector<1x1x128xi1>
    %460 = vector.broadcast %459 : vector<1x1x128xi1> to vector<4x16x128xi1>
    %461 = vector.broadcast %cst_27 : f32 to vector<4x16x128xf32>
    %462 = arith.select %460, %455, %461 : vector<4x16x128xi1>, vector<4x16x128xf32>
    %463 = arith.mulf %462, %462 : vector<4x16x128xf32>
    %cst_28 = arith.constant dense<0.000000e+00> : vector<4x16xf32>
    %464 = vector.multi_reduction <add>, %463, %cst_28 [2] : vector<4x16x128xf32> to vector<4x16xf32>
    %465 = vector.shape_cast %464 : vector<4x16xf32> to vector<4x16x1xf32>
    %cst_29 = arith.constant 2.500000e-01 : f32
    %466 = vector.broadcast %cst_29 : f32 to vector<4x16x1xf32>
    %467 = arith.mulf %465, %466 : vector<4x16x1xf32>
    %cst_30 = arith.constant 9.99999997E-7 : f32
    %468 = vector.broadcast %cst_30 : f32 to vector<4x16x1xf32>
    %469 = arith.addf %467, %468 : vector<4x16x1xf32>
    %470 = math.rsqrt %469 : vector<4x16x1xf32>
    %471 = vector.broadcast %470 : vector<4x16x1xf32> to vector<4x16x128xf32>
    %472 = arith.mulf %455, %471 : vector<4x16x128xf32>
    %c0_31 = arith.constant 0 : index
    %c0_32 = arith.constant 0 : index
    %473 = vector.load %arg5[%c0_31, %c0_32] : memref<1x128xf32, #tpu.memory_space<vmem>>, vector<1x128xf32>
    %474 = vector.shape_cast %473 : vector<1x128xf32> to vector<128xf32>
    %475 = vector.shape_cast %474 : vector<128xf32> to vector<1x1x128xf32>
    %476 = vector.broadcast %475 : vector<1x1x128xf32> to vector<4x16x128xf32>
    %477 = arith.mulf %472, %476 : vector<4x16x128xf32>
    %c0_33 = arith.constant 0 : index
    %c0_34 = arith.constant 0 : index
    %478 = vector.load %arg6[%c0_33, %c0_34] : memref<1x128xf32, #tpu.memory_space<vmem>>, vector<1x128xf32>
    %479 = vector.shape_cast %478 : vector<1x128xf32> to vector<128xf32>
    %480 = vector.shape_cast %479 : vector<128xf32> to vector<1x1x128xf32>
    %481 = vector.broadcast %480 : vector<1x1x128xf32> to vector<4x16x128xf32>
    %482 = arith.addf %477, %481 : vector<4x16x128xf32>
    %483 = vector.shape_cast %482 : vector<4x16x128xf32> to vector<64x128xf32>
    %484 = arith.truncf %483 : vector<64x128xf32> to vector<64x128xbf16>
    %c0_35 = arith.constant 0 : index
    %c0_36 = arith.constant 0 : index
    %485 = vector.load %arg7[%c0_35, %c0_36] : memref<128x128xbf16, #tpu.memory_space<vmem>>, vector<128x128xbf16>
    %cst_37 = arith.constant dense<0.000000e+00> : vector<64x128xf32>
    %486 = tpu.matmul %484, %485, %cst_37 {dimension_numbers = #tpu.dot_dimension_numbers<[1], [0], [0], [1], [0, 0, 1, 1], [], []>} : vector<64x128xbf16>, vector<128x128xbf16>, vector<64x128xf32> -> vector<64x128xf32>
    %c0_38 = arith.constant 0 : index
    %c0_39 = arith.constant 0 : index
    %487 = vector.load %arg8[%c0_38, %c0_39] : memref<1x128xf32, #tpu.memory_space<vmem>>, vector<1x128xf32>
    %488 = vector.shape_cast %487 : vector<1x128xf32> to vector<128xf32>
    %489 = vector.shape_cast %488 : vector<128xf32> to vector<1x128xf32>
    %490 = vector.broadcast %489 : vector<1x128xf32> to vector<64x128xf32>
    %491 = arith.addf %486, %490 : vector<64x128xf32>
    %cst_40 = arith.constant 0.707106769 : f32
    %492 = vector.broadcast %cst_40 : f32 to vector<64x128xf32>
    %493 = arith.mulf %491, %492 : vector<64x128xf32>
    %494 = math.erf %493 : vector<64x128xf32>
    %cst_41 = arith.constant 5.000000e-01 : f32
    %495 = vector.broadcast %cst_41 : f32 to vector<64x128xf32>
    %496 = arith.mulf %495, %494 : vector<64x128xf32>
    %cst_42 = arith.constant 5.000000e-01 : f32
    %497 = vector.broadcast %cst_42 : f32 to vector<64x128xf32>
    %498 = arith.addf %497, %496 : vector<64x128xf32>
    %499 = arith.mulf %491, %498 : vector<64x128xf32>
    %500 = arith.truncf %499 : vector<64x128xf32> to vector<64x128xbf16>
    %c0_43 = arith.constant 0 : index
    %c0_44 = arith.constant 0 : index
    %501 = vector.load %arg9[%c0_43, %c0_44] : memref<128x128xbf16, #tpu.memory_space<vmem>>, vector<128x128xbf16>
    %cst_45 = arith.constant dense<0.000000e+00> : vector<64x128xf32>
    %502 = tpu.matmul %500, %501, %cst_45 {dimension_numbers = #tpu.dot_dimension_numbers<[1], [0], [0], [1], [0, 0, 1, 1], [], []>} : vector<64x128xbf16>, vector<128x128xbf16>, vector<64x128xf32> -> vector<64x128xf32>
    %c0_46 = arith.constant 0 : index
    %c0_47 = arith.constant 0 : index
    %503 = vector.load %arg10[%c0_46, %c0_47] : memref<1x128xf32, #tpu.memory_space<vmem>>, vector<1x128xf32>
    %504 = vector.shape_cast %503 : vector<1x128xf32> to vector<128xf32>
    %505 = vector.shape_cast %504 : vector<128xf32> to vector<1x128xf32>
    %506 = vector.broadcast %505 : vector<1x128xf32> to vector<64x128xf32>
    %507 = arith.addf %502, %506 : vector<64x128xf32>
    %c0_48 = arith.constant 0 : index
    %c0_49 = arith.constant 0 : index
    %508 = vector.load %arg11[%c0_48, %c0_49] : memref<1x128xf32, #tpu.memory_space<vmem>>, vector<1x128xf32>
    %509 = vector.shape_cast %508 : vector<1x128xf32> to vector<128xf32>
    %510 = vector.shape_cast %509 : vector<128xf32> to vector<1x128xf32>
    %511 = vector.broadcast %510 : vector<1x128xf32> to vector<64x128xf32>
    %512 = arith.mulf %507, %511 : vector<64x128xf32>
    %513 = vector.shape_cast %512 : vector<64x128xf32> to vector<4x16x128xf32>
    %514 = vector.extract_strided_slice %42 {offsets = [3, 0, 0], sizes = [4, 16, 128], strides = [1, 1, 1]} : vector<10x16x128xbf16> to vector<4x16x128xbf16>
    %515 = arith.extf %514 : vector<4x16x128xbf16> to vector<4x16x128xf32>
    %516 = arith.addf %515, %513 : vector<4x16x128xf32>
    %517 = arith.truncf %516 : vector<4x16x128xf32> to vector<4x16x128xbf16>
    %c0_50 = arith.constant 0 : index
    %c0_51 = arith.constant 0 : index
    %c0_52 = arith.constant 0 : index
    %c0_53 = arith.constant 0 : index
    %518 = vector.load %arg12[%c0_50, %c0_51, %c0_52, %c0_53] : memref<1x4x16x128xbf16, #tpu.memory_space<vmem>>, vector<1x4x16x128xbf16>
    %519 = vector.shape_cast %518 : vector<1x4x16x128xbf16> to vector<4x16x128xbf16>
    %520 = vector.shape_cast %517 : vector<4x16x128xbf16> to vector<1x4x16x128xbf16>
    tpu.vector_store %arg12[%c0_50, %c0_51, %c0_52, %c0_53], %520 {strides = array<i32>} : memref<1x4x16x128xbf16, #tpu.memory_space<vmem>>, vector<1x4x16x128xbf16>,
    return
  }
  func.func @transform_1(%arg0: i32, %arg1: i32) -> (i32, i32) {
    %c0_i32 = arith.constant 0 : i32
    %c0_i32_0 = arith.constant 0 : i32
    %c0_i32_1 = arith.constant 0 : i32
    return %c0_i32, %c0_i32_0 : i32, i32
  }
  func.func @transform_2(%arg0: i32, %arg1: i32) -> (i32, i32) {
    %c0_i32 = arith.constant 0 : i32
    %c0_i32_0 = arith.constant 0 : i32
    %c0_i32_1 = arith.constant 0 : i32
    return %c0_i32, %c0_i32_0 : i32, i32
  }
  func.func @transform_3(%arg0: i32, %arg1: i32) -> (i32, i32) {
    %c0_i32 = arith.constant 0 : i32
    %c0_i32_0 = arith.constant 0 : i32
    %c0_i32_1 = arith.constant 0 : i32
    return %c0_i32, %c0_i32_0 : i32, i32
  }
  func.func @transform_4(%arg0: i32, %arg1: i32) -> (i32, i32) {
    %c0_i32 = arith.constant 0 : i32
    %c0_i32_0 = arith.constant 0 : i32
    %c0_i32_1 = arith.constant 0 : i32
    return %c0_i32, %c0_i32_0 : i32, i32
  }
  func.func @transform_5(%arg0: i32, %arg1: i32) -> (i32, i32) {
    %c0_i32 = arith.constant 0 : i32
    %c0_i32_0 = arith.constant 0 : i32
    %c0_i32_1 = arith.constant 0 : i32
    return %c0_i32, %c0_i32_0 : i32, i32
  }
  func.func @transform_6(%arg0: i32, %arg1: i32) -> (i32, i32) {
    %c0_i32 = arith.constant 0 : i32
    %c0_i32_0 = arith.constant 0 : i32
    %c0_i32_1 = arith.constant 0 : i32
    return %c0_i32, %c0_i32_0 : i32, i32
  }
  func.func @transform_7(%arg0: i32, %arg1: i32) -> (i32, i32) {
    %c0_i32 = arith.constant 0 : i32
    %c0_i32_0 = arith.constant 0 : i32
    %c0_i32_1 = arith.constant 0 : i32
    return %c0_i32, %c0_i32_0 : i32, i32
  }
  func.func @transform_8(%arg0: i32, %arg1: i32) -> (i32, i32) {
    %c0_i32 = arith.constant 0 : i32
    %c0_i32_0 = arith.constant 0 : i32
    %c0_i32_1 = arith.constant 0 : i32
    return %c0_i32, %c0_i32_0 : i32, i32
  }
  func.func @transform_9(%arg0: i32, %arg1: i32) -> (i32, i32) {
    %c0_i32 = arith.constant 0 : i32
    %c0_i32_0 = arith.constant 0 : i32
    %c0_i32_1 = arith.constant 0 : i32
    return %c0_i32, %c0_i32_0 : i32, i32
  }
  func.func @transform_10(%arg0: i32, %arg1: i32) -> (i32, i32, i32, i32) {
    %c0_i32 = arith.constant 0 : i32
    %c0_i32_0 = arith.constant 0 : i32
    %c0_i32_1 = arith.constant 0 : i32
    return %arg0, %arg1, %c0_i32, %c0_i32_0 : i32, i32, i32, i32
  }
}

</mosaic_0001>

<llo_original>
// kernel: cxlayer_forward.2
$region0: #{cxlayer_forward.2}
  #allocation0 [shape = 'u32[]', space=smem, size = 0x4, offset = 0x4, fixed_abs, tag = 'smem constant byte address 0x4 - core index']
  #allocation1 [shape = 'u32[72,128]{1,0:T(1,128)}', space=vmem, size = 0x9000, scoped, tag = 'internal scratch']
  #allocation2 [shape = 'bf16[2,10,16,128]{3,2,1,0:T(8,128)(2,1)}', space=vmem, size = 0x14000, scoped, tag = 'scratch operand']
  #allocation3 [shape = 's32[2]{0}', space=sflag, size = 0x8, scoped, tag = 'scratch operand']
  #allocation4 [shape = 's32[]', space=sflag, size = 0x4, offset = 0, fixed_abs, tag = 'sflag constant byte address 0x0 - dummy sync flag']
  #allocation5 [shape = 's32[]', space=sflag, size = 0x4, offset = 0, fixed_abs, tag = 'sflag constant byte address 0x0 - dummy sync flag']
  #allocation6 [shape = 's32[]', space=sflag, size = 0x4, offset = 0, fixed_abs, tag = 'sflag constant byte address 0x0 - dummy sync flag']
  %s0 = inlined_call_operand.vmem [shape: bf16[2,16,16,128], index: 0, kind: input, shape index: {}]
  %s1 = inlined_call_operand.vmem [shape: bf16[49,128], index: 1, kind: input, shape index: {}]
  %s2 = inlined_call_operand.vmem [shape: f32[1,128], index: 2, kind: input, shape index: {}]
  %s3 = inlined_call_operand.vmem [shape: f32[1,128], index: 3, kind: input, shape index: {}]
  %s4 = inlined_call_operand.vmem [shape: f32[1,128], index: 4, kind: input, shape index: {}]
  %s5 = inlined_call_operand.vmem [shape: bf16[128,128], index: 5, kind: input, shape index: {}]
  %s6 = inlined_call_operand.vmem [shape: f32[1,128], index: 6, kind: input, shape index: {}]
  %s7 = inlined_call_operand.vmem [shape: bf16[128,128], index: 7, kind: input, shape index: {}]
  %s8 = inlined_call_operand.vmem [shape: f32[1,128], index: 8, kind: input, shape index: {}]
  %s9 = inlined_call_operand.vmem [shape: f32[1,128], index: 9, kind: input, shape index: {}]
  %s10 = inlined_call_operand.vmem [shape: bf16[2,16,16,128], index: 10, kind: output, shape index: {}]
  %s11 = sld [smem:[#allocation0]]
  $region150: #{cxlayer_forward.2} parent=0
    _
  %s13 = ssub.s32 1, %s11
  %s14 = scalar_select 0, %s13, %s11
  loop: start=0, step=1, limit=10
  $region2: #{cxlayer_forward.2} parent=0 // loop_pre_header
    _
  $region3: #{cxlayer_forward.2} parent=0 // loop_header
    %s16 = sphi 0, %s20
    %p17 = scmp.ge.s32.totalorder %s16, 10
    %s23 = sphi 0, %s35
    %s24 = sphi 0, %s31
    %s25 = sphi 0, %s23
    %s26 = sphi 0, %s24
    %s27 = sphi 0, %s25
    %s28 = sphi 0, %s26
    %s36 = sphi 0, %s36
    %s38 = sphi 0, %s36
    %s39 = sphi 0, %s38
    %s53 = sphi 0, %s39
    %s57 = sphi 0, %s57
    %s59 = sphi 0, %s57
    %s60 = sphi 0, %s59
    %s74 = sphi 0, %s60
    %s78 = sphi 0, %s78
    %s80 = sphi 0, %s78
    %s81 = sphi 0, %s80
    %s95 = sphi 0, %s81
    %s99 = sphi 0, %s99
    %s101 = sphi 0, %s99
    %s102 = sphi 0, %s101
    %s116 = sphi 0, %s102
    %s120 = sphi 0, %s120
    %s122 = sphi 0, %s120
    %s123 = sphi 0, %s122
    %s137 = sphi 0, %s123
    %s141 = sphi 0, %s141
    %s143 = sphi 0, %s141
    %s144 = sphi 0, %s143
    %s158 = sphi 0, %s144
    %s162 = sphi 0, %s162
    %s164 = sphi 0, %s162
    %s165 = sphi 0, %s164
    %s179 = sphi 0, %s165
    %s183 = sphi 0, %s183
    %s185 = sphi 0, %s183
    %s186 = sphi 0, %s185
    %s200 = sphi 0, %s186
    %s204 = sphi 0, %s204
    %s206 = sphi 0, %s204
    %s207 = sphi 0, %s206
    %s221 = sphi 0, %s207
    %s229 = sphi 0, %s231
    %s232 = sphi 0, %s229
    %s233 = sphi 0, %s232
    %s249 = sphi 0, %s233
  $region4: #{cxlayer_forward.2} parent=0 // loop_header_branch
    %19 = sbr.rel (%p17) target = $region8
  $region5: #{cxlayer_forward.2} parent=0 // loop_body
    %s21 = ssub.s32 %s16, 1
    %s22 = ssub.s32 %s16, 2
    %s29 = sadd.s32 1, %s24
    %p30 = scmp.ge.s32.totalorder %s29, 4
    %s31 = scalar_select %p30, 0, %s29
    %s32 = sadd.s32 1, %s23
    %s33 = scalar_select %p30, %s32, %s23
    %p34 = scmp.ge.s32.totalorder %s33, 2
    %s35 = scalar_select %p34, 0, %s33
    %s37 = sadd.s32 %s36, 1
    %p40 = scmp.eq.s32.totalorder %s16, 7
    %p41 = scmp.ne.s32.totalorder %s36, %s38
    %p42 = scmp.eq.s32.totalorder %s16, 0
    %p43 = por %p41, %p42
    %p44 = scmp.ne.s32.totalorder %s36, %s38
    %p45 = scmp.eq.s32.totalorder %s21, 7
    %p46 = por %p44, %p45
    %p47 = scmp.ne.s32.totalorder %s38, %s39
    %p48 = scmp.eq.s32.totalorder %s21, 0
    %p49 = por %p47, %p48
    %p50 = scmp.ne.s32.totalorder %s38, %s39
    %p51 = scmp.eq.s32.totalorder %s22, 7
    %p52 = por %p50, %p51
    %p54 = scmp.ne.s32.totalorder %s39, %s53
    %p55 = scmp.eq.s32.totalorder %s22, 0
    %p56 = por %p54, %p55
    %s58 = sadd.s32 %s57, 1
    %p61 = scmp.eq.s32.totalorder %s16, 7
    %p62 = scmp.ne.s32.totalorder %s57, %s59
    %p63 = scmp.eq.s32.totalorder %s16, 0
    %p64 = por %p62, %p63
    %p65 = scmp.ne.s32.totalorder %s57, %s59
    %p66 = scmp.eq.s32.totalorder %s21, 7
    %p67 = por %p65, %p66
    %p68 = scmp.ne.s32.totalorder %s59, %s60
    %p69 = scmp.eq.s32.totalorder %s21, 0
    %p70 = por %p68, %p69
    %p71 = scmp.ne.s32.totalorder %s59, %s60
    %p72 = scmp.eq.s32.totalorder %s22, 7
    %p73 = por %p71, %p72
    %p75 = scmp.ne.s32.totalorder %s60, %s74
    %p76 = scmp.eq.s32.totalorder %s22, 0
    %p77 = por %p75, %p76
    %s79 = sadd.s32 %s78, 1
    %p82 = scmp.eq.s32.totalorder %s16, 7
    %p83 = scmp.ne.s32.totalorder %s78, %s80
    %p84 = scmp.eq.s32.totalorder %s16, 0
    %p85 = por %p83, %p84
    %p86 = scmp.ne.s32.totalorder %s78, %s80
    %p87 = scmp.eq.s32.totalorder %s21, 7
    %p88 = por %p86, %p87
    %p89 = scmp.ne.s32.totalorder %s80, %s81
    %p90 = scmp.eq.s32.totalorder %s21, 0
    %p91 = por %p89, %p90
    %p92 = scmp.ne.s32.totalorder %s80, %s81
    %p93 = scmp.eq.s32.totalorder %s22, 7
    %p94 = por %p92, %p93
    %p96 = scmp.ne.s32.totalorder %s81, %s95
    %p97 = scmp.eq.s32.totalorder %s22, 0
    %p98 = por %p96, %p97
    %s100 = sadd.s32 %s99, 1
    %p103 = scmp.eq.s32.totalorder %s16, 7
    %p104 = scmp.ne.s32.totalorder %s99, %s101
    %p105 = scmp.eq.s32.totalorder %s16, 0
    %p106 = por %p104, %p105
    %p107 = scmp.ne.s32.totalorder %s99, %s101
    %p108 = scmp.eq.s32.totalorder %s21, 7
    %p109 = por %p107, %p108
    %p110 = scmp.ne.s32.totalorder %s101, %s102
    %p111 = scmp.eq.s32.totalorder %s21, 0
    %p112 = por %p110, %p111
    %p113 = scmp.ne.s32.totalorder %s101, %s102
    %p114 = scmp.eq.s32.totalorder %s22, 7
    %p115 = por %p113, %p114
    %p117 = scmp.ne.s32.totalorder %s102, %s116
    %p118 = scmp.eq.s32.totalorder %s22, 0
    %p119 = por %p117, %p118
    %s121 = sadd.s32 %s120, 1
    %p124 = scmp.eq.s32.totalorder %s16, 7
    %p125 = scmp.ne.s32.totalorder %s120, %s122
    %p126 = scmp.eq.s32.totalorder %s16, 0
    %p127 = por %p125, %p126
    %p128 = scmp.ne.s32.totalorder %s120, %s122
    %p129 = scmp.eq.s32.totalorder %s21, 7
    %p130 = por %p128, %p129
    %p131 = scmp.ne.s32.totalorder %s122, %s123
    %p132 = scmp.eq.s32.totalorder %s21, 0
    %p133 = por %p131, %p132
    %p134 = scmp.ne.s32.totalorder %s122, %s123
    %p135 = scmp.eq.s32.totalorder %s22, 7
    %p136 = por %p134, %p135
    %p138 = scmp.ne.s32.totalorder %s123, %s137
    %p139 = scmp.eq.s32.totalorder %s22, 0
    %p140 = por %p138, %p139
    %s142 = sadd.s32 %s141, 1
    %p145 = scmp.eq.s32.totalorder %s16, 7
    %p146 = scmp.ne.s32.totalorder %s141, %s143
    %p147 = scmp.eq.s32.totalorder %s16, 0
    %p148 = por %p146, %p147
    %p149 = scmp.ne.s32.totalorder %s141, %s143
    %p150 = scmp.eq.s32.totalorder %s21, 7
    %p151 = por %p149, %p150
    %p152 = scmp.ne.s32.totalorder %s143, %s144
    %p153 = scmp.eq.s32.totalorder %s21, 0
    %p154 = por %p152, %p153
    %p155 = scmp.ne.s32.totalorder %s143, %s144
    %p156 = scmp.eq.s32.totalorder %s22, 7
    %p157 = por %p155, %p156
    %p159 = scmp.ne.s32.totalorder %s144, %s158
    %p160 = scmp.eq.s32.totalorder %s22, 0
    %p161 = por %p159, %p160
    %s163 = sadd.s32 %s162, 1
    %p166 = scmp.eq.s32.totalorder %s16, 7
    %p167 = scmp.ne.s32.totalorder %s162, %s164
    %p168 = scmp.eq.s32.totalorder %s16, 0
    %p169 = por %p167, %p168
    %p170 = scmp.ne.s32.totalorder %s162, %s164
    %p171 = scmp.eq.s32.totalorder %s21, 7
    %p172 = por %p170, %p171
    %p173 = scmp.ne.s32.totalorder %s164, %s165
    %p174 = scmp.eq.s32.totalorder %s21, 0
    %p175 = por %p173, %p174
    %p176 = scmp.ne.s32.totalorder %s164, %s165
    %p177 = scmp.eq.s32.totalorder %s22, 7
    %p178 = por %p176, %p177
    %p180 = scmp.ne.s32.totalorder %s165, %s179
    %p181 = scmp.eq.s32.totalorder %s22, 0
    %p182 = por %p180, %p181
    %s184 = sadd.s32 %s183, 1
    %p187 = scmp.eq.s32.totalorder %s16, 7
    %p188 = scmp.ne.s32.totalorder %s183, %s185
    %p189 = scmp.eq.s32.totalorder %s16, 0
    %p190 = por %p188, %p189
    %p191 = scmp.ne.s32.totalorder %s183, %s185
    %p192 = scmp.eq.s32.totalorder %s21, 7
    %p193 = por %p191, %p192
    %p194 = scmp.ne.s32.totalorder %s185, %s186
    %p195 = scmp.eq.s32.totalorder %s21, 0
    %p196 = por %p194, %p195
    %p197 = scmp.ne.s32.totalorder %s185, %s186
    %p198 = scmp.eq.s32.totalorder %s22, 7
    %p199 = por %p197, %p198
    %p201 = scmp.ne.s32.totalorder %s186, %s200
    %p202 = scmp.eq.s32.totalorder %s22, 0
    %p203 = por %p201, %p202
    %s205 = sadd.s32 %s204, 1
    %p208 = scmp.eq.s32.totalorder %s16, 7
    %p209 = scmp.ne.s32.totalorder %s204, %s206
    %p210 = scmp.eq.s32.totalorder %s16, 0
    %p211 = por %p209, %p210
    %p212 = scmp.ne.s32.totalorder %s204, %s206
    %p213 = scmp.eq.s32.totalorder %s21, 7
    %p214 = por %p212, %p213
    %p215 = scmp.ne.s32.totalorder %s206, %s207
    %p216 = scmp.eq.s32.totalorder %s21, 0
    %p217 = por %p215, %p216
    %p218 = scmp.ne.s32.totalorder %s206, %s207
    %p219 = scmp.eq.s32.totalorder %s22, 7
    %p220 = por %p218, %p219
    %p222 = scmp.ne.s32.totalorder %s207, %s221
    %p223 = scmp.eq.s32.totalorder %s22, 0
    %p224 = por %p222, %p223
    %s225 = ssub.s32 %s23, %s35
    %s226 = ssub.s32 %s24, %s31
    %s227 = sor.u32 %s225, %s226
    %p228 = scmp.eq.s32.totalorder %s227, 0
    %s230 = sadd.s32 %s229, 1
    %s231 = scalar_select %p228, %s229, %s230
    %p234 = pneg %p228
    %p235 = scmp.eq.s32.totalorder %s16, 7
    %p236 = por %p234, %p235
    %p237 = scmp.ne.s32.totalorder %s229, %s232
    %p238 = scmp.eq.s32.totalorder %s16, 0
    %p239 = por %p237, %p238
    %p240 = scmp.ne.s32.totalorder %s229, %s232
    %p241 = scmp.eq.s32.totalorder %s21, 7
    %p242 = por %p240, %p241
    %p243 = scmp.ne.s32.totalorder %s232, %s233
    %p244 = scmp.eq.s32.totalorder %s21, 0
    %p245 = por %p243, %p244
    %p246 = scmp.ne.s32.totalorder %s232, %s233
    %p247 = scmp.eq.s32.totalorder %s22, 7
    %p248 = por %p246, %p247
    %p250 = scmp.ne.s32.totalorder %s233, %s249
    %p251 = scmp.eq.s32.totalorder %s22, 0
    %p252 = por %p250, %p251
    %p253 = scmp.le.s32.totalorder 1, %s16
    %p254 = scmp.lt.s32.totalorder %s16, 9
    %p255 = pnand %p253, %p254
    %p256 = pneg %p255
    // Predicated region
    $region9: #{cxlayer_forward.2} parent=5 // pred_check
      _
    $region10: #{cxlayer_forward.2} parent=5 // pred_check_branch
      %258 = sbr.rel (%p255) target = $region12
    $region11: #{cxlayer_forward.2} parent=5 // pred_region
      %s259 = ssub.s32 %s16, 1
      // Predicated region
      $region13: #{cxlayer_forward.2} parent=11 // pred_check
        %p260 = pneg %p49
      $region14: #{cxlayer_forward.2} parent=11 // pred_check_branch
        %262 = sbr.rel (%p260) target = $region16
      $region15: #{cxlayer_forward.2} parent=11 // pred_region
        _
      $region16: #{cxlayer_forward.2} parent=11 // pred_fallthru
        _
      // Predicated region
      $region17: #{cxlayer_forward.2} parent=11 // pred_check
        %p263 = pneg %p70
      $region18: #{cxlayer_forward.2} parent=11 // pred_check_branch
        %265 = sbr.rel (%p263) target = $region20
      $region19: #{cxlayer_forward.2} parent=11 // pred_region
        _
      $region20: #{cxlayer_forward.2} parent=11 // pred_fallthru
        _
      // Predicated region
      $region21: #{cxlayer_forward.2} parent=11 // pred_check
        %p266 = pneg %p91
      $region22: #{cxlayer_forward.2} parent=11 // pred_check_branch
        %268 = sbr.rel (%p266) target = $region24
      $region23: #{cxlayer_forward.2} parent=11 // pred_region
        _
      $region24: #{cxlayer_forward.2} parent=11 // pred_fallthru
        _
      // Predicated region
      $region25: #{cxlayer_forward.2} parent=11 // pred_check
        %p269 = pneg %p112
      $region26: #{cxlayer_forward.2} parent=11 // pred_check_branch
        %271 = sbr.rel (%p269) target = $region28
      $region27: #{cxlayer_forward.2} parent=11 // pred_region
        _
      $region28: #{cxlayer_forward.2} parent=11 // pred_fallthru
        _
      // Predicated region
      $region29: #{cxlayer_forward.2} parent=11 // pred_check
        %p272 = pneg %p133
      $region30: #{cxlayer_forward.2} parent=11 // pred_check_branch
        %274 = sbr.rel (%p272) target = $region32
      $region31: #{cxlayer_forward.2} parent=11 // pred_region
        _
      $region32: #{cxlayer_forward.2} parent=11 // pred_fallthru
        _
      // Predicated region
      $region33: #{cxlayer_forward.2} parent=11 // pred_check
        %p275 = pneg %p154
      $region34: #{cxlayer_forward.2} parent=11 // pred_check_branch
        %277 = sbr.rel (%p275) target = $region36
      $region35: #{cxlayer_forward.2} parent=11 // pred_region
        _
      $region36: #{cxlayer_forward.2} parent=11 // pred_fallthru
        _
      // Predicated region
      $region37: #{cxlayer_forward.2} parent=11 // pred_check
        %p278 = pneg %p175
      $region38: #{cxlayer_forward.2} parent=11 // pred_check_branch
        %280 = sbr.rel (%p278) target = $region40
      $region39: #{cxlayer_forward.2} parent=11 // pred_region
        _
      $region40: #{cxlayer_forward.2} parent=11 // pred_fallthru
        _
      // Predicated region
      $region41: #{cxlayer_forward.2} parent=11 // pred_check
        %p281 = pneg %p196
      $region42: #{cxlayer_forward.2} parent=11 // pred_check_branch
        %283 = sbr.rel (%p281) target = $region44
      $region43: #{cxlayer_forward.2} parent=11 // pred_region
        _
      $region44: #{cxlayer_forward.2} parent=11 // pred_fallthru
        _
      // Predicated region
      $region45: #{cxlayer_forward.2} parent=11 // pred_check
        %p284 = pneg %p217
      $region46: #{cxlayer_forward.2} parent=11 // pred_check_branch
        %286 = sbr.rel (%p284) target = $region48
      $region47: #{cxlayer_forward.2} parent=11 // pred_region
        _
      $region48: #{cxlayer_forward.2} parent=11 // pred_fallthru
        _
    $region12: #{cxlayer_forward.2} parent=5 // pred_fallthru
      _
    %p287 = scmp.lt.s32.totalorder %s16, 8
    // Predicated region
    $region49: #{cxlayer_forward.2} parent=5 // pred_check
      %p288 = pneg %p287
    $region50: #{cxlayer_forward.2} parent=5 // pred_check_branch
      %290 = sbr.rel (%p288) target = $region52
    $region51: #{cxlayer_forward.2} parent=5 // pred_region
      _
    $region52: #{cxlayer_forward.2} parent=5 // pred_fallthru
      _
    %p291 = scmp.le.s32.totalorder 1, %s16
    %p292 = scmp.lt.s32.totalorder %s16, 9
    %p293 = pnand %p291, %p292
    %p294 = pneg %p293
    // Predicated region
    $region53: #{cxlayer_forward.2} parent=5 // pred_check
      _
    $region54: #{cxlayer_forward.2} parent=5 // pred_check_branch
      %296 = sbr.rel (%p293) target = $region56
    $region55: #{cxlayer_forward.2} parent=5 // pred_region
      %s297 = ssub.s32 %s16, 1
      %p298 = pneg %p49
      %p299 = pneg %p46
      %p300 = pneg %p70
      %p301 = pneg %p67
      %p302 = pneg %p91
      %p303 = pneg %p88
      %p304 = pneg %p112
      %p305 = pneg %p109
      %p306 = pneg %p133
      %p307 = pneg %p130
      %p308 = pneg %p154
      %p309 = pneg %p151
      %p310 = pneg %p175
      %p311 = pneg %p172
      %p312 = pneg %p196
      %p313 = pneg %p193
      %p314 = pneg %p217
      %p315 = pneg %p214
      %p316 = pneg %p245
      %p317 = pneg %p242
      %s318 = smul.u32 4, %s26
      %p319 = scmp.lt.s32.totalorder %s25, 1
      %s320 = scalar_select %p319, %s25, 1
      %p321 = scmp.lt.s32.totalorder %s318, 15
      %s322 = scalar_select %p321, %s318, 15
      %s323 = smul.addr %s322, 2
      %s324 = smul.addr %s320, 32
      %s325 = sadd.s32 %s323, %s324
      %s326 = smul.addr %s325, 4
      %s327 = scalar_lea.vmem %s10, %s326
      %s328 = smul.u32 4, %s26
      %p329 = scmp.lt.s32.totalorder %s25, 1
      %s330 = scalar_select %p329, %s25, 1
      %p331 = scmp.lt.s32.totalorder %s328, 15
      %s332 = scalar_select %p331, %s328, 15
      %s333 = smul.addr %s332, 2
      %s334 = smul.addr %s330, 32
      %s335 = sadd.s32 %s333, %s334
      %s336 = smul.addr %s335, 4
      %s337 = scalar_lea.vmem %s10, %s336
      %s338 = smul.u32 4, %s26
      %s340 = sand.u32 %s26, 1
      %s341 = ssub.s32 1, %s340
      %p342 = scmp.eq.s32.totalorder %s26, 0
      // Predicated region
      $region57: #{cxlayer_forward.2} parent=55 // pred_check
        %p343 = pneg %p342
      $region58: #{cxlayer_forward.2} parent=55 // pred_check_branch
        %345 = sbr.rel (%p343) target = $region60
      $region59: #{cxlayer_forward.2} parent=55 // pred_region
        %s346 = smul.u32 %s25, 32
        %s347 = smul.addr %s346, 4
        %s348 = scalar_lea.vmem %s0, %s347
        %s349 = smul.u32 %s340, 20
        %s350 = sadd.s32 6, %s349
        %s351 = smul.addr %s350, 4
        %s352 = scalar_lea.vmem [#allocation2], %s351
        %s353 = scalar_lea.sflag [#allocation3], %s340
        // Predicated region
        $region61: #{cxlayer_forward.2} parent=59 // pred_check
          _
        $region62: #{cxlayer_forward.2} parent=59 // pred_check_branch
          %355 = sbr.rel (0) target = $region64
        $region63: #{cxlayer_forward.2} parent=59 // pred_region
          loop: start=0, step=1, limit=1
          $region65: #{cxlayer_forward.2} parent=63 // loop_pre_header
            _
          $region66: #{cxlayer_forward.2} parent=63 // loop_header
            %s357 = sphi 0, %s361
            %p358 = scmp.ge.s32.totalorder %s357, 1
            %s362 = sphi %s348, %s348
            %s363 = sphi %s352, %s352
          $region67: #{cxlayer_forward.2} parent=63 // loop_header_branch
            %360 = sbr.rel (%p358) target = $region71
          $region68: #{cxlayer_forward.2} parent=63 // loop_body
            %v364 = vld [vmem:[%s362] sm:$0xff]
            %365 = vst [vmem:[%s363] sm:$0xff] %v364
            %v366 = vld [vmem:[%s362 + $0x8] sm:$0xff]
            %367 = vst [vmem:[%s363 + $0x8] sm:$0xff] %v366
            %v368 = vld [vmem:[%s362 + $0x10] sm:$0xff]
            %369 = vst [vmem:[%s363 + $0x10] sm:$0xff] %v368
            %v370 = vld [vmem:[%s362 + $0x18] sm:$0xff]
            %371 = vst [vmem:[%s363 + $0x18] sm:$0xff] %v370
            %v372 = vld [vmem:[%s362 + $0x20] sm:$0xff]
            %373 = vst [vmem:[%s363 + $0x20] sm:$0xff] %v372
            %v374 = vld [vmem:[%s362 + $0x28] sm:$0xff]
            %375 = vst [vmem:[%s363 + $0x28] sm:$0xff] %v374
            %v376 = vld [vmem:[%s362 + $0x30] sm:$0xff]
            %377 = vst [vmem:[%s363 + $0x30] sm:$0xff] %v376
          $region69: #{cxlayer_forward.2} parent=63 // loop_footer
            %s361 = sadd.s32 1, %s357
          $region70: #{cxlayer_forward.2} parent=63 // loop_footer_branch
            %356 = sbr.rel target = $region66
          $region71: #{cxlayer_forward.2} parent=63 // loop_exit
            _
        $region64: #{cxlayer_forward.2} parent=59 // pred_fallthru
          _
        // Predicated region
        $region72: #{cxlayer_forward.2} parent=59 // pred_check
          _
        $region73: #{cxlayer_forward.2} parent=59 // pred_check_branch
          %379 = sbr.rel target = $region75
        $region74: #{cxlayer_forward.2} parent=59 // pred_region
          _
        $region75: #{cxlayer_forward.2} parent=59 // pred_fallthru
          _
        // Predicated region
        $region76: #{cxlayer_forward.2} parent=59 // pred_check
          _
        $region77: #{cxlayer_forward.2} parent=59 // pred_check_branch
          %382 = sbr.rel (0) target = $region79
        $region78: #{cxlayer_forward.2} parent=59 // pred_region
          %383 = vsyncadd %s353, 896
        $region79: #{cxlayer_forward.2} parent=59 // pred_fallthru
          _
      $region60: #{cxlayer_forward.2} parent=55 // pred_fallthru
        _
      %s384 = sadd.s32 %s26, 1
      %p385 = scmp.lt.s32.totalorder %s384, 3
      // Predicated region
      $region80: #{cxlayer_forward.2} parent=55 // pred_check
        %p386 = pneg %p385
      $region81: #{cxlayer_forward.2} parent=55 // pred_check_branch
        %388 = sbr.rel (%p386) target = $region83
      $region82: #{cxlayer_forward.2} parent=55 // pred_region
        %s389 = smul.u32 %s384, 4
        %s390 = ssub.s32 %s389, 3
        %s391 = smul.u32 %s390, 2
        %s392 = smul.u32 %s25, 32
        %s393 = sadd.s32 %s391, %s392
        %s394 = smul.addr %s393, 4
        %s395 = scalar_lea.vmem %s0, %s394
        %s396 = smul.u32 %s341, 20
        %s397 = smul.addr %s396, 4
        %s398 = scalar_lea.vmem [#allocation2], %s397
        %s399 = scalar_lea.sflag [#allocation3], %s341
        // Predicated region
        $region84: #{cxlayer_forward.2} parent=82 // pred_check
          _
        $region85: #{cxlayer_forward.2} parent=82 // pred_check_branch
          %401 = sbr.rel (0) target = $region87
        $region86: #{cxlayer_forward.2} parent=82 // pred_region
          loop: start=0, step=1, limit=1
          $region88: #{cxlayer_forward.2} parent=86 // loop_pre_header
            _
          $region89: #{cxlayer_forward.2} parent=86 // loop_header
            %s403 = sphi 0, %s407
            %p404 = scmp.ge.s32.totalorder %s403, 1
            %s408 = sphi %s395, %s395
            %s409 = sphi %s398, %s398
          $region90: #{cxlayer_forward.2} parent=86 // loop_header_branch
            %406 = sbr.rel (%p404) target = $region94
          $region91: #{cxlayer_forward.2} parent=86 // loop_body
            %v410 = vld [vmem:[%s408] sm:$0xff]
            %411 = vst [vmem:[%s409] sm:$0xff] %v410
            %v412 = vld [vmem:[%s408 + $0x8] sm:$0xff]
            %413 = vst [vmem:[%s409 + $0x8] sm:$0xff] %v412
            %v414 = vld [vmem:[%s408 + $0x10] sm:$0xff]
            %415 = vst [vmem:[%s409 + $0x10] sm:$0xff] %v414
            %v416 = vld [vmem:[%s408 + $0x18] sm:$0xff]
            %417 = vst [vmem:[%s409 + $0x18] sm:$0xff] %v416
            %v418 = vld [vmem:[%s408 + $0x20] sm:$0xff]
            %419 = vst [vmem:[%s409 + $0x20] sm:$0xff] %v418
            %v420 = vld [vmem:[%s408 + $0x28] sm:$0xff]
            %421 = vst [vmem:[%s409 + $0x28] sm:$0xff] %v420
            %v422 = vld [vmem:[%s408 + $0x30] sm:$0xff]
            %423 = vst [vmem:[%s409 + $0x30] sm:$0xff] %v422
            %v424 = vld [vmem:[%s408 + $0x38] sm:$0xff]
            %425 = vst [vmem:[%s409 + $0x38] sm:$0xff] %v424
            %v426 = vld [vmem:[%s408 + $0x40] sm:$0xff]
            %427 = vst [vmem:[%s409 + $0x40] sm:$0xff] %v426
            %v428 = vld [vmem:[%s408 + $0x48] sm:$0xff]
            %429 = vst [vmem:[%s409 + $0x48] sm:$0xff] %v428
          $region92: #{cxlayer_forward.2} parent=86 // loop_footer
            %s407 = sadd.s32 1, %s403
          $region93: #{cxlayer_forward.2} parent=86 // loop_footer_branch
            %402 = sbr.rel target = $region89
          $region94: #{cxlayer_forward.2} parent=86 // loop_exit
            _
        $region87: #{cxlayer_forward.2} parent=82 // pred_fallthru
          _
        // Predicated region
        $region95: #{cxlayer_forward.2} parent=82 // pred_check
          _
        $region96: #{cxlayer_forward.2} parent=82 // pred_check_branch
          %431 = sbr.rel target = $region98
        $region97: #{cxlayer_forward.2} parent=82 // pred_region
          _
        $region98: #{cxlayer_forward.2} parent=82 // pred_fallthru
          _
        // Predicated region
        $region99: #{cxlayer_forward.2} parent=82 // pred_check
          _
        $region100: #{cxlayer_forward.2} parent=82 // pred_check_branch
          %434 = sbr.rel (0) target = $region102
        $region101: #{cxlayer_forward.2} parent=82 // pred_region
          %435 = vsyncadd %s399, 1280
        $region102: #{cxlayer_forward.2} parent=82 // pred_fallthru
          _
      $region83: #{cxlayer_forward.2} parent=55 // pred_fallthru
        _
      %p436 = scmp.eq.s32.totalorder %s384, 3
      // Predicated region
      $region103: #{cxlayer_forward.2} parent=55 // pred_check
        %p437 = pneg %p436
      $region104: #{cxlayer_forward.2} parent=55 // pred_check_branch
        %439 = sbr.rel (%p437) target = $region106
      $region105: #{cxlayer_forward.2} parent=55 // pred_region
        %s440 = smul.u32 %s384, 4
        %s441 = ssub.s32 %s440, 3
        %s442 = smul.u32 %s441, 2
        %s443 = smul.u32 %s25, 32
        %s444 = sadd.s32 %s442, %s443
        %s445 = smul.addr %s444, 4
        %s446 = scalar_lea.vmem %s0, %s445
        %s447 = smul.u32 %s341, 20
        %s448 = smul.addr %s447, 4
        %s449 = scalar_lea.vmem [#allocation2], %s448
        %s450 = scalar_lea.sflag [#allocation3], %s341
        // Predicated region
        $region107: #{cxlayer_forward.2} parent=105 // pred_check
          _
        $region108: #{cxlayer_forward.2} parent=105 // pred_check_branch
          %452 = sbr.rel (0) target = $region110
        $region109: #{cxlayer_forward.2} parent=105 // pred_region
          loop: start=0, step=1, limit=1
          $region111: #{cxlayer_forward.2} parent=109 // loop_pre_header
            _
          $region112: #{cxlayer_forward.2} parent=109 // loop_header
            %s454 = sphi 0, %s458
            %p455 = scmp.ge.s32.totalorder %s454, 1
            %s459 = sphi %s446, %s446
            %s460 = sphi %s449, %s449
          $region113: #{cxlayer_forward.2} parent=109 // loop_header_branch
            %457 = sbr.rel (%p455) target = $region117
          $region114: #{cxlayer_forward.2} parent=109 // loop_body
            %v461 = vld [vmem:[%s459] sm:$0xff]
            %462 = vst [vmem:[%s460] sm:$0xff] %v461
            %v463 = vld [vmem:[%s459 + $0x8] sm:$0xff]
            %464 = vst [vmem:[%s460 + $0x8] sm:$0xff] %v463
            %v465 = vld [vmem:[%s459 + $0x10] sm:$0xff]
            %466 = vst [vmem:[%s460 + $0x10] sm:$0xff] %v465
            %v467 = vld [vmem:[%s459 + $0x18] sm:$0xff]
            %468 = vst [vmem:[%s460 + $0x18] sm:$0xff] %v467
            %v469 = vld [vmem:[%s459 + $0x20] sm:$0xff]
            %470 = vst [vmem:[%s460 + $0x20] sm:$0xff] %v469
            %v471 = vld [vmem:[%s459 + $0x28] sm:$0xff]
            %472 = vst [vmem:[%s460 + $0x28] sm:$0xff] %v471
            %v473 = vld [vmem:[%s459 + $0x30] sm:$0xff]
            %474 = vst [vmem:[%s460 + $0x30] sm:$0xff] %v473
          $region115: #{cxlayer_forward.2} parent=109 // loop_footer
            %s458 = sadd.s32 1, %s454
          $region116: #{cxlayer_forward.2} parent=109 // loop_footer_branch
            %453 = sbr.rel target = $region112
          $region117: #{cxlayer_forward.2} parent=109 // loop_exit
            _
        $region110: #{cxlayer_forward.2} parent=105 // pred_fallthru
          _
        // Predicated region
        $region118: #{cxlayer_forward.2} parent=105 // pred_check
          _
        $region119: #{cxlayer_forward.2} parent=105 // pred_check_branch
          %476 = sbr.rel target = $region121
        $region120: #{cxlayer_forward.2} parent=105 // pred_region
          _
        $region121: #{cxlayer_forward.2} parent=105 // pred_fallthru
          _
        // Predicated region
        $region122: #{cxlayer_forward.2} parent=105 // pred_check
          _
        $region123: #{cxlayer_forward.2} parent=105 // pred_check_branch
          %479 = sbr.rel (0) target = $region125
        $region124: #{cxlayer_forward.2} parent=105 // pred_region
          %480 = vsyncadd %s450, 896
        $region125: #{cxlayer_forward.2} parent=105 // pred_fallthru
          _
      $region106: #{cxlayer_forward.2} parent=55 // pred_fallthru
        _
      // Predicated region
      $region126: #{cxlayer_forward.2} parent=55 // pred_check
        %p481 = pneg %p342
      $region127: #{cxlayer_forward.2} parent=55 // pred_check_branch
        %483 = sbr.rel (%p481) target = $region129
      $region128: #{cxlayer_forward.2} parent=55 // pred_region
        %s484 = scalar_lea.sflag [#allocation3], %s340
        %s485 = smul.u32 4, 7
        %s486 = smul.u32 %s485, 2
        %s487 = smul.u32 %s486, 1
        %s488 = sshll.u32 %s487, 4
        %489 = dma.done %s484, %s488
      $region129: #{cxlayer_forward.2} parent=55 // pred_fallthru
        _
      %p490 = scmp.gt.s32.totalorder %s26, 0
      %p491 = scmp.lt.s32.totalorder %s26, 3
      %p492 = pnand %p490, %p491
      %p493 = pneg %p492
      // Predicated region
      $region130: #{cxlayer_forward.2} parent=55 // pred_check
        _
      $region131: #{cxlayer_forward.2} parent=55 // pred_check_branch
        %495 = sbr.rel (%p492) target = $region133
      $region132: #{cxlayer_forward.2} parent=55 // pred_region
        %s496 = scalar_lea.sflag [#allocation3], %s340
        %s497 = smul.u32 4, 10
        %s498 = smul.u32 %s497, 2
        %s499 = smul.u32 %s498, 1
        %s500 = sshll.u32 %s499, 4
        %501 = dma.done %s496, %s500
      $region133: #{cxlayer_forward.2} parent=55 // pred_fallthru
        _
      %p502 = scmp.eq.s32.totalorder %s26, 3
      // Predicated region
      $region134: #{cxlayer_forward.2} parent=55 // pred_check
        %p503 = pneg %p502
      $region135: #{cxlayer_forward.2} parent=55 // pred_check_branch
        %505 = sbr.rel (%p503) target = $region137
      $region136: #{cxlayer_forward.2} parent=55 // pred_region
        %s506 = scalar_lea.sflag [#allocation3], %s340
        %s507 = smul.u32 4, 7
        %s508 = smul.u32 %s507, 2
        %s509 = smul.u32 %s508, 1
        %s510 = sshll.u32 %s509, 4
        %511 = dma.done %s506, %s510
      $region137: #{cxlayer_forward.2} parent=55 // pred_fallthru
        _
      %s512 = smul.u32 %s340, 20
      %s513 = smul.addr %s512, 4
      %s514 = scalar_lea.vmem [#allocation2], %s513
      %v515 = vld [vmem:[%s514] sm:$0xf]
      %v516 = vld [vmem:[%s514 + $0x4] sm:$0xf]
      %v517 = vld [vmem:[%s514 + $0x8] sm:$0xf]
      %v518 = vld [vmem:[%s514 + $0xc] sm:$0xf]
      %v519 = vld [vmem:[%s514 + $0x10] sm:$0xf]
      %v520 = vld [vmem:[%s514 + $0x14] sm:$0xf]
      %v521 = vld [vmem:[%s514 + $0x18] sm:$0xf]
      %v522 = vld [vmem:[%s514 + $0x1c] sm:$0xf]
      %v523 = vld [vmem:[%s514 + $0x20] sm:$0xf]
      %v524 = vld [vmem:[%s514 + $0x24] sm:$0xf]
      %v525 = vld [vmem:[%s514 + $0x28] sm:$0xf]
      %v526 = vld [vmem:[%s514 + $0x2c] sm:$0xf]
      %v527 = vld [vmem:[%s514 + $0x30] sm:$0xf]
      %v528 = vld [vmem:[%s514 + $0x34] sm:$0xf]
      %v529 = vld [vmem:[%s514 + $0x38] sm:$0xf]
      %v530 = vld [vmem:[%s514 + $0x3c] sm:$0xf]
      %v531 = vld [vmem:[%s514 + $0x40] sm:$0xf]
      %v532 = vld [vmem:[%s514 + $0x44] sm:$0xf]
      %v533 = vld [vmem:[%s514 + $0x48] sm:$0xf]
      %v534 = vld [vmem:[%s514 + $0x4c] sm:$0xf]
      %s535 = scalar_select %p342, 1, 0
      %v536 = vstv %s535
      %vm537 = vcmp.eq.s32.totalorder %v536, 1
      %s538 = scalar_select %p502, 1, 0
      %v539 = vstv %s538
      %vm540 = vcmp.eq.s32.totalorder %v539, 1
      %v541 = vsel %vm537, 1, 0
      %v542 = vsel %vm540, 1, 0
      %vm543 = vcmp.eq.s32.totalorder %v541, 1
      %vm544 = vcmp.eq.s32.totalorder %v542, 1
      %v545 = vsel %vm543, 0, %v515
      %v546 = vsel %vm543, 0, %v516
      %v547 = vsel %vm543, 0, %v517
      %v548 = vsel %vm543, 0, %v518
      %v549 = vsel %vm543, 0, %v519
      %v550 = vsel %vm543, 0, %v520
      %v551 = vsel 0, 0, %v521
      %v552 = vsel 0, 0, %v522
      %v553 = vsel 0, 0, %v523
      %v554 = vsel 0, 0, %v524
      %v555 = vsel 0, 0, %v525
      %v556 = vsel 0, 0, %v526
      %v557 = vsel 0, 0, %v527
      %v558 = vsel 0, 0, %v528
      %v559 = vsel %vm544, 0, %v529
      %v560 = vsel %vm544, 0, %v530
      %v561 = vsel %vm544, 0, %v531
      %v562 = vsel %vm544, 0, %v532
      %v563 = vsel %vm544, 0, %v533
      %v564 = vsel %vm544, 0, %v534
      %v585 = vunpack.c.l.b16 %v545
      %v586 = vunpack.c.l.b16 %v546
      %v587 = vunpack.c.l.b16 %v547
      %v588 = vunpack.c.l.b16 %v548
      %v589 = vunpack.c.l.b16 %v549
      %v590 = vunpack.c.l.b16 %v550
      %v591 = vunpack.c.l.b16 %v551
      %v592 = vunpack.c.l.b16 %v552
      %v593 = vunpack.c.l.b16 %v553
      %v594 = vunpack.c.l.b16 %v554
      %v595 = vunpack.c.l.b16 %v555
      %v596 = vunpack.c.l.b16 %v556
      %v597 = vunpack.c.l.b16 %v557
      %v598 = vunpack.c.l.b16 %v558
      %v599 = vunpack.c.l.b16 %v559
      %v600 = vunpack.c.l.b16 %v560
      %v601 = vunpack.c.l.b16 %v561
      %v602 = vunpack.c.l.b16 %v562
      %v603 = vunpack.c.l.b16 %v563
      %v604 = vunpack.c.l.b16 %v564
      %v605 = vpack.c.b16 %v586, %v585
      %v606 = vpack.c.b16 %v588, %v587
      %v607 = vpack.c.b16 %v590, %v589
      %v608 = vpack.c.b16 %v592, %v591
      %v609 = vpack.c.b16 %v594, %v593
      %v610 = vpack.c.b16 %v596, %v595
      %v611 = vpack.c.b16 %v598, %v597
      %v612 = vpack.c.b16 %v600, %v599
      %v613 = vpack.c.b16 %v602, %v601
      %v614 = vpack.c.b16 %v604, %v603
      %v616 = vshrl.u32 %v605, 16
      %v618 = vrot.slane %v616, 6
      %v619 = vshll.u32 %v605, 16
      %v621 = vrot.slane %v619, 7
      %v622 = vor.u32 %v618, %v621
      %v624 = vshrl.u32 %v606, 16
      %v626 = vrot.slane %v624, 6
      %v627 = vshll.u32 %v606, 16
      %v629 = vrot.slane %v627, 7
      %v630 = vor.u32 %v626, %v629
      %v632 = vshrl.u32 %v607, 16
      %v634 = vrot.slane %v632, 6
      %v635 = vshll.u32 %v607, 16
      %v637 = vrot.slane %v635, 7
      %v638 = vor.u32 %v634, %v637
      %v640 = vshrl.u32 %v608, 16
      %v642 = vrot.slane %v640, 6
      %v643 = vshll.u32 %v608, 16
      %v645 = vrot.slane %v643, 7
      %v646 = vor.u32 %v642, %v645
      %v648 = vshrl.u32 %v609, 16
      %v650 = vrot.slane %v648, 6
      %v651 = vshll.u32 %v609, 16
      %v653 = vrot.slane %v651, 7
      %v654 = vor.u32 %v650, %v653
      %v656 = vshrl.u32 %v610, 16
      %v658 = vrot.slane %v656, 6
      %v659 = vshll.u32 %v610, 16
      %v661 = vrot.slane %v659, 7
      %v662 = vor.u32 %v658, %v661
      %v664 = vshrl.u32 %v611, 16
      %v666 = vrot.slane %v664, 6
      %v667 = vshll.u32 %v611, 16
      %v669 = vrot.slane %v667, 7
      %v670 = vor.u32 %v666, %v669
      %v672 = vshrl.u32 %v612, 16
      %v674 = vrot.slane %v672, 6
      %v675 = vshll.u32 %v612, 16
      %v677 = vrot.slane %v675, 7
      %v678 = vor.u32 %v674, %v677
      %v680 = vshrl.u32 %v613, 16
      %v682 = vrot.slane %v680, 6
      %v683 = vshll.u32 %v613, 16
      %v685 = vrot.slane %v683, 7
      %v686 = vor.u32 %v682, %v685
      %v688 = vshrl.u32 %v614, 16
      %v690 = vrot.slane %v688, 6
      %v691 = vshll.u32 %v614, 16
      %v693 = vrot.slane %v691, 7
      %v694 = vor.u32 %v690, %v693
      %vm705 = vcmask 1041408
      %vm706 = vsmask.f32 1280
      %vm707 = vmand %vm705, %vm706
      %v708 = vsel %vm707, 0, %v622
      %v709 = vsel %vm707, 0, %v630
      %v710 = vsel %vm707, 0, %v638
      %v711 = vsel %vm707, 0, %v646
      %v712 = vsel %vm707, 0, %v654
      %v713 = vsel %vm707, 0, %v662
      %v714 = vsel %vm707, 0, %v670
      %v715 = vsel %vm707, 0, %v678
      %v716 = vsel %vm707, 0, %v686
      %v717 = vsel %vm707, 0, %v694
      %v718 = vsel %vm707, %v622, 0
      %v719 = vsel %vm707, %v630, 0
      %v720 = vsel %vm707, %v638, 0
      %v721 = vsel %vm707, %v646, 0
      %v722 = vsel %vm707, %v654, 0
      %v723 = vsel %vm707, %v662, 0
      %v724 = vsel %vm707, %v670, 0
      %v725 = vsel %vm707, %v678, 0
      %v726 = vsel %vm707, %v686, 0
      %v727 = vsel %vm707, %v694, 0
      %v728 = vld [vmem:[%s1] sm:$0xf]
      %v729 = vld [vmem:[%s1 + $0x4] sm:$0xf]
      %v730 = vld [vmem:[%s1 + $0x8] sm:$0xf]
      %v731 = vld [vmem:[%s1 + $0xc] sm:$0xf]
      %v732 = vld [vmem:[%s1 + $0x10] sm:$0xf]
      %v733 = vld [vmem:[%s1 + $0x14] sm:$0xf]
      %v734 = vld [vmem:[%s1 + $0x18] sm:$0x1]
      %v736 = vpack.i.b16 %v728, %v728
      %v738 = vperm.slane %v736, 0
      %v739 = vunpack.c.l.bf16 %v708
      %v740 = vunpack.c.h.bf16 %v708
      %v741 = vunpack.c.l.bf16 %v709
      %v742 = vunpack.c.h.bf16 %v709
      %v743 = vunpack.c.l.bf16 %v710
      %v744 = vunpack.c.h.bf16 %v710
      %v745 = vunpack.c.l.bf16 %v711
      %v746 = vunpack.c.h.bf16 %v711
      %v747 = vunpack.c.l.bf16 %v738
      %v748 = vmul.f32 %v739, %v747
      %v749 = vmul.f32 %v740, %v747
      %v750 = vmul.f32 %v741, %v747
      %v751 = vmul.f32 %v742, %v747
      %v752 = vmul.f32 %v743, %v747
      %v753 = vmul.f32 %v744, %v747
      %v754 = vmul.f32 %v745, %v747
      %v755 = vmul.f32 %v746, %v747
      %v756 = vpack.c.bf16 %v748, %v748
      %v757 = vpack.c.bf16 %v749, %v749
      %v758 = vpack.c.bf16 %v750, %v750
      %v759 = vpack.c.bf16 %v751, %v751
      %v760 = vpack.c.bf16 %v752, %v752
      %v761 = vpack.c.bf16 %v753, %v753
      %v762 = vpack.c.bf16 %v754, %v754
      %v763 = vpack.c.bf16 %v755, %v755
      %v764 = vunpack.c.l.bf16 %v756
      %v765 = vunpack.c.l.bf16 %v757
      %v766 = vunpack.c.l.bf16 %v758
      %v767 = vunpack.c.l.bf16 %v759
      %v768 = vunpack.c.l.bf16 %v760
      %v769 = vunpack.c.l.bf16 %v761
      %v770 = vunpack.c.l.bf16 %v762
      %v771 = vunpack.c.l.bf16 %v763
      %v772 = vadd.f32 %v764, 0.0
      %v773 = vadd.f32 %v765, 0.0
      %v774 = vadd.f32 %v766, 0.0
      %v775 = vadd.f32 %v767, 0.0
      %v776 = vadd.f32 %v768, 0.0
      %v777 = vadd.f32 %v769, 0.0
      %v778 = vadd.f32 %v770, 0.0
      %v779 = vadd.f32 %v771, 0.0
      %v780 = vshrl.u32 %v728, 16
      %v781 = vpack.i.b16 %v780, %v780
      %v783 = vperm.slane %v781, 3
      %v784 = vunpack.c.l.bf16 %v712
      %v785 = vunpack.c.h.bf16 %v712
      %v786 = vunpack.c.l.bf16 %v783
      %v787 = vmul.f32 %v741, %v786
      %v788 = vmul.f32 %v742, %v786
      %v789 = vmul.f32 %v743, %v786
      %v790 = vmul.f32 %v744, %v786
      %v791 = vmul.f32 %v745, %v786
      %v792 = vmul.f32 %v746, %v786
      %v793 = vmul.f32 %v784, %v786
      %v794 = vmul.f32 %v785, %v786
      %v795 = vpack.c.bf16 %v787, %v787
      %v796 = vpack.c.bf16 %v788, %v788
      %v797 = vpack.c.bf16 %v789, %v789
      %v798 = vpack.c.bf16 %v790, %v790
      %v799 = vpack.c.bf16 %v791, %v791
      %v800 = vpack.c.bf16 %v792, %v792
      %v801 = vpack.c.bf16 %v793, %v793
      %v802 = vpack.c.bf16 %v794, %v794
      %v803 = vunpack.c.l.bf16 %v795
      %v804 = vunpack.c.l.bf16 %v796
      %v805 = vunpack.c.l.bf16 %v797
      %v806 = vunpack.c.l.bf16 %v798
      %v807 = vunpack.c.l.bf16 %v799
      %v808 = vunpack.c.l.bf16 %v800
      %v809 = vunpack.c.l.bf16 %v801
      %v810 = vunpack.c.l.bf16 %v802
      %v811 = vadd.f32 %v772, %v803
      %v812 = vadd.f32 %v773, %v804
      %v813 = vadd.f32 %v774, %v805
      %v814 = vadd.f32 %v775, %v806
      %v815 = vadd.f32 %v776, %v807
      %v816 = vadd.f32 %v777, %v808
      %v817 = vadd.f32 %v778, %v809
      %v818 = vadd.f32 %v779, %v810
      %v820 = vpack.i.b16 %v729, %v729
      %v822 = vperm.slane %v820, 3
      %v823 = vunpack.c.l.bf16 %v713
      %v824 = vunpack.c.h.bf16 %v713
      %v825 = vunpack.c.l.bf16 %v822
      %v826 = vmul.f32 %v743, %v825
      %v827 = vmul.f32 %v744, %v825
      %v828 = vmul.f32 %v745, %v825
      %v829 = vmul.f32 %v746, %v825
      %v830 = vmul.f32 %v784, %v825
      %v831 = vmul.f32 %v785, %v825
      %v832 = vmul.f32 %v823, %v825
      %v833 = vmul.f32 %v824, %v825
      %v834 = vpack.c.bf16 %v826, %v826
      %v835 = vpack.c.bf16 %v827, %v827
      %v836 = vpack.c.bf16 %v828, %v828
      %v837 = vpack.c.bf16 %v829, %v829
      %v838 = vpack.c.bf16 %v830, %v830
      %v839 = vpack.c.bf16 %v831, %v831
      %v840 = vpack.c.bf16 %v832, %v832
      %v841 = vpack.c.bf16 %v833, %v833
      %v842 = vunpack.c.l.bf16 %v834
      %v843 = vunpack.c.l.bf16 %v835
      %v844 = vunpack.c.l.bf16 %v836
      %v845 = vunpack.c.l.bf16 %v837
      %v846 = vunpack.c.l.bf16 %v838
      %v847 = vunpack.c.l.bf16 %v839
      %v848 = vunpack.c.l.bf16 %v840
      %v849 = vunpack.c.l.bf16 %v841
      %v850 = vadd.f32 %v811, %v842
      %v851 = vadd.f32 %v812, %v843
      %v852 = vadd.f32 %v813, %v844
      %v853 = vadd.f32 %v814, %v845
      %v854 = vadd.f32 %v815, %v846
      %v855 = vadd.f32 %v816, %v847
      %v856 = vadd.f32 %v817, %v848
      %v857 = vadd.f32 %v818, %v849
      %v859 = vshrl.u32 %v730, 16
      %v860 = vpack.i.b16 %v859, %v859
      %v862 = vperm.slane %v860, 2
      %v863 = vunpack.c.l.bf16 %v714
      %v864 = vunpack.c.h.bf16 %v714
      %v865 = vunpack.c.l.bf16 %v862
      %v866 = vmul.f32 %v745, %v865
      %v867 = vmul.f32 %v746, %v865
      %v868 = vmul.f32 %v784, %v865
      %v869 = vmul.f32 %v785, %v865
      %v870 = vmul.f32 %v823, %v865
      %v871 = vmul.f32 %v824, %v865
      %v872 = vmul.f32 %v863, %v865
      %v873 = vmul.f32 %v864, %v865
      %v874 = vpack.c.bf16 %v866, %v866
      %v875 = vpack.c.bf16 %v867, %v867
      %v876 = vpack.c.bf16 %v868, %v868
      %v877 = vpack.c.bf16 %v869, %v869
      %v878 = vpack.c.bf16 %v870, %v870
      %v879 = vpack.c.bf16 %v871, %v871
      %v880 = vpack.c.bf16 %v872, %v872
      %v881 = vpack.c.bf16 %v873, %v873
      %v882 = vunpack.c.l.bf16 %v874
      %v883 = vunpack.c.l.bf16 %v875
      %v884 = vunpack.c.l.bf16 %v876
      %v885 = vunpack.c.l.bf16 %v877
      %v886 = vunpack.c.l.bf16 %v878
      %v887 = vunpack.c.l.bf16 %v879
      %v888 = vunpack.c.l.bf16 %v880
      %v889 = vunpack.c.l.bf16 %v881
      %v890 = vadd.f32 %v850, %v882
      %v891 = vadd.f32 %v851, %v883
      %v892 = vadd.f32 %v852, %v884
      %v893 = vadd.f32 %v853, %v885
      %v894 = vadd.f32 %v854, %v886
      %v895 = vadd.f32 %v855, %v887
      %v896 = vadd.f32 %v856, %v888
      %v897 = vadd.f32 %v857, %v889
      %v899 = vpack.i.b16 %v731, %v731
      %v901 = vperm.slane %v899, 2
      %v902 = vunpack.c.l.bf16 %v715
      %v903 = vunpack.c.h.bf16 %v715
      %v904 = vunpack.c.l.bf16 %v901
      %v905 = vmul.f32 %v784, %v904
      %v906 = vmul.f32 %v785, %v904
      %v907 = vmul.f32 %v823, %v904
      %v908 = vmul.f32 %v824, %v904
      %v909 = vmul.f32 %v863, %v904
      %v910 = vmul.f32 %v864, %v904
      %v911 = vmul.f32 %v902, %v904
      %v912 = vmul.f32 %v903, %v904
      %v913 = vpack.c.bf16 %v905, %v905
      %v914 = vpack.c.bf16 %v906, %v906
      %v915 = vpack.c.bf16 %v907, %v907
      %v916 = vpack.c.bf16 %v908, %v908
      %v917 = vpack.c.bf16 %v909, %v909
      %v918 = vpack.c.bf16 %v910, %v910
      %v919 = vpack.c.bf16 %v911, %v911
      %v920 = vpack.c.bf16 %v912, %v912
      %v921 = vunpack.c.l.bf16 %v913
      %v922 = vunpack.c.l.bf16 %v914
      %v923 = vunpack.c.l.bf16 %v915
      %v924 = vunpack.c.l.bf16 %v916
      %v925 = vunpack.c.l.bf16 %v917
      %v926 = vunpack.c.l.bf16 %v918
      %v927 = vunpack.c.l.bf16 %v919
      %v928 = vunpack.c.l.bf16 %v920
      %v929 = vadd.f32 %v890, %v921
      %v930 = vadd.f32 %v891, %v922
      %v931 = vadd.f32 %v892, %v923
      %v932 = vadd.f32 %v893, %v924
      %v933 = vadd.f32 %v894, %v925
      %v934 = vadd.f32 %v895, %v926
      %v935 = vadd.f32 %v896, %v927
      %v936 = vadd.f32 %v897, %v928
      %v938 = vshrl.u32 %v732, 16
      %v939 = vpack.i.b16 %v938, %v938
      %v941 = vperm.slane %v939, 1
      %v942 = vunpack.c.l.bf16 %v716
      %v943 = vunpack.c.h.bf16 %v716
      %v944 = vunpack.c.l.bf16 %v941
      %v945 = vmul.f32 %v823, %v944
      %v946 = vmul.f32 %v824, %v944
      %v947 = vmul.f32 %v863, %v944
      %v948 = vmul.f32 %v864, %v944
      %v949 = vmul.f32 %v902, %v944
      %v950 = vmul.f32 %v903, %v944
      %v951 = vmul.f32 %v942, %v944
      %v952 = vmul.f32 %v943, %v944
      %v953 = vpack.c.bf16 %v945, %v945
      %v954 = vpack.c.bf16 %v946, %v946
      %v955 = vpack.c.bf16 %v947, %v947
      %v956 = vpack.c.bf16 %v948, %v948
      %v957 = vpack.c.bf16 %v949, %v949
      %v958 = vpack.c.bf16 %v950, %v950
      %v959 = vpack.c.bf16 %v951, %v951
      %v960 = vpack.c.bf16 %v952, %v952
      %v961 = vunpack.c.l.bf16 %v953
      %v962 = vunpack.c.l.bf16 %v954
      %v963 = vunpack.c.l.bf16 %v955
      %v964 = vunpack.c.l.bf16 %v956
      %v965 = vunpack.c.l.bf16 %v957
      %v966 = vunpack.c.l.bf16 %v958
      %v967 = vunpack.c.l.bf16 %v959
      %v968 = vunpack.c.l.bf16 %v960
      %v969 = vadd.f32 %v929, %v961
      %v970 = vadd.f32 %v930, %v962
      %v971 = vadd.f32 %v931, %v963
      %v972 = vadd.f32 %v932, %v964
      %v973 = vadd.f32 %v933, %v965
      %v974 = vadd.f32 %v934, %v966
      %v975 = vadd.f32 %v935, %v967
      %v976 = vadd.f32 %v936, %v968
      %v978 = vpack.i.b16 %v733, %v733
      %v980 = vperm.slane %v978, 1
      %v981 = vunpack.c.l.bf16 %v717
      %v982 = vunpack.c.h.bf16 %v717
      %v983 = vunpack.c.l.bf16 %v980
      %v984 = vmul.f32 %v863, %v983
      %v985 = vmul.f32 %v864, %v983
      %v986 = vmul.f32 %v902, %v983
      %v987 = vmul.f32 %v903, %v983
      %v988 = vmul.f32 %v942, %v983
      %v989 = vmul.f32 %v943, %v983
      %v990 = vmul.f32 %v981, %v983
      %v991 = vmul.f32 %v982, %v983
      %v992 = vpack.c.bf16 %v984, %v984
      %v993 = vpack.c.bf16 %v985, %v985
      %v994 = vpack.c.bf16 %v986, %v986
      %v995 = vpack.c.bf16 %v987, %v987
      %v996 = vpack.c.bf16 %v988, %v988
      %v997 = vpack.c.bf16 %v989, %v989
      %v998 = vpack.c.bf16 %v990, %v990
      %v999 = vpack.c.bf16 %v991, %v991
      %v1000 = vunpack.c.l.bf16 %v992
      %v1001 = vunpack.c.l.bf16 %v993
      %v1002 = vunpack.c.l.bf16 %v994
      %v1003 = vunpack.c.l.bf16 %v995
      %v1004 = vunpack.c.l.bf16 %v996
      %v1005 = vunpack.c.l.bf16 %v997
      %v1006 = vunpack.c.l.bf16 %v998
      %v1007 = vunpack.c.l.bf16 %v999
      %v1008 = vadd.f32 %v969, %v1000
      %v1009 = vadd.f32 %v970, %v1001
      %v1010 = vadd.f32 %v971, %v1002
      %v1011 = vadd.f32 %v972, %v1003
      %v1012 = vadd.f32 %v973, %v1004
      %v1013 = vadd.f32 %v974, %v1005
      %v1014 = vadd.f32 %v975, %v1006
      %v1015 = vadd.f32 %v976, %v1007
      %v1016 = vperm.slane %v781, 0
      %v1017 = vunpack.c.l.bf16 %v718
      %v1018 = vunpack.c.l.bf16 %v719
      %v1019 = vunpack.c.l.bf16 %v720
      %v1020 = vunpack.c.l.bf16 %v721
      %v1021 = vunpack.c.l.bf16 %v1016
      %v1022 = vmul.f32 %v739, %v1021
      %v1023 = vmul.f32 %v740, %v1021
      %v1024 = vmul.f32 %v1017, %v1021
      %v1025 = vmul.f32 %v741, %v1021
      %v1026 = vmul.f32 %v742, %v1021
      %v1027 = vmul.f32 %v1018, %v1021
      %v1028 = vmul.f32 %v743, %v1021
      %v1029 = vmul.f32 %v744, %v1021
      %v1030 = vmul.f32 %v1019, %v1021
      %v1031 = vmul.f32 %v745, %v1021
      %v1032 = vmul.f32 %v746, %v1021
      %v1033 = vmul.f32 %v1020, %v1021
      %v1034 = vpack.c.bf16 %v1022, %v1022
      %v1035 = vpack.c.bf16 %v1023, %v1023
      %v1036 = vpack.c.bf16 %v1024, %v1024
      %v1037 = vpack.c.bf16 %v1025, %v1025
      %v1038 = vpack.c.bf16 %v1026, %v1026
      %v1039 = vpack.c.bf16 %v1027, %v1027
      %v1040 = vpack.c.bf16 %v1028, %v1028
      %v1041 = vpack.c.bf16 %v1029, %v1029
      %v1042 = vpack.c.bf16 %v1030, %v1030
      %v1043 = vpack.c.bf16 %v1031, %v1031
      %v1044 = vpack.c.bf16 %v1032, %v1032
      %v1045 = vpack.c.bf16 %v1033, %v1033
      %v1046 = vunpack.c.l.bf16 %v1034
      %v1047 = vunpack.c.l.bf16 %v1035
      %v1048 = vunpack.c.l.bf16 %v1036
      %v1049 = vunpack.c.l.bf16 %v1037
      %v1050 = vunpack.c.l.bf16 %v1038
      %v1051 = vunpack.c.l.bf16 %v1039
      %v1052 = vunpack.c.l.bf16 %v1040
      %v1053 = vunpack.c.l.bf16 %v1041
      %v1054 = vunpack.c.l.bf16 %v1042
      %v1055 = vunpack.c.l.bf16 %v1043
      %v1056 = vunpack.c.l.bf16 %v1044
      %v1057 = vunpack.c.l.bf16 %v1045
      %vm1070 = vcmask 1046528
      %v1071 = vrot.slane %v1046, 1
      %v1072 = vrot.slane %v1047, 1
      %v1073 = vsel %vm1070, %v1071, %v1072
      %v1074 = vrot.slane %v1048, 1
      %v1075 = vsel %vm1070, %v1072, %v1074
      %v1076 = vrot.slane %v1049, 1
      %v1077 = vrot.slane %v1050, 1
      %v1078 = vsel %vm1070, %v1076, %v1077
      %v1079 = vrot.slane %v1051, 1
      %v1080 = vsel %vm1070, %v1077, %v1079
      %v1081 = vrot.slane %v1052, 1
      %v1082 = vrot.slane %v1053, 1
      %v1083 = vsel %vm1070, %v1081, %v1082
      %v1084 = vrot.slane %v1054, 1
      %v1085 = vsel %vm1070, %v1082, %v1084
      %v1086 = vrot.slane %v1055, 1
      %v1087 = vrot.slane %v1056, 1
      %v1088 = vsel %vm1070, %v1086, %v1087
      %v1089 = vrot.slane %v1057, 1
      %v1090 = vsel %vm1070, %v1087, %v1089
      %v1099 = vadd.f32 %v1008, %v1073
      %v1100 = vadd.f32 %v1009, %v1075
      %v1101 = vadd.f32 %v1010, %v1078
      %v1102 = vadd.f32 %v1011, %v1080
      %v1103 = vadd.f32 %v1012, %v1083
      %v1104 = vadd.f32 %v1013, %v1085
      %v1105 = vadd.f32 %v1014, %v1088
      %v1106 = vadd.f32 %v1015, %v1090
      %v1107 = vperm.slane %v820, 0
      %v1108 = vunpack.c.l.bf16 %v722
      %v1109 = vunpack.c.l.bf16 %v1107
      %v1110 = vmul.f32 %v741, %v1109
      %v1111 = vmul.f32 %v742, %v1109
      %v1112 = vmul.f32 %v1018, %v1109
      %v1113 = vmul.f32 %v743, %v1109
      %v1114 = vmul.f32 %v744, %v1109
      %v1115 = vmul.f32 %v1019, %v1109
      %v1116 = vmul.f32 %v745, %v1109
      %v1117 = vmul.f32 %v746, %v1109
      %v1118 = vmul.f32 %v1020, %v1109
      %v1119 = vmul.f32 %v784, %v1109
      %v1120 = vmul.f32 %v785, %v1109
      %v1121 = vmul.f32 %v1108, %v1109
      %v1122 = vpack.c.bf16 %v1110, %v1110
      %v1123 = vpack.c.bf16 %v1111, %v1111
      %v1124 = vpack.c.bf16 %v1112, %v1112
      %v1125 = vpack.c.bf16 %v1113, %v1113
      %v1126 = vpack.c.bf16 %v1114, %v1114
      %v1127 = vpack.c.bf16 %v1115, %v1115
      %v1128 = vpack.c.bf16 %v1116, %v1116
      %v1129 = vpack.c.bf16 %v1117, %v1117
      %v1130 = vpack.c.bf16 %v1118, %v1118
      %v1131 = vpack.c.bf16 %v1119, %v1119
      %v1132 = vpack.c.bf16 %v1120, %v1120
      %v1133 = vpack.c.bf16 %v1121, %v1121
      %v1134 = vunpack.c.l.bf16 %v1122
      %v1135 = vunpack.c.l.bf16 %v1123
      %v1136 = vunpack.c.l.bf16 %v1124
      %v1137 = vunpack.c.l.bf16 %v1125
      %v1138 = vunpack.c.l.bf16 %v1126
      %v1139 = vunpack.c.l.bf16 %v1127
      %v1140 = vunpack.c.l.bf16 %v1128
      %v1141 = vunpack.c.l.bf16 %v1129
      %v1142 = vunpack.c.l.bf16 %v1130
      %v1143 = vunpack.c.l.bf16 %v1131
      %v1144 = vunpack.c.l.bf16 %v1132
      %v1145 = vunpack.c.l.bf16 %v1133
      %v1158 = vrot.slane %v1134, 1
      %v1159 = vrot.slane %v1135, 1
      %v1160 = vsel %vm1070, %v1158, %v1159
      %v1161 = vrot.slane %v1136, 1
      %v1162 = vsel %vm1070, %v1159, %v1161
      %v1163 = vrot.slane %v1137, 1
      %v1164 = vrot.slane %v1138, 1
      %v1165 = vsel %vm1070, %v1163, %v1164
      %v1166 = vrot.slane %v1139, 1
      %v1167 = vsel %vm1070, %v1164, %v1166
      %v1168 = vrot.slane %v1140, 1
      %v1169 = vrot.slane %v1141, 1
      %v1170 = vsel %vm1070, %v1168, %v1169
      %v1171 = vrot.slane %v1142, 1
      %v1172 = vsel %vm1070, %v1169, %v1171
      %v1173 = vrot.slane %v1143, 1
      %v1174 = vrot.slane %v1144, 1
      %v1175 = vsel %vm1070, %v1173, %v1174
      %v1176 = vrot.slane %v1145, 1
      %v1177 = vsel %vm1070, %v1174, %v1176
      %v1186 = vadd.f32 %v1099, %v1160
      %v1187 = vadd.f32 %v1100, %v1162
      %v1188 = vadd.f32 %v1101, %v1165
      %v1189 = vadd.f32 %v1102, %v1167
      %v1190 = vadd.f32 %v1103, %v1170
      %v1191 = vadd.f32 %v1104, %v1172
      %v1192 = vadd.f32 %v1105, %v1175
      %v1193 = vadd.f32 %v1106, %v1177
      %v1194 = vshrl.u32 %v729, 16
      %v1195 = vpack.i.b16 %v1194, %v1194
      %v1197 = vperm.slane %v1195, 3
      %v1198 = vunpack.c.l.bf16 %v723
      %v1199 = vunpack.c.l.bf16 %v1197
      %v1200 = vmul.f32 %v743, %v1199
      %v1201 = vmul.f32 %v744, %v1199
      %v1202 = vmul.f32 %v1019, %v1199
      %v1203 = vmul.f32 %v745, %v1199
      %v1204 = vmul.f32 %v746, %v1199
      %v1205 = vmul.f32 %v1020, %v1199
      %v1206 = vmul.f32 %v784, %v1199
      %v1207 = vmul.f32 %v785, %v1199
      %v1208 = vmul.f32 %v1108, %v1199
      %v1209 = vmul.f32 %v823, %v1199
      %v1210 = vmul.f32 %v824, %v1199
      %v1211 = vmul.f32 %v1198, %v1199
      %v1212 = vpack.c.bf16 %v1200, %v1200
      %v1213 = vpack.c.bf16 %v1201, %v1201
      %v1214 = vpack.c.bf16 %v1202, %v1202
      %v1215 = vpack.c.bf16 %v1203, %v1203
      %v1216 = vpack.c.bf16 %v1204, %v1204
      %v1217 = vpack.c.bf16 %v1205, %v1205
      %v1218 = vpack.c.bf16 %v1206, %v1206
      %v1219 = vpack.c.bf16 %v1207, %v1207
      %v1220 = vpack.c.bf16 %v1208, %v1208
      %v1221 = vpack.c.bf16 %v1209, %v1209
      %v1222 = vpack.c.bf16 %v1210, %v1210
      %v1223 = vpack.c.bf16 %v1211, %v1211
      %v1224 = vunpack.c.l.bf16 %v1212
      %v1225 = vunpack.c.l.bf16 %v1213
      %v1226 = vunpack.c.l.bf16 %v1214
      %v1227 = vunpack.c.l.bf16 %v1215
      %v1228 = vunpack.c.l.bf16 %v1216
      %v1229 = vunpack.c.l.bf16 %v1217
      %v1230 = vunpack.c.l.bf16 %v1218
      %v1231 = vunpack.c.l.bf16 %v1219
      %v1232 = vunpack.c.l.bf16 %v1220
      %v1233 = vunpack.c.l.bf16 %v1221
      %v1234 = vunpack.c.l.bf16 %v1222
      %v1235 = vunpack.c.l.bf16 %v1223
      %v1248 = vrot.slane %v1224, 1
      %v1249 = vrot.slane %v1225, 1
      %v1250 = vsel %vm1070, %v1248, %v1249
      %v1251 = vrot.slane %v1226, 1
      %v1252 = vsel %vm1070, %v1249, %v1251
      %v1253 = vrot.slane %v1227, 1
      %v1254 = vrot.slane %v1228, 1
      %v1255 = vsel %vm1070, %v1253, %v1254
      %v1256 = vrot.slane %v1229, 1
      %v1257 = vsel %vm1070, %v1254, %v1256
      %v1258 = vrot.slane %v1230, 1
      %v1259 = vrot.slane %v1231, 1
      %v1260 = vsel %vm1070, %v1258, %v1259
      %v1261 = vrot.slane %v1232, 1
      %v1262 = vsel %vm1070, %v1259, %v1261
      %v1263 = vrot.slane %v1233, 1
      %v1264 = vrot.slane %v1234, 1
      %v1265 = vsel %vm1070, %v1263, %v1264
      %v1266 = vrot.slane %v1235, 1
      %v1267 = vsel %vm1070, %v1264, %v1266
      %v1276 = vadd.f32 %v1186, %v1250
      %v1277 = vadd.f32 %v1187, %v1252
      %v1278 = vadd.f32 %v1188, %v1255
      %v1279 = vadd.f32 %v1189, %v1257
      %v1280 = vadd.f32 %v1190, %v1260
      %v1281 = vadd.f32 %v1191, %v1262
      %v1282 = vadd.f32 %v1192, %v1265
      %v1283 = vadd.f32 %v1193, %v1267
      %v1284 = vpack.i.b16 %v730, %v730
      %v1286 = vperm.slane %v1284, 3
      %v1287 = vunpack.c.l.bf16 %v724
      %v1288 = vunpack.c.l.bf16 %v1286
      %v1289 = vmul.f32 %v745, %v1288
      %v1290 = vmul.f32 %v746, %v1288
      %v1291 = vmul.f32 %v1020, %v1288
      %v1292 = vmul.f32 %v784, %v1288
      %v1293 = vmul.f32 %v785, %v1288
      %v1294 = vmul.f32 %v1108, %v1288
      %v1295 = vmul.f32 %v823, %v1288
      %v1296 = vmul.f32 %v824, %v1288
      %v1297 = vmul.f32 %v1198, %v1288
      %v1298 = vmul.f32 %v863, %v1288
      %v1299 = vmul.f32 %v864, %v1288
      %v1300 = vmul.f32 %v1287, %v1288
      %v1301 = vpack.c.bf16 %v1289, %v1289
      %v1302 = vpack.c.bf16 %v1290, %v1290
      %v1303 = vpack.c.bf16 %v1291, %v1291
      %v1304 = vpack.c.bf16 %v1292, %v1292
      %v1305 = vpack.c.bf16 %v1293, %v1293
      %v1306 = vpack.c.bf16 %v1294, %v1294
      %v1307 = vpack.c.bf16 %v1295, %v1295
      %v1308 = vpack.c.bf16 %v1296, %v1296
      %v1309 = vpack.c.bf16 %v1297, %v1297
      %v1310 = vpack.c.bf16 %v1298, %v1298
      %v1311 = vpack.c.bf16 %v1299, %v1299
      %v1312 = vpack.c.bf16 %v1300, %v1300
      %v1313 = vunpack.c.l.bf16 %v1301
      %v1314 = vunpack.c.l.bf16 %v1302
      %v1315 = vunpack.c.l.bf16 %v1303
      %v1316 = vunpack.c.l.bf16 %v1304
      %v1317 = vunpack.c.l.bf16 %v1305
      %v1318 = vunpack.c.l.bf16 %v1306
      %v1319 = vunpack.c.l.bf16 %v1307
      %v1320 = vunpack.c.l.bf16 %v1308
      %v1321 = vunpack.c.l.bf16 %v1309
      %v1322 = vunpack.c.l.bf16 %v1310
      %v1323 = vunpack.c.l.bf16 %v1311
      %v1324 = vunpack.c.l.bf16 %v1312
      %v1337 = vrot.slane %v1313, 1
      %v1338 = vrot.slane %v1314, 1
      %v1339 = vsel %vm1070, %v1337, %v1338
      %v1340 = vrot.slane %v1315, 1
      %v1341 = vsel %vm1070, %v1338, %v1340
      %v1342 = vrot.slane %v1316, 1
      %v1343 = vrot.slane %v1317, 1
      %v1344 = vsel %vm1070, %v1342, %v1343
      %v1345 = vrot.slane %v1318, 1
      %v1346 = vsel %vm1070, %v1343, %v1345
      %v1347 = vrot.slane %v1319, 1
      %v1348 = vrot.slane %v1320, 1
      %v1349 = vsel %vm1070, %v1347, %v1348
      %v1350 = vrot.slane %v1321, 1
      %v1351 = vsel %vm1070, %v1348, %v1350
      %v1352 = vrot.slane %v1322, 1
      %v1353 = vrot.slane %v1323, 1
      %v1354 = vsel %vm1070, %v1352, %v1353
      %v1355 = vrot.slane %v1324, 1
      %v1356 = vsel %vm1070, %v1353, %v1355
      %v1365 = vadd.f32 %v1276, %v1339
      %v1366 = vadd.f32 %v1277, %v1341
      %v1367 = vadd.f32 %v1278, %v1344
      %v1368 = vadd.f32 %v1279, %v1346
      %v1369 = vadd.f32 %v1280, %v1349
      %v1370 = vadd.f32 %v1281, %v1351
      %v1371 = vadd.f32 %v1282, %v1354
      %v1372 = vadd.f32 %v1283, %v1356
      %v1373 = vshrl.u32 %v731, 16
      %v1374 = vpack.i.b16 %v1373, %v1373
      %v1376 = vperm.slane %v1374, 2
      %v1377 = vunpack.c.l.bf16 %v725
      %v1378 = vunpack.c.l.bf16 %v1376
      %v1379 = vmul.f32 %v784, %v1378
      %v1380 = vmul.f32 %v785, %v1378
      %v1381 = vmul.f32 %v1108, %v1378
      %v1382 = vmul.f32 %v823, %v1378
      %v1383 = vmul.f32 %v824, %v1378
      %v1384 = vmul.f32 %v1198, %v1378
      %v1385 = vmul.f32 %v863, %v1378
      %v1386 = vmul.f32 %v864, %v1378
      %v1387 = vmul.f32 %v1287, %v1378
      %v1388 = vmul.f32 %v902, %v1378
      %v1389 = vmul.f32 %v903, %v1378
      %v1390 = vmul.f32 %v1377, %v1378
      %v1391 = vpack.c.bf16 %v1379, %v1379
      %v1392 = vpack.c.bf16 %v1380, %v1380
      %v1393 = vpack.c.bf16 %v1381, %v1381
      %v1394 = vpack.c.bf16 %v1382, %v1382
      %v1395 = vpack.c.bf16 %v1383, %v1383
      %v1396 = vpack.c.bf16 %v1384, %v1384
      %v1397 = vpack.c.bf16 %v1385, %v1385
      %v1398 = vpack.c.bf16 %v1386, %v1386
      %v1399 = vpack.c.bf16 %v1387, %v1387
      %v1400 = vpack.c.bf16 %v1388, %v1388
      %v1401 = vpack.c.bf16 %v1389, %v1389
      %v1402 = vpack.c.bf16 %v1390, %v1390
      %v1403 = vunpack.c.l.bf16 %v1391
      %v1404 = vunpack.c.l.bf16 %v1392
      %v1405 = vunpack.c.l.bf16 %v1393
      %v1406 = vunpack.c.l.bf16 %v1394
      %v1407 = vunpack.c.l.bf16 %v1395
      %v1408 = vunpack.c.l.bf16 %v1396
      %v1409 = vunpack.c.l.bf16 %v1397
      %v1410 = vunpack.c.l.bf16 %v1398
      %v1411 = vunpack.c.l.bf16 %v1399
      %v1412 = vunpack.c.l.bf16 %v1400
      %v1413 = vunpack.c.l.bf16 %v1401
      %v1414 = vunpack.c.l.bf16 %v1402
      %v1427 = vrot.slane %v1403, 1
      %v1428 = vrot.slane %v1404, 1
      %v1429 = vsel %vm1070, %v1427, %v1428
      %v1430 = vrot.slane %v1405, 1
      %v1431 = vsel %vm1070, %v1428, %v1430
      %v1432 = vrot.slane %v1406, 1
      %v1433 = vrot.slane %v1407, 1
      %v1434 = vsel %vm1070, %v1432, %v1433
      %v1435 = vrot.slane %v1408, 1
      %v1436 = vsel %vm1070, %v1433, %v1435
      %v1437 = vrot.slane %v1409, 1
      %v1438 = vrot.slane %v1410, 1
      %v1439 = vsel %vm1070, %v1437, %v1438
      %v1440 = vrot.slane %v1411, 1
      %v1441 = vsel %vm1070, %v1438, %v1440
      %v1442 = vrot.slane %v1412, 1
      %v1443 = vrot.slane %v1413, 1
      %v1444 = vsel %vm1070, %v1442, %v1443
      %v1445 = vrot.slane %v1414, 1
      %v1446 = vsel %vm1070, %v1443, %v1445
      %v1455 = vadd.f32 %v1365, %v1429
      %v1456 = vadd.f32 %v1366, %v1431
      %v1457 = vadd.f32 %v1367, %v1434
      %v1458 = vadd.f32 %v1368, %v1436
      %v1459 = vadd.f32 %v1369, %v1439
      %v1460 = vadd.f32 %v1370, %v1441
      %v1461 = vadd.f32 %v1371, %v1444
      %v1462 = vadd.f32 %v1372, %v1446
      %v1463 = vpack.i.b16 %v732, %v732
      %v1465 = vperm.slane %v1463, 2
      %v1466 = vunpack.c.l.bf16 %v726
      %v1467 = vunpack.c.l.bf16 %v1465
      %v1468 = vmul.f32 %v823, %v1467
      %v1469 = vmul.f32 %v824, %v1467
      %v1470 = vmul.f32 %v1198, %v1467
      %v1471 = vmul.f32 %v863, %v1467
      %v1472 = vmul.f32 %v864, %v1467
      %v1473 = vmul.f32 %v1287, %v1467
      %v1474 = vmul.f32 %v902, %v1467
      %v1475 = vmul.f32 %v903, %v1467
      %v1476 = vmul.f32 %v1377, %v1467
      %v1477 = vmul.f32 %v942, %v1467
      %v1478 = vmul.f32 %v943, %v1467
      %v1479 = vmul.f32 %v1466, %v1467
      %v1480 = vpack.c.bf16 %v1468, %v1468
      %v1481 = vpack.c.bf16 %v1469, %v1469
      %v1482 = vpack.c.bf16 %v1470, %v1470
      %v1483 = vpack.c.bf16 %v1471, %v1471
      %v1484 = vpack.c.bf16 %v1472, %v1472
      %v1485 = vpack.c.bf16 %v1473, %v1473
      %v1486 = vpack.c.bf16 %v1474, %v1474
      %v1487 = vpack.c.bf16 %v1475, %v1475
      %v1488 = vpack.c.bf16 %v1476, %v1476
      %v1489 = vpack.c.bf16 %v1477, %v1477
      %v1490 = vpack.c.bf16 %v1478, %v1478
      %v1491 = vpack.c.bf16 %v1479, %v1479
      %v1492 = vunpack.c.l.bf16 %v1480
      %v1493 = vunpack.c.l.bf16 %v1481
      %v1494 = vunpack.c.l.bf16 %v1482
      %v1495 = vunpack.c.l.bf16 %v1483
      %v1496 = vunpack.c.l.bf16 %v1484
      %v1497 = vunpack.c.l.bf16 %v1485
      %v1498 = vunpack.c.l.bf16 %v1486
      %v1499 = vunpack.c.l.bf16 %v1487
      %v1500 = vunpack.c.l.bf16 %v1488
      %v1501 = vunpack.c.l.bf16 %v1489
      %v1502 = vunpack.c.l.bf16 %v1490
      %v1503 = vunpack.c.l.bf16 %v1491
      %v1516 = vrot.slane %v1492, 1
      %v1517 = vrot.slane %v1493, 1
      %v1518 = vsel %vm1070, %v1516, %v1517
      %v1519 = vrot.slane %v1494, 1
      %v1520 = vsel %vm1070, %v1517, %v1519
      %v1521 = vrot.slane %v1495, 1
      %v1522 = vrot.slane %v1496, 1
      %v1523 = vsel %vm1070, %v1521, %v1522
      %v1524 = vrot.slane %v1497, 1
      %v1525 = vsel %vm1070, %v1522, %v1524
      %v1526 = vrot.slane %v1498, 1
      %v1527 = vrot.slane %v1499, 1
      %v1528 = vsel %vm1070, %v1526, %v1527
      %v1529 = vrot.slane %v1500, 1
      %v1530 = vsel %vm1070, %v1527, %v1529
      %v1531 = vrot.slane %v1501, 1
      %v1532 = vrot.slane %v1502, 1
      %v1533 = vsel %vm1070, %v1531, %v1532
      %v1534 = vrot.slane %v1503, 1
      %v1535 = vsel %vm1070, %v1532, %v1534
      %v1544 = vadd.f32 %v1455, %v1518
      %v1545 = vadd.f32 %v1456, %v1520
      %v1546 = vadd.f32 %v1457, %v1523
      %v1547 = vadd.f32 %v1458, %v1525
      %v1548 = vadd.f32 %v1459, %v1528
      %v1549 = vadd.f32 %v1460, %v1530
      %v1550 = vadd.f32 %v1461, %v1533
      %v1551 = vadd.f32 %v1462, %v1535
      %v1552 = vshrl.u32 %v733, 16
      %v1553 = vpack.i.b16 %v1552, %v1552
      %v1555 = vperm.slane %v1553, 1
      %v1556 = vunpack.c.l.bf16 %v727
      %v1557 = vunpack.c.l.bf16 %v1555
      %v1558 = vmul.f32 %v863, %v1557
      %v1559 = vmul.f32 %v864, %v1557
      %v1560 = vmul.f32 %v1287, %v1557
      %v1561 = vmul.f32 %v902, %v1557
      %v1562 = vmul.f32 %v903, %v1557
      %v1563 = vmul.f32 %v1377, %v1557
      %v1564 = vmul.f32 %v942, %v1557
      %v1565 = vmul.f32 %v943, %v1557
      %v1566 = vmul.f32 %v1466, %v1557
      %v1567 = vmul.f32 %v981, %v1557
      %v1568 = vmul.f32 %v982, %v1557
      %v1569 = vmul.f32 %v1556, %v1557
      %v1570 = vpack.c.bf16 %v1558, %v1558
      %v1571 = vpack.c.bf16 %v1559, %v1559
      %v1572 = vpack.c.bf16 %v1560, %v1560
      %v1573 = vpack.c.bf16 %v1561, %v1561
      %v1574 = vpack.c.bf16 %v1562, %v1562
      %v1575 = vpack.c.bf16 %v1563, %v1563
      %v1576 = vpack.c.bf16 %v1564, %v1564
      %v1577 = vpack.c.bf16 %v1565, %v1565
      %v1578 = vpack.c.bf16 %v1566, %v1566
      %v1579 = vpack.c.bf16 %v1567, %v1567
      %v1580 = vpack.c.bf16 %v1568, %v1568
      %v1581 = vpack.c.bf16 %v1569, %v1569
      %v1582 = vunpack.c.l.bf16 %v1570
      %v1583 = vunpack.c.l.bf16 %v1571
      %v1584 = vunpack.c.l.bf16 %v1572
      %v1585 = vunpack.c.l.bf16 %v1573
      %v1586 = vunpack.c.l.bf16 %v1574
      %v1587 = vunpack.c.l.bf16 %v1575
      %v1588 = vunpack.c.l.bf16 %v1576
      %v1589 = vunpack.c.l.bf16 %v1577
      %v1590 = vunpack.c.l.bf16 %v1578
      %v1591 = vunpack.c.l.bf16 %v1579
      %v1592 = vunpack.c.l.bf16 %v1580
      %v1593 = vunpack.c.l.bf16 %v1581
      %v1606 = vrot.slane %v1582, 1
      %v1607 = vrot.slane %v1583, 1
      %v1608 = vsel %vm1070, %v1606, %v1607
      %v1609 = vrot.slane %v1584, 1
      %v1610 = vsel %vm1070, %v1607, %v1609
      %v1611 = vrot.slane %v1585, 1
      %v1612 = vrot.slane %v1586, 1
      %v1613 = vsel %vm1070, %v1611, %v1612
      %v1614 = vrot.slane %v1587, 1
      %v1615 = vsel %vm1070, %v1612, %v1614
      %v1616 = vrot.slane %v1588, 1
      %v1617 = vrot.slane %v1589, 1
      %v1618 = vsel %vm1070, %v1616, %v1617
      %v1619 = vrot.slane %v1590, 1
      %v1620 = vsel %vm1070, %v1617, %v1619
      %v1621 = vrot.slane %v1591, 1
      %v1622 = vrot.slane %v1592, 1
      %v1623 = vsel %vm1070, %v1621, %v1622
      %v1624 = vrot.slane %v1593, 1
      %v1625 = vsel %vm1070, %v1622, %v1624
      %v1634 = vadd.f32 %v1544, %v1608
      %v1635 = vadd.f32 %v1545, %v1610
      %v1636 = vadd.f32 %v1546, %v1613
      %v1637 = vadd.f32 %v1547, %v1615
      %v1638 = vadd.f32 %v1548, %v1618
      %v1639 = vadd.f32 %v1549, %v1620
      %v1640 = vadd.f32 %v1550, %v1623
      %v1641 = vadd.f32 %v1551, %v1625
      %v1642 = vperm.slane %v736, 1
      %v1643 = vunpack.c.l.bf16 %v1642
      %v1644 = vmul.f32 %v739, %v1643
      %v1645 = vmul.f32 %v740, %v1643
      %v1646 = vmul.f32 %v1017, %v1643
      %v1647 = vmul.f32 %v741, %v1643
      %v1648 = vmul.f32 %v742, %v1643
      %v1649 = vmul.f32 %v1018, %v1643
      %v1650 = vmul.f32 %v743, %v1643
      %v1651 = vmul.f32 %v744, %v1643
      %v1652 = vmul.f32 %v1019, %v1643
      %v1653 = vmul.f32 %v745, %v1643
      %v1654 = vmul.f32 %v746, %v1643
      %v1655 = vmul.f32 %v1020, %v1643
      %v1656 = vpack.c.bf16 %v1644, %v1644
      %v1657 = vpack.c.bf16 %v1645, %v1645
      %v1658 = vpack.c.bf16 %v1646, %v1646
      %v1659 = vpack.c.bf16 %v1647, %v1647
      %v1660 = vpack.c.bf16 %v1648, %v1648
      %v1661 = vpack.c.bf16 %v1649, %v1649
      %v1662 = vpack.c.bf16 %v1650, %v1650
      %v1663 = vpack.c.bf16 %v1651, %v1651
      %v1664 = vpack.c.bf16 %v1652, %v1652
      %v1665 = vpack.c.bf16 %v1653, %v1653
      %v1666 = vpack.c.bf16 %v1654, %v1654
      %v1667 = vpack.c.bf16 %v1655, %v1655
      %v1668 = vunpack.c.l.bf16 %v1656
      %v1669 = vunpack.c.l.bf16 %v1657
      %v1670 = vunpack.c.l.bf16 %v1658
      %v1671 = vunpack.c.l.bf16 %v1659
      %v1672 = vunpack.c.l.bf16 %v1660
      %v1673 = vunpack.c.l.bf16 %v1661
      %v1674 = vunpack.c.l.bf16 %v1662
      %v1675 = vunpack.c.l.bf16 %v1663
      %v1676 = vunpack.c.l.bf16 %v1664
      %v1677 = vunpack.c.l.bf16 %v1665
      %v1678 = vunpack.c.l.bf16 %v1666
      %v1679 = vunpack.c.l.bf16 %v1667
      %vm1692 = vcmask 1045504
      %v1693 = vrot.slane %v1668, 2
      %v1694 = vrot.slane %v1669, 2
      %v1695 = vsel %vm1692, %v1693, %v1694
      %v1696 = vrot.slane %v1670, 2
      %v1697 = vsel %vm1692, %v1694, %v1696
      %v1698 = vrot.slane %v1671, 2
      %v1699 = vrot.slane %v1672, 2
      %v1700 = vsel %vm1692, %v1698, %v1699
      %v1701 = vrot.slane %v1673, 2
      %v1702 = vsel %vm1692, %v1699, %v1701
      %v1703 = vrot.slane %v1674, 2
      %v1704 = vrot.slane %v1675, 2
      %v1705 = vsel %vm1692, %v1703, %v1704
      %v1706 = vrot.slane %v1676, 2
      %v1707 = vsel %vm1692, %v1704, %v1706
      %v1708 = vrot.slane %v1677, 2
      %v1709 = vrot.slane %v1678, 2
      %v1710 = vsel %vm1692, %v1708, %v1709
      %v1711 = vrot.slane %v1679, 2
      %v1712 = vsel %vm1692, %v1709, %v1711
      %v1721 = vadd.f32 %v1634, %v1695
      %v1722 = vadd.f32 %v1635, %v1697
      %v1723 = vadd.f32 %v1636, %v1700
      %v1724 = vadd.f32 %v1637, %v1702
      %v1725 = vadd.f32 %v1638, %v1705
      %v1726 = vadd.f32 %v1639, %v1707
      %v1727 = vadd.f32 %v1640, %v1710
      %v1728 = vadd.f32 %v1641, %v1712
      %v1729 = vperm.slane %v1195, 0
      %v1730 = vunpack.c.l.bf16 %v1729
      %v1731 = vmul.f32 %v741, %v1730
      %v1732 = vmul.f32 %v742, %v1730
      %v1733 = vmul.f32 %v1018, %v1730
      %v1734 = vmul.f32 %v743, %v1730
      %v1735 = vmul.f32 %v744, %v1730
      %v1736 = vmul.f32 %v1019, %v1730
      %v1737 = vmul.f32 %v745, %v1730
      %v1738 = vmul.f32 %v746, %v1730
      %v1739 = vmul.f32 %v1020, %v1730
      %v1740 = vmul.f32 %v784, %v1730
      %v1741 = vmul.f32 %v785, %v1730
      %v1742 = vmul.f32 %v1108, %v1730
      %v1743 = vpack.c.bf16 %v1731, %v1731
      %v1744 = vpack.c.bf16 %v1732, %v1732
      %v1745 = vpack.c.bf16 %v1733, %v1733
      %v1746 = vpack.c.bf16 %v1734, %v1734
      %v1747 = vpack.c.bf16 %v1735, %v1735
      %v1748 = vpack.c.bf16 %v1736, %v1736
      %v1749 = vpack.c.bf16 %v1737, %v1737
      %v1750 = vpack.c.bf16 %v1738, %v1738
      %v1751 = vpack.c.bf16 %v1739, %v1739
      %v1752 = vpack.c.bf16 %v1740, %v1740
      %v1753 = vpack.c.bf16 %v1741, %v1741
      %v1754 = vpack.c.bf16 %v1742, %v1742
      %v1755 = vunpack.c.l.bf16 %v1743
      %v1756 = vunpack.c.l.bf16 %v1744
      %v1757 = vunpack.c.l.bf16 %v1745
      %v1758 = vunpack.c.l.bf16 %v1746
      %v1759 = vunpack.c.l.bf16 %v1747
      %v1760 = vunpack.c.l.bf16 %v1748
      %v1761 = vunpack.c.l.bf16 %v1749
      %v1762 = vunpack.c.l.bf16 %v1750
      %v1763 = vunpack.c.l.bf16 %v1751
      %v1764 = vunpack.c.l.bf16 %v1752
      %v1765 = vunpack.c.l.bf16 %v1753
      %v1766 = vunpack.c.l.bf16 %v1754
      %v1779 = vrot.slane %v1755, 2
      %v1780 = vrot.slane %v1756, 2
      %v1781 = vsel %vm1692, %v1779, %v1780
      %v1782 = vrot.slane %v1757, 2
      %v1783 = vsel %vm1692, %v1780, %v1782
      %v1784 = vrot.slane %v1758, 2
      %v1785 = vrot.slane %v1759, 2
      %v1786 = vsel %vm1692, %v1784, %v1785
      %v1787 = vrot.slane %v1760, 2
      %v1788 = vsel %vm1692, %v1785, %v1787
      %v1789 = vrot.slane %v1761, 2
      %v1790 = vrot.slane %v1762, 2
      %v1791 = vsel %vm1692, %v1789, %v1790
      %v1792 = vrot.slane %v1763, 2
      %v1793 = vsel %vm1692, %v1790, %v1792
      %v1794 = vrot.slane %v1764, 2
      %v1795 = vrot.slane %v1765, 2
      %v1796 = vsel %vm1692, %v1794, %v1795
      %v1797 = vrot.slane %v1766, 2
      %v1798 = vsel %vm1692, %v1795, %v1797
      %v1807 = vadd.f32 %v1721, %v1781
      %v1808 = vadd.f32 %v1722, %v1783
      %v1809 = vadd.f32 %v1723, %v1786
      %v1810 = vadd.f32 %v1724, %v1788
      %v1811 = vadd.f32 %v1725, %v1791
      %v1812 = vadd.f32 %v1726, %v1793
      %v1813 = vadd.f32 %v1727, %v1796
      %v1814 = vadd.f32 %v1728, %v1798
      %v1815 = vperm.slane %v1284, 0
      %v1816 = vunpack.c.l.bf16 %v1815
      %v1817 = vmul.f32 %v743, %v1816
      %v1818 = vmul.f32 %v744, %v1816
      %v1819 = vmul.f32 %v1019, %v1816
      %v1820 = vmul.f32 %v745, %v1816
      %v1821 = vmul.f32 %v746, %v1816
      %v1822 = vmul.f32 %v1020, %v1816
      %v1823 = vmul.f32 %v784, %v1816
      %v1824 = vmul.f32 %v785, %v1816
      %v1825 = vmul.f32 %v1108, %v1816
      %v1826 = vmul.f32 %v823, %v1816
      %v1827 = vmul.f32 %v824, %v1816
      %v1828 = vmul.f32 %v1198, %v1816
      %v1829 = vpack.c.bf16 %v1817, %v1817
      %v1830 = vpack.c.bf16 %v1818, %v1818
      %v1831 = vpack.c.bf16 %v1819, %v1819
      %v1832 = vpack.c.bf16 %v1820, %v1820
      %v1833 = vpack.c.bf16 %v1821, %v1821
      %v1834 = vpack.c.bf16 %v1822, %v1822
      %v1835 = vpack.c.bf16 %v1823, %v1823
      %v1836 = vpack.c.bf16 %v1824, %v1824
      %v1837 = vpack.c.bf16 %v1825, %v1825
      %v1838 = vpack.c.bf16 %v1826, %v1826
      %v1839 = vpack.c.bf16 %v1827, %v1827
      %v1840 = vpack.c.bf16 %v1828, %v1828
      %v1841 = vunpack.c.l.bf16 %v1829
      %v1842 = vunpack.c.l.bf16 %v1830
      %v1843 = vunpack.c.l.bf16 %v1831
      %v1844 = vunpack.c.l.bf16 %v1832
      %v1845 = vunpack.c.l.bf16 %v1833
      %v1846 = vunpack.c.l.bf16 %v1834
      %v1847 = vunpack.c.l.bf16 %v1835
      %v1848 = vunpack.c.l.bf16 %v1836
      %v1849 = vunpack.c.l.bf16 %v1837
      %v1850 = vunpack.c.l.bf16 %v1838
      %v1851 = vunpack.c.l.bf16 %v1839
      %v1852 = vunpack.c.l.bf16 %v1840
      %v1865 = vrot.slane %v1841, 2
      %v1866 = vrot.slane %v1842, 2
      %v1867 = vsel %vm1692, %v1865, %v1866
      %v1868 = vrot.slane %v1843, 2
      %v1869 = vsel %vm1692, %v1866, %v1868
      %v1870 = vrot.slane %v1844, 2
      %v1871 = vrot.slane %v1845, 2
      %v1872 = vsel %vm1692, %v1870, %v1871
      %v1873 = vrot.slane %v1846, 2
      %v1874 = vsel %vm1692, %v1871, %v1873
      %v1875 = vrot.slane %v1847, 2
      %v1876 = vrot.slane %v1848, 2
      %v1877 = vsel %vm1692, %v1875, %v1876
      %v1878 = vrot.slane %v1849, 2
      %v1879 = vsel %vm1692, %v1876, %v1878
      %v1880 = vrot.slane %v1850, 2
      %v1881 = vrot.slane %v1851, 2
      %v1882 = vsel %vm1692, %v1880, %v1881
      %v1883 = vrot.slane %v1852, 2
      %v1884 = vsel %vm1692, %v1881, %v1883
      %v1893 = vadd.f32 %v1807, %v1867
      %v1894 = vadd.f32 %v1808, %v1869
      %v1895 = vadd.f32 %v1809, %v1872
      %v1896 = vadd.f32 %v1810, %v1874
      %v1897 = vadd.f32 %v1811, %v1877
      %v1898 = vadd.f32 %v1812, %v1879
      %v1899 = vadd.f32 %v1813, %v1882
      %v1900 = vadd.f32 %v1814, %v1884
      %v1901 = vperm.slane %v860, 3
      %v1902 = vunpack.c.l.bf16 %v1901
      %v1903 = vmul.f32 %v745, %v1902
      %v1904 = vmul.f32 %v746, %v1902
      %v1905 = vmul.f32 %v1020, %v1902
      %v1906 = vmul.f32 %v784, %v1902
      %v1907 = vmul.f32 %v785, %v1902
      %v1908 = vmul.f32 %v1108, %v1902
      %v1909 = vmul.f32 %v823, %v1902
      %v1910 = vmul.f32 %v824, %v1902
      %v1911 = vmul.f32 %v1198, %v1902
      %v1912 = vmul.f32 %v863, %v1902
      %v1913 = vmul.f32 %v864, %v1902
      %v1914 = vmul.f32 %v1287, %v1902
      %v1915 = vpack.c.bf16 %v1903, %v1903
      %v1916 = vpack.c.bf16 %v1904, %v1904
      %v1917 = vpack.c.bf16 %v1905, %v1905
      %v1918 = vpack.c.bf16 %v1906, %v1906
      %v1919 = vpack.c.bf16 %v1907, %v1907
      %v1920 = vpack.c.bf16 %v1908, %v1908
      %v1921 = vpack.c.bf16 %v1909, %v1909
      %v1922 = vpack.c.bf16 %v1910, %v1910
      %v1923 = vpack.c.bf16 %v1911, %v1911
      %v1924 = vpack.c.bf16 %v1912, %v1912
      %v1925 = vpack.c.bf16 %v1913, %v1913
      %v1926 = vpack.c.bf16 %v1914, %v1914
      %v1927 = vunpack.c.l.bf16 %v1915
      %v1928 = vunpack.c.l.bf16 %v1916
      %v1929 = vunpack.c.l.bf16 %v1917
      %v1930 = vunpack.c.l.bf16 %v1918
      %v1931 = vunpack.c.l.bf16 %v1919
      %v1932 = vunpack.c.l.bf16 %v1920
      %v1933 = vunpack.c.l.bf16 %v1921
      %v1934 = vunpack.c.l.bf16 %v1922
      %v1935 = vunpack.c.l.bf16 %v1923
      %v1936 = vunpack.c.l.bf16 %v1924
      %v1937 = vunpack.c.l.bf16 %v1925
      %v1938 = vunpack.c.l.bf16 %v1926
      %v1951 = vrot.slane %v1927, 2
      %v1952 = vrot.slane %v1928, 2
      %v1953 = vsel %vm1692, %v1951, %v1952
      %v1954 = vrot.slane %v1929, 2
      %v1955 = vsel %vm1692, %v1952, %v1954
      %v1956 = vrot.slane %v1930, 2
      %v1957 = vrot.slane %v1931, 2
      %v1958 = vsel %vm1692, %v1956, %v1957
      %v1959 = vrot.slane %v1932, 2
      %v1960 = vsel %vm1692, %v1957, %v1959
      %v1961 = vrot.slane %v1933, 2
      %v1962 = vrot.slane %v1934, 2
      %v1963 = vsel %vm1692, %v1961, %v1962
      %v1964 = vrot.slane %v1935, 2
      %v1965 = vsel %vm1692, %v1962, %v1964
      %v1966 = vrot.slane %v1936, 2
      %v1967 = vrot.slane %v1937, 2
      %v1968 = vsel %vm1692, %v1966, %v1967
      %v1969 = vrot.slane %v1938, 2
      %v1970 = vsel %vm1692, %v1967, %v1969
      %v1979 = vadd.f32 %v1893, %v1953
      %v1980 = vadd.f32 %v1894, %v1955
      %v1981 = vadd.f32 %v1895, %v1958
      %v1982 = vadd.f32 %v1896, %v1960
      %v1983 = vadd.f32 %v1897, %v1963
      %v1984 = vadd.f32 %v1898, %v1965
      %v1985 = vadd.f32 %v1899, %v1968
      %v1986 = vadd.f32 %v1900, %v1970
      %v1987 = vperm.slane %v899, 3
      %v1988 = vunpack.c.l.bf16 %v1987
      %v1989 = vmul.f32 %v784, %v1988
      %v1990 = vmul.f32 %v785, %v1988
      %v1991 = vmul.f32 %v1108, %v1988
      %v1992 = vmul.f32 %v823, %v1988
      %v1993 = vmul.f32 %v824, %v1988
      %v1994 = vmul.f32 %v1198, %v1988
      %v1995 = vmul.f32 %v863, %v1988
      %v1996 = vmul.f32 %v864, %v1988
      %v1997 = vmul.f32 %v1287, %v1988
      %v1998 = vmul.f32 %v902, %v1988
      %v1999 = vmul.f32 %v903, %v1988
      %v2000 = vmul.f32 %v1377, %v1988
      %v2001 = vpack.c.bf16 %v1989, %v1989
      %v2002 = vpack.c.bf16 %v1990, %v1990
      %v2003 = vpack.c.bf16 %v1991, %v1991
      %v2004 = vpack.c.bf16 %v1992, %v1992
      %v2005 = vpack.c.bf16 %v1993, %v1993
      %v2006 = vpack.c.bf16 %v1994, %v1994
      %v2007 = vpack.c.bf16 %v1995, %v1995
      %v2008 = vpack.c.bf16 %v1996, %v1996
      %v2009 = vpack.c.bf16 %v1997, %v1997
      %v2010 = vpack.c.bf16 %v1998, %v1998
      %v2011 = vpack.c.bf16 %v1999, %v1999
      %v2012 = vpack.c.bf16 %v2000, %v2000
      %v2013 = vunpack.c.l.bf16 %v2001
      %v2014 = vunpack.c.l.bf16 %v2002
      %v2015 = vunpack.c.l.bf16 %v2003
      %v2016 = vunpack.c.l.bf16 %v2004
      %v2017 = vunpack.c.l.bf16 %v2005
      %v2018 = vunpack.c.l.bf16 %v2006
      %v2019 = vunpack.c.l.bf16 %v2007
      %v2020 = vunpack.c.l.bf16 %v2008
      %v2021 = vunpack.c.l.bf16 %v2009
      %v2022 = vunpack.c.l.bf16 %v2010
      %v2023 = vunpack.c.l.bf16 %v2011
      %v2024 = vunpack.c.l.bf16 %v2012
      %v2037 = vrot.slane %v2013, 2
      %v2038 = vrot.slane %v2014, 2
      %v2039 = vsel %vm1692, %v2037, %v2038
      %v2040 = vrot.slane %v2015, 2
      %v2041 = vsel %vm1692, %v2038, %v2040
      %v2042 = vrot.slane %v2016, 2
      %v2043 = vrot.slane %v2017, 2
      %v2044 = vsel %vm1692, %v2042, %v2043
      %v2045 = vrot.slane %v2018, 2
      %v2046 = vsel %vm1692, %v2043, %v2045
      %v2047 = vrot.slane %v2019, 2
      %v2048 = vrot.slane %v2020, 2
      %v2049 = vsel %vm1692, %v2047, %v2048
      %v2050 = vrot.slane %v2021, 2
      %v2051 = vsel %vm1692, %v2048, %v2050
      %v2052 = vrot.slane %v2022, 2
      %v2053 = vrot.slane %v2023, 2
      %v2054 = vsel %vm1692, %v2052, %v2053
      %v2055 = vrot.slane %v2024, 2
      %v2056 = vsel %vm1692, %v2053, %v2055
      %v2065 = vadd.f32 %v1979, %v2039
      %v2066 = vadd.f32 %v1980, %v2041
      %v2067 = vadd.f32 %v1981, %v2044
      %v2068 = vadd.f32 %v1982, %v2046
      %v2069 = vadd.f32 %v1983, %v2049
      %v2070 = vadd.f32 %v1984, %v2051
      %v2071 = vadd.f32 %v1985, %v2054
      %v2072 = vadd.f32 %v1986, %v2056
      %v2073 = vperm.slane %v939, 2
      %v2074 = vunpack.c.l.bf16 %v2073
      %v2075 = vmul.f32 %v823, %v2074
      %v2076 = vmul.f32 %v824, %v2074
      %v2077 = vmul.f32 %v1198, %v2074
      %v2078 = vmul.f32 %v863, %v2074
      %v2079 = vmul.f32 %v864, %v2074
      %v2080 = vmul.f32 %v1287, %v2074
      %v2081 = vmul.f32 %v902, %v2074
      %v2082 = vmul.f32 %v903, %v2074
      %v2083 = vmul.f32 %v1377, %v2074
      %v2084 = vmul.f32 %v942, %v2074
      %v2085 = vmul.f32 %v943, %v2074
      %v2086 = vmul.f32 %v1466, %v2074
      %v2087 = vpack.c.bf16 %v2075, %v2075
      %v2088 = vpack.c.bf16 %v2076, %v2076
      %v2089 = vpack.c.bf16 %v2077, %v2077
      %v2090 = vpack.c.bf16 %v2078, %v2078
      %v2091 = vpack.c.bf16 %v2079, %v2079
      %v2092 = vpack.c.bf16 %v2080, %v2080
      %v2093 = vpack.c.bf16 %v2081, %v2081
      %v2094 = vpack.c.bf16 %v2082, %v2082
      %v2095 = vpack.c.bf16 %v2083, %v2083
      %v2096 = vpack.c.bf16 %v2084, %v2084
      %v2097 = vpack.c.bf16 %v2085, %v2085
      %v2098 = vpack.c.bf16 %v2086, %v2086
      %v2099 = vunpack.c.l.bf16 %v2087
      %v2100 = vunpack.c.l.bf16 %v2088
      %v2101 = vunpack.c.l.bf16 %v2089
      %v2102 = vunpack.c.l.bf16 %v2090
      %v2103 = vunpack.c.l.bf16 %v2091
      %v2104 = vunpack.c.l.bf16 %v2092
      %v2105 = vunpack.c.l.bf16 %v2093
      %v2106 = vunpack.c.l.bf16 %v2094
      %v2107 = vunpack.c.l.bf16 %v2095
      %v2108 = vunpack.c.l.bf16 %v2096
      %v2109 = vunpack.c.l.bf16 %v2097
      %v2110 = vunpack.c.l.bf16 %v2098
      %v2123 = vrot.slane %v2099, 2
      %v2124 = vrot.slane %v2100, 2
      %v2125 = vsel %vm1692, %v2123, %v2124
      %v2126 = vrot.slane %v2101, 2
      %v2127 = vsel %vm1692, %v2124, %v2126
      %v2128 = vrot.slane %v2102, 2
      %v2129 = vrot.slane %v2103, 2
      %v2130 = vsel %vm1692, %v2128, %v2129
      %v2131 = vrot.slane %v2104, 2
      %v2132 = vsel %vm1692, %v2129, %v2131
      %v2133 = vrot.slane %v2105, 2
      %v2134 = vrot.slane %v2106, 2
      %v2135 = vsel %vm1692, %v2133, %v2134
      %v2136 = vrot.slane %v2107, 2
      %v2137 = vsel %vm1692, %v2134, %v2136
      %v2138 = vrot.slane %v2108, 2
      %v2139 = vrot.slane %v2109, 2
      %v2140 = vsel %vm1692, %v2138, %v2139
      %v2141 = vrot.slane %v2110, 2
      %v2142 = vsel %vm1692, %v2139, %v2141
      %v2151 = vadd.f32 %v2065, %v2125
      %v2152 = vadd.f32 %v2066, %v2127
      %v2153 = vadd.f32 %v2067, %v2130
      %v2154 = vadd.f32 %v2068, %v2132
      %v2155 = vadd.f32 %v2069, %v2135
      %v2156 = vadd.f32 %v2070, %v2137
      %v2157 = vadd.f32 %v2071, %v2140
      %v2158 = vadd.f32 %v2072, %v2142
      %v2159 = vperm.slane %v978, 2
      %v2160 = vunpack.c.l.bf16 %v2159
      %v2161 = vmul.f32 %v863, %v2160
      %v2162 = vmul.f32 %v864, %v2160
      %v2163 = vmul.f32 %v1287, %v2160
      %v2164 = vmul.f32 %v902, %v2160
      %v2165 = vmul.f32 %v903, %v2160
      %v2166 = vmul.f32 %v1377, %v2160
      %v2167 = vmul.f32 %v942, %v2160
      %v2168 = vmul.f32 %v943, %v2160
      %v2169 = vmul.f32 %v1466, %v2160
      %v2170 = vmul.f32 %v981, %v2160
      %v2171 = vmul.f32 %v982, %v2160
      %v2172 = vmul.f32 %v1556, %v2160
      %v2173 = vpack.c.bf16 %v2161, %v2161
      %v2174 = vpack.c.bf16 %v2162, %v2162
      %v2175 = vpack.c.bf16 %v2163, %v2163
      %v2176 = vpack.c.bf16 %v2164, %v2164
      %v2177 = vpack.c.bf16 %v2165, %v2165
      %v2178 = vpack.c.bf16 %v2166, %v2166
      %v2179 = vpack.c.bf16 %v2167, %v2167
      %v2180 = vpack.c.bf16 %v2168, %v2168
      %v2181 = vpack.c.bf16 %v2169, %v2169
      %v2182 = vpack.c.bf16 %v2170, %v2170
      %v2183 = vpack.c.bf16 %v2171, %v2171
      %v2184 = vpack.c.bf16 %v2172, %v2172
      %v2185 = vunpack.c.l.bf16 %v2173
      %v2186 = vunpack.c.l.bf16 %v2174
      %v2187 = vunpack.c.l.bf16 %v2175
      %v2188 = vunpack.c.l.bf16 %v2176
      %v2189 = vunpack.c.l.bf16 %v2177
      %v2190 = vunpack.c.l.bf16 %v2178
      %v2191 = vunpack.c.l.bf16 %v2179
      %v2192 = vunpack.c.l.bf16 %v2180
      %v2193 = vunpack.c.l.bf16 %v2181
      %v2194 = vunpack.c.l.bf16 %v2182
      %v2195 = vunpack.c.l.bf16 %v2183
      %v2196 = vunpack.c.l.bf16 %v2184
      %v2209 = vrot.slane %v2185, 2
      %v2210 = vrot.slane %v2186, 2
      %v2211 = vsel %vm1692, %v2209, %v2210
      %v2212 = vrot.slane %v2187, 2
      %v2213 = vsel %vm1692, %v2210, %v2212
      %v2214 = vrot.slane %v2188, 2
      %v2215 = vrot.slane %v2189, 2
      %v2216 = vsel %vm1692, %v2214, %v2215
      %v2217 = vrot.slane %v2190, 2
      %v2218 = vsel %vm1692, %v2215, %v2217
      %v2219 = vrot.slane %v2191, 2
      %v2220 = vrot.slane %v2192, 2
      %v2221 = vsel %vm1692, %v2219, %v2220
      %v2222 = vrot.slane %v2193, 2
      %v2223 = vsel %vm1692, %v2220, %v2222
      %v2224 = vrot.slane %v2194, 2
      %v2225 = vrot.slane %v2195, 2
      %v2226 = vsel %vm1692, %v2224, %v2225
      %v2227 = vrot.slane %v2196, 2
      %v2228 = vsel %vm1692, %v2225, %v2227
      %v2237 = vadd.f32 %v2151, %v2211
      %v2238 = vadd.f32 %v2152, %v2213
      %v2239 = vadd.f32 %v2153, %v2216
      %v2240 = vadd.f32 %v2154, %v2218
      %v2241 = vadd.f32 %v2155, %v2221
      %v2242 = vadd.f32 %v2156, %v2223
      %v2243 = vadd.f32 %v2157, %v2226
      %v2244 = vadd.f32 %v2158, %v2228
      %v2245 = vperm.slane %v781, 1
      %v2246 = vunpack.c.l.bf16 %v545
      %v2247 = vunpack.c.l.bf16 %v546
      %v2248 = vunpack.c.l.bf16 %v547
      %v2249 = vunpack.c.l.bf16 %v548
      %v2250 = vunpack.c.l.bf16 %v549
      %v2251 = vunpack.c.l.bf16 %v550
      %v2252 = vunpack.c.l.bf16 %v551
      %v2253 = vunpack.c.l.bf16 %v552
      %v2254 = vunpack.c.l.bf16 %v2245
      %v2255 = vmul.f32 %v2246, %v2254
      %v2256 = vmul.f32 %v2247, %v2254
      %v2257 = vmul.f32 %v2248, %v2254
      %v2258 = vmul.f32 %v2249, %v2254
      %v2259 = vmul.f32 %v2250, %v2254
      %v2260 = vmul.f32 %v2251, %v2254
      %v2261 = vmul.f32 %v2252, %v2254
      %v2262 = vmul.f32 %v2253, %v2254
      %v2263 = vpack.c.bf16 %v2255, %v2255
      %v2264 = vpack.c.bf16 %v2256, %v2256
      %v2265 = vpack.c.bf16 %v2257, %v2257
      %v2266 = vpack.c.bf16 %v2258, %v2258
      %v2267 = vpack.c.bf16 %v2259, %v2259
      %v2268 = vpack.c.bf16 %v2260, %v2260
      %v2269 = vpack.c.bf16 %v2261, %v2261
      %v2270 = vpack.c.bf16 %v2262, %v2262
      %v2271 = vunpack.c.l.bf16 %v2263
      %v2272 = vunpack.c.l.bf16 %v2264
      %v2273 = vunpack.c.l.bf16 %v2265
      %v2274 = vunpack.c.l.bf16 %v2266
      %v2275 = vunpack.c.l.bf16 %v2267
      %v2276 = vunpack.c.l.bf16 %v2268
      %v2277 = vunpack.c.l.bf16 %v2269
      %v2278 = vunpack.c.l.bf16 %v2270
      %v2279 = vadd.f32 %v2237, %v2271
      %v2280 = vadd.f32 %v2238, %v2272
      %v2281 = vadd.f32 %v2239, %v2273
      %v2282 = vadd.f32 %v2240, %v2274
      %v2283 = vadd.f32 %v2241, %v2275
      %v2284 = vadd.f32 %v2242, %v2276
      %v2285 = vadd.f32 %v2243, %v2277
      %v2286 = vadd.f32 %v2244, %v2278
      %v2287 = vperm.slane %v820, 1
      %v2288 = vunpack.c.l.bf16 %v553
      %v2289 = vunpack.c.l.bf16 %v554
      %v2290 = vunpack.c.l.bf16 %v2287
      %v2291 = vmul.f32 %v2248, %v2290
      %v2292 = vmul.f32 %v2249, %v2290
      %v2293 = vmul.f32 %v2250, %v2290
      %v2294 = vmul.f32 %v2251, %v2290
      %v2295 = vmul.f32 %v2252, %v2290
      %v2296 = vmul.f32 %v2253, %v2290
      %v2297 = vmul.f32 %v2288, %v2290
      %v2298 = vmul.f32 %v2289, %v2290
      %v2299 = vpack.c.bf16 %v2291, %v2291
      %v2300 = vpack.c.bf16 %v2292, %v2292
      %v2301 = vpack.c.bf16 %v2293, %v2293
      %v2302 = vpack.c.bf16 %v2294, %v2294
      %v2303 = vpack.c.bf16 %v2295, %v2295
      %v2304 = vpack.c.bf16 %v2296, %v2296
      %v2305 = vpack.c.bf16 %v2297, %v2297
      %v2306 = vpack.c.bf16 %v2298, %v2298
      %v2307 = vunpack.c.l.bf16 %v2299
      %v2308 = vunpack.c.l.bf16 %v2300
      %v2309 = vunpack.c.l.bf16 %v2301
      %v2310 = vunpack.c.l.bf16 %v2302
      %v2311 = vunpack.c.l.bf16 %v2303
      %v2312 = vunpack.c.l.bf16 %v2304
      %v2313 = vunpack.c.l.bf16 %v2305
      %v2314 = vunpack.c.l.bf16 %v2306
      %v2315 = vadd.f32 %v2279, %v2307
      %v2316 = vadd.f32 %v2280, %v2308
      %v2317 = vadd.f32 %v2281, %v2309
      %v2318 = vadd.f32 %v2282, %v2310
      %v2319 = vadd.f32 %v2283, %v2311
      %v2320 = vadd.f32 %v2284, %v2312
      %v2321 = vadd.f32 %v2285, %v2313
      %v2322 = vadd.f32 %v2286, %v2314
      %v2323 = vperm.slane %v860, 0
      %v2324 = vunpack.c.l.bf16 %v555
      %v2325 = vunpack.c.l.bf16 %v556
      %v2326 = vunpack.c.l.bf16 %v2323
      %v2327 = vmul.f32 %v2250, %v2326
      %v2328 = vmul.f32 %v2251, %v2326
      %v2329 = vmul.f32 %v2252, %v2326
      %v2330 = vmul.f32 %v2253, %v2326
      %v2331 = vmul.f32 %v2288, %v2326
      %v2332 = vmul.f32 %v2289, %v2326
      %v2333 = vmul.f32 %v2324, %v2326
      %v2334 = vmul.f32 %v2325, %v2326
      %v2335 = vpack.c.bf16 %v2327, %v2327
      %v2336 = vpack.c.bf16 %v2328, %v2328
      %v2337 = vpack.c.bf16 %v2329, %v2329
      %v2338 = vpack.c.bf16 %v2330, %v2330
      %v2339 = vpack.c.bf16 %v2331, %v2331
      %v2340 = vpack.c.bf16 %v2332, %v2332
      %v2341 = vpack.c.bf16 %v2333, %v2333
      %v2342 = vpack.c.bf16 %v2334, %v2334
      %v2343 = vunpack.c.l.bf16 %v2335
      %v2344 = vunpack.c.l.bf16 %v2336
      %v2345 = vunpack.c.l.bf16 %v2337
      %v2346 = vunpack.c.l.bf16 %v2338
      %v2347 = vunpack.c.l.bf16 %v2339
      %v2348 = vunpack.c.l.bf16 %v2340
      %v2349 = vunpack.c.l.bf16 %v2341
      %v2350 = vunpack.c.l.bf16 %v2342
      %v2351 = vadd.f32 %v2315, %v2343
      %v2352 = vadd.f32 %v2316, %v2344
      %v2353 = vadd.f32 %v2317, %v2345
      %v2354 = vadd.f32 %v2318, %v2346
      %v2355 = vadd.f32 %v2319, %v2347
      %v2356 = vadd.f32 %v2320, %v2348
      %v2357 = vadd.f32 %v2321, %v2349
      %v2358 = vadd.f32 %v2322, %v2350
      %v2359 = vperm.slane %v899, 0
      %v2360 = vunpack.c.l.bf16 %v557
      %v2361 = vunpack.c.l.bf16 %v558
      %v2362 = vunpack.c.l.bf16 %v2359
      %v2363 = vmul.f32 %v2252, %v2362
      %v2364 = vmul.f32 %v2253, %v2362
      %v2365 = vmul.f32 %v2288, %v2362
      %v2366 = vmul.f32 %v2289, %v2362
      %v2367 = vmul.f32 %v2324, %v2362
      %v2368 = vmul.f32 %v2325, %v2362
      %v2369 = vmul.f32 %v2360, %v2362
      %v2370 = vmul.f32 %v2361, %v2362
      %v2371 = vpack.c.bf16 %v2363, %v2363
      %v2372 = vpack.c.bf16 %v2364, %v2364
      %v2373 = vpack.c.bf16 %v2365, %v2365
      %v2374 = vpack.c.bf16 %v2366, %v2366
      %v2375 = vpack.c.bf16 %v2367, %v2367
      %v2376 = vpack.c.bf16 %v2368, %v2368
      %v2377 = vpack.c.bf16 %v2369, %v2369
      %v2378 = vpack.c.bf16 %v2370, %v2370
      %v2379 = vunpack.c.l.bf16 %v2371
      %v2380 = vunpack.c.l.bf16 %v2372
      %v2381 = vunpack.c.l.bf16 %v2373
      %v2382 = vunpack.c.l.bf16 %v2374
      %v2383 = vunpack.c.l.bf16 %v2375
      %v2384 = vunpack.c.l.bf16 %v2376
      %v2385 = vunpack.c.l.bf16 %v2377
      %v2386 = vunpack.c.l.bf16 %v2378
      %v2387 = vadd.f32 %v2351, %v2379
      %v2388 = vadd.f32 %v2352, %v2380
      %v2389 = vadd.f32 %v2353, %v2381
      %v2390 = vadd.f32 %v2354, %v2382
      %v2391 = vadd.f32 %v2355, %v2383
      %v2392 = vadd.f32 %v2356, %v2384
      %v2393 = vadd.f32 %v2357, %v2385
      %v2394 = vadd.f32 %v2358, %v2386
      %v2395 = vperm.slane %v1374, 3
      %v2396 = vunpack.c.l.bf16 %v559
      %v2397 = vunpack.c.l.bf16 %v560
      %v2398 = vunpack.c.l.bf16 %v2395
      %v2399 = vmul.f32 %v2288, %v2398
      %v2400 = vmul.f32 %v2289, %v2398
      %v2401 = vmul.f32 %v2324, %v2398
      %v2402 = vmul.f32 %v2325, %v2398
      %v2403 = vmul.f32 %v2360, %v2398
      %v2404 = vmul.f32 %v2361, %v2398
      %v2405 = vmul.f32 %v2396, %v2398
      %v2406 = vmul.f32 %v2397, %v2398
      %v2407 = vpack.c.bf16 %v2399, %v2399
      %v2408 = vpack.c.bf16 %v2400, %v2400
      %v2409 = vpack.c.bf16 %v2401, %v2401
      %v2410 = vpack.c.bf16 %v2402, %v2402
      %v2411 = vpack.c.bf16 %v2403, %v2403
      %v2412 = vpack.c.bf16 %v2404, %v2404
      %v2413 = vpack.c.bf16 %v2405, %v2405
      %v2414 = vpack.c.bf16 %v2406, %v2406
      %v2415 = vunpack.c.l.bf16 %v2407
      %v2416 = vunpack.c.l.bf16 %v2408
      %v2417 = vunpack.c.l.bf16 %v2409
      %v2418 = vunpack.c.l.bf16 %v2410
      %v2419 = vunpack.c.l.bf16 %v2411
      %v2420 = vunpack.c.l.bf16 %v2412
      %v2421 = vunpack.c.l.bf16 %v2413
      %v2422 = vunpack.c.l.bf16 %v2414
      %v2423 = vadd.f32 %v2387, %v2415
      %v2424 = vadd.f32 %v2388, %v2416
      %v2425 = vadd.f32 %v2389, %v2417
      %v2426 = vadd.f32 %v2390, %v2418
      %v2427 = vadd.f32 %v2391, %v2419
      %v2428 = vadd.f32 %v2392, %v2420
      %v2429 = vadd.f32 %v2393, %v2421
      %v2430 = vadd.f32 %v2394, %v2422
      %v2431 = vperm.slane %v1463, 3
      %v2432 = vunpack.c.l.bf16 %v561
      %v2433 = vunpack.c.l.bf16 %v562
      %v2434 = vunpack.c.l.bf16 %v2431
      %v2435 = vmul.f32 %v2324, %v2434
      %v2436 = vmul.f32 %v2325, %v2434
      %v2437 = vmul.f32 %v2360, %v2434
      %v2438 = vmul.f32 %v2361, %v2434
      %v2439 = vmul.f32 %v2396, %v2434
      %v2440 = vmul.f32 %v2397, %v2434
      %v2441 = vmul.f32 %v2432, %v2434
      %v2442 = vmul.f32 %v2433, %v2434
      %v2443 = vpack.c.bf16 %v2435, %v2435
      %v2444 = vpack.c.bf16 %v2436, %v2436
      %v2445 = vpack.c.bf16 %v2437, %v2437
      %v2446 = vpack.c.bf16 %v2438, %v2438
      %v2447 = vpack.c.bf16 %v2439, %v2439
      %v2448 = vpack.c.bf16 %v2440, %v2440
      %v2449 = vpack.c.bf16 %v2441, %v2441
      %v2450 = vpack.c.bf16 %v2442, %v2442
      %v2451 = vunpack.c.l.bf16 %v2443
      %v2452 = vunpack.c.l.bf16 %v2444
      %v2453 = vunpack.c.l.bf16 %v2445
      %v2454 = vunpack.c.l.bf16 %v2446
      %v2455 = vunpack.c.l.bf16 %v2447
      %v2456 = vunpack.c.l.bf16 %v2448
      %v2457 = vunpack.c.l.bf16 %v2449
      %v2458 = vunpack.c.l.bf16 %v2450
      %v2459 = vadd.f32 %v2423, %v2451
      %v2460 = vadd.f32 %v2424, %v2452
      %v2461 = vadd.f32 %v2425, %v2453
      %v2462 = vadd.f32 %v2426, %v2454
      %v2463 = vadd.f32 %v2427, %v2455
      %v2464 = vadd.f32 %v2428, %v2456
      %v2465 = vadd.f32 %v2429, %v2457
      %v2466 = vadd.f32 %v2430, %v2458
      %v2467 = vperm.slane %v1553, 2
      %v2468 = vunpack.c.l.bf16 %v563
      %v2469 = vunpack.c.l.bf16 %v564
      %v2470 = vunpack.c.l.bf16 %v2467
      %v2471 = vmul.f32 %v2360, %v2470
      %v2472 = vmul.f32 %v2361, %v2470
      %v2473 = vmul.f32 %v2396, %v2470
      %v2474 = vmul.f32 %v2397, %v2470
      %v2475 = vmul.f32 %v2432, %v2470
      %v2476 = vmul.f32 %v2433, %v2470
      %v2477 = vmul.f32 %v2468, %v2470
      %v2478 = vmul.f32 %v2469, %v2470
      %v2479 = vpack.c.bf16 %v2471, %v2471
      %v2480 = vpack.c.bf16 %v2472, %v2472
      %v2481 = vpack.c.bf16 %v2473, %v2473
      %v2482 = vpack.c.bf16 %v2474, %v2474
      %v2483 = vpack.c.bf16 %v2475, %v2475
      %v2484 = vpack.c.bf16 %v2476, %v2476
      %v2485 = vpack.c.bf16 %v2477, %v2477
      %v2486 = vpack.c.bf16 %v2478, %v2478
      %v2487 = vunpack.c.l.bf16 %v2479
      %v2488 = vunpack.c.l.bf16 %v2480
      %v2489 = vunpack.c.l.bf16 %v2481
      %v2490 = vunpack.c.l.bf16 %v2482
      %v2491 = vunpack.c.l.bf16 %v2483
      %v2492 = vunpack.c.l.bf16 %v2484
      %v2493 = vunpack.c.l.bf16 %v2485
      %v2494 = vunpack.c.l.bf16 %v2486
      %v2495 = vadd.f32 %v2459, %v2487
      %v2496 = vadd.f32 %v2460, %v2488
      %v2497 = vadd.f32 %v2461, %v2489
      %v2498 = vadd.f32 %v2462, %v2490
      %v2499 = vadd.f32 %v2463, %v2491
      %v2500 = vadd.f32 %v2464, %v2492
      %v2501 = vadd.f32 %v2465, %v2493
      %v2502 = vadd.f32 %v2466, %v2494
      %v2503 = vperm.slane %v736, 2
      %v2504 = vunpack.c.l.bf16 %v2503
      %v2505 = vmul.f32 %v739, %v2504
      %v2506 = vmul.f32 %v740, %v2504
      %v2507 = vmul.f32 %v1017, %v2504
      %v2508 = vmul.f32 %v741, %v2504
      %v2509 = vmul.f32 %v742, %v2504
      %v2510 = vmul.f32 %v1018, %v2504
      %v2511 = vmul.f32 %v743, %v2504
      %v2512 = vmul.f32 %v744, %v2504
      %v2513 = vmul.f32 %v1019, %v2504
      %v2514 = vmul.f32 %v745, %v2504
      %v2515 = vmul.f32 %v746, %v2504
      %v2516 = vmul.f32 %v1020, %v2504
      %v2517 = vpack.c.bf16 %v2505, %v2505
      %v2518 = vpack.c.bf16 %v2506, %v2506
      %v2519 = vpack.c.bf16 %v2507, %v2507
      %v2520 = vpack.c.bf16 %v2508, %v2508
      %v2521 = vpack.c.bf16 %v2509, %v2509
      %v2522 = vpack.c.bf16 %v2510, %v2510
      %v2523 = vpack.c.bf16 %v2511, %v2511
      %v2524 = vpack.c.bf16 %v2512, %v2512
      %v2525 = vpack.c.bf16 %v2513, %v2513
      %v2526 = vpack.c.bf16 %v2514, %v2514
      %v2527 = vpack.c.bf16 %v2515, %v2515
      %v2528 = vpack.c.bf16 %v2516, %v2516
      %v2529 = vunpack.c.l.bf16 %v2517
      %v2530 = vunpack.c.l.bf16 %v2518
      %v2531 = vunpack.c.l.bf16 %v2519
      %v2532 = vunpack.c.l.bf16 %v2520
      %v2533 = vunpack.c.l.bf16 %v2521
      %v2534 = vunpack.c.l.bf16 %v2522
      %v2535 = vunpack.c.l.bf16 %v2523
      %v2536 = vunpack.c.l.bf16 %v2524
      %v2537 = vunpack.c.l.bf16 %v2525
      %v2538 = vunpack.c.l.bf16 %v2526
      %v2539 = vunpack.c.l.bf16 %v2527
      %v2540 = vunpack.c.l.bf16 %v2528
      %vm2553 = vcmask 1043456
      %v2554 = vrot.slane %v2529, 4
      %v2555 = vrot.slane %v2530, 4
      %v2556 = vsel %vm2553, %v2554, %v2555
      %v2557 = vrot.slane %v2531, 4
      %v2558 = vsel %vm2553, %v2555, %v2557
      %v2559 = vrot.slane %v2532, 4
      %v2560 = vrot.slane %v2533, 4
      %v2561 = vsel %vm2553, %v2559, %v2560
      %v2562 = vrot.slane %v2534, 4
      %v2563 = vsel %vm2553, %v2560, %v2562
      %v2564 = vrot.slane %v2535, 4
      %v2565 = vrot.slane %v2536, 4
      %v2566 = vsel %vm2553, %v2564, %v2565
      %v2567 = vrot.slane %v2537, 4
      %v2568 = vsel %vm2553, %v2565, %v2567
      %v2569 = vrot.slane %v2538, 4
      %v2570 = vrot.slane %v2539, 4
      %v2571 = vsel %vm2553, %v2569, %v2570
      %v2572 = vrot.slane %v2540, 4
      %v2573 = vsel %vm2553, %v2570, %v2572
      %v2582 = vadd.f32 %v2495, %v2556
      %v2583 = vadd.f32 %v2496, %v2558
      %v2584 = vadd.f32 %v2497, %v2561
      %v2585 = vadd.f32 %v2498, %v2563
      %v2586 = vadd.f32 %v2499, %v2566
      %v2587 = vadd.f32 %v2500, %v2568
      %v2588 = vadd.f32 %v2501, %v2571
      %v2589 = vadd.f32 %v2502, %v2573
      %v2590 = vperm.slane %v1195, 1
      %v2591 = vunpack.c.l.bf16 %v2590
      %v2592 = vmul.f32 %v741, %v2591
      %v2593 = vmul.f32 %v742, %v2591
      %v2594 = vmul.f32 %v1018, %v2591
      %v2595 = vmul.f32 %v743, %v2591
      %v2596 = vmul.f32 %v744, %v2591
      %v2597 = vmul.f32 %v1019, %v2591
      %v2598 = vmul.f32 %v745, %v2591
      %v2599 = vmul.f32 %v746, %v2591
      %v2600 = vmul.f32 %v1020, %v2591
      %v2601 = vmul.f32 %v784, %v2591
      %v2602 = vmul.f32 %v785, %v2591
      %v2603 = vmul.f32 %v1108, %v2591
      %v2604 = vpack.c.bf16 %v2592, %v2592
      %v2605 = vpack.c.bf16 %v2593, %v2593
      %v2606 = vpack.c.bf16 %v2594, %v2594
      %v2607 = vpack.c.bf16 %v2595, %v2595
      %v2608 = vpack.c.bf16 %v2596, %v2596
      %v2609 = vpack.c.bf16 %v2597, %v2597
      %v2610 = vpack.c.bf16 %v2598, %v2598
      %v2611 = vpack.c.bf16 %v2599, %v2599
      %v2612 = vpack.c.bf16 %v2600, %v2600
      %v2613 = vpack.c.bf16 %v2601, %v2601
      %v2614 = vpack.c.bf16 %v2602, %v2602
      %v2615 = vpack.c.bf16 %v2603, %v2603
      %v2616 = vunpack.c.l.bf16 %v2604
      %v2617 = vunpack.c.l.bf16 %v2605
      %v2618 = vunpack.c.l.bf16 %v2606
      %v2619 = vunpack.c.l.bf16 %v2607
      %v2620 = vunpack.c.l.bf16 %v2608
      %v2621 = vunpack.c.l.bf16 %v2609
      %v2622 = vunpack.c.l.bf16 %v2610
      %v2623 = vunpack.c.l.bf16 %v2611
      %v2624 = vunpack.c.l.bf16 %v2612
      %v2625 = vunpack.c.l.bf16 %v2613
      %v2626 = vunpack.c.l.bf16 %v2614
      %v2627 = vunpack.c.l.bf16 %v2615
      %v2640 = vrot.slane %v2616, 4
      %v2641 = vrot.slane %v2617, 4
      %v2642 = vsel %vm2553, %v2640, %v2641
      %v2643 = vrot.slane %v2618, 4
      %v2644 = vsel %vm2553, %v2641, %v2643
      %v2645 = vrot.slane %v2619, 4
      %v2646 = vrot.slane %v2620, 4
      %v2647 = vsel %vm2553, %v2645, %v2646
      %v2648 = vrot.slane %v2621, 4
      %v2649 = vsel %vm2553, %v2646, %v2648
      %v2650 = vrot.slane %v2622, 4
      %v2651 = vrot.slane %v2623, 4
      %v2652 = vsel %vm2553, %v2650, %v2651
      %v2653 = vrot.slane %v2624, 4
      %v2654 = vsel %vm2553, %v2651, %v2653
      %v2655 = vrot.slane %v2625, 4
      %v2656 = vrot.slane %v2626, 4
      %v2657 = vsel %vm2553, %v2655, %v2656
      %v2658 = vrot.slane %v2627, 4
      %v2659 = vsel %vm2553, %v2656, %v2658
      %v2668 = vadd.f32 %v2582, %v2642
      %v2669 = vadd.f32 %v2583, %v2644
      %v2670 = vadd.f32 %v2584, %v2647
      %v2671 = vadd.f32 %v2585, %v2649
      %v2672 = vadd.f32 %v2586, %v2652
      %v2673 = vadd.f32 %v2587, %v2654
      %v2674 = vadd.f32 %v2588, %v2657
      %v2675 = vadd.f32 %v2589, %v2659
      %v2676 = vperm.slane %v1284, 1
      %v2677 = vunpack.c.l.bf16 %v2676
      %v2678 = vmul.f32 %v743, %v2677
      %v2679 = vmul.f32 %v744, %v2677
      %v2680 = vmul.f32 %v1019, %v2677
      %v2681 = vmul.f32 %v745, %v2677
      %v2682 = vmul.f32 %v746, %v2677
      %v2683 = vmul.f32 %v1020, %v2677
      %v2684 = vmul.f32 %v784, %v2677
      %v2685 = vmul.f32 %v785, %v2677
      %v2686 = vmul.f32 %v1108, %v2677
      %v2687 = vmul.f32 %v823, %v2677
      %v2688 = vmul.f32 %v824, %v2677
      %v2689 = vmul.f32 %v1198, %v2677
      %v2690 = vpack.c.bf16 %v2678, %v2678
      %v2691 = vpack.c.bf16 %v2679, %v2679
      %v2692 = vpack.c.bf16 %v2680, %v2680
      %v2693 = vpack.c.bf16 %v2681, %v2681
      %v2694 = vpack.c.bf16 %v2682, %v2682
      %v2695 = vpack.c.bf16 %v2683, %v2683
      %v2696 = vpack.c.bf16 %v2684, %v2684
      %v2697 = vpack.c.bf16 %v2685, %v2685
      %v2698 = vpack.c.bf16 %v2686, %v2686
      %v2699 = vpack.c.bf16 %v2687, %v2687
      %v2700 = vpack.c.bf16 %v2688, %v2688
      %v2701 = vpack.c.bf16 %v2689, %v2689
      %v2702 = vunpack.c.l.bf16 %v2690
      %v2703 = vunpack.c.l.bf16 %v2691
      %v2704 = vunpack.c.l.bf16 %v2692
      %v2705 = vunpack.c.l.bf16 %v2693
      %v2706 = vunpack.c.l.bf16 %v2694
      %v2707 = vunpack.c.l.bf16 %v2695
      %v2708 = vunpack.c.l.bf16 %v2696
      %v2709 = vunpack.c.l.bf16 %v2697
      %v2710 = vunpack.c.l.bf16 %v2698
      %v2711 = vunpack.c.l.bf16 %v2699
      %v2712 = vunpack.c.l.bf16 %v2700
      %v2713 = vunpack.c.l.bf16 %v2701
      %v2726 = vrot.slane %v2702, 4
      %v2727 = vrot.slane %v2703, 4
      %v2728 = vsel %vm2553, %v2726, %v2727
      %v2729 = vrot.slane %v2704, 4
      %v2730 = vsel %vm2553, %v2727, %v2729
      %v2731 = vrot.slane %v2705, 4
      %v2732 = vrot.slane %v2706, 4
      %v2733 = vsel %vm2553, %v2731, %v2732
      %v2734 = vrot.slane %v2707, 4
      %v2735 = vsel %vm2553, %v2732, %v2734
      %v2736 = vrot.slane %v2708, 4
      %v2737 = vrot.slane %v2709, 4
      %v2738 = vsel %vm2553, %v2736, %v2737
      %v2739 = vrot.slane %v2710, 4
      %v2740 = vsel %vm2553, %v2737, %v2739
      %v2741 = vrot.slane %v2711, 4
      %v2742 = vrot.slane %v2712, 4
      %v2743 = vsel %vm2553, %v2741, %v2742
      %v2744 = vrot.slane %v2713, 4
      %v2745 = vsel %vm2553, %v2742, %v2744
      %v2754 = vadd.f32 %v2668, %v2728
      %v2755 = vadd.f32 %v2669, %v2730
      %v2756 = vadd.f32 %v2670, %v2733
      %v2757 = vadd.f32 %v2671, %v2735
      %v2758 = vadd.f32 %v2672, %v2738
      %v2759 = vadd.f32 %v2673, %v2740
      %v2760 = vadd.f32 %v2674, %v2743
      %v2761 = vadd.f32 %v2675, %v2745
      %v2762 = vperm.slane %v1374, 0
      %v2763 = vunpack.c.l.bf16 %v2762
      %v2764 = vmul.f32 %v745, %v2763
      %v2765 = vmul.f32 %v746, %v2763
      %v2766 = vmul.f32 %v1020, %v2763
      %v2767 = vmul.f32 %v784, %v2763
      %v2768 = vmul.f32 %v785, %v2763
      %v2769 = vmul.f32 %v1108, %v2763
      %v2770 = vmul.f32 %v823, %v2763
      %v2771 = vmul.f32 %v824, %v2763
      %v2772 = vmul.f32 %v1198, %v2763
      %v2773 = vmul.f32 %v863, %v2763
      %v2774 = vmul.f32 %v864, %v2763
      %v2775 = vmul.f32 %v1287, %v2763
      %v2776 = vpack.c.bf16 %v2764, %v2764
      %v2777 = vpack.c.bf16 %v2765, %v2765
      %v2778 = vpack.c.bf16 %v2766, %v2766
      %v2779 = vpack.c.bf16 %v2767, %v2767
      %v2780 = vpack.c.bf16 %v2768, %v2768
      %v2781 = vpack.c.bf16 %v2769, %v2769
      %v2782 = vpack.c.bf16 %v2770, %v2770
      %v2783 = vpack.c.bf16 %v2771, %v2771
      %v2784 = vpack.c.bf16 %v2772, %v2772
      %v2785 = vpack.c.bf16 %v2773, %v2773
      %v2786 = vpack.c.bf16 %v2774, %v2774
      %v2787 = vpack.c.bf16 %v2775, %v2775
      %v2788 = vunpack.c.l.bf16 %v2776
      %v2789 = vunpack.c.l.bf16 %v2777
      %v2790 = vunpack.c.l.bf16 %v2778
      %v2791 = vunpack.c.l.bf16 %v2779
      %v2792 = vunpack.c.l.bf16 %v2780
      %v2793 = vunpack.c.l.bf16 %v2781
      %v2794 = vunpack.c.l.bf16 %v2782
      %v2795 = vunpack.c.l.bf16 %v2783
      %v2796 = vunpack.c.l.bf16 %v2784
      %v2797 = vunpack.c.l.bf16 %v2785
      %v2798 = vunpack.c.l.bf16 %v2786
      %v2799 = vunpack.c.l.bf16 %v2787
      %v2812 = vrot.slane %v2788, 4
      %v2813 = vrot.slane %v2789, 4
      %v2814 = vsel %vm2553, %v2812, %v2813
      %v2815 = vrot.slane %v2790, 4
      %v2816 = vsel %vm2553, %v2813, %v2815
      %v2817 = vrot.slane %v2791, 4
      %v2818 = vrot.slane %v2792, 4
      %v2819 = vsel %vm2553, %v2817, %v2818
      %v2820 = vrot.slane %v2793, 4
      %v2821 = vsel %vm2553, %v2818, %v2820
      %v2822 = vrot.slane %v2794, 4
      %v2823 = vrot.slane %v2795, 4
      %v2824 = vsel %vm2553, %v2822, %v2823
      %v2825 = vrot.slane %v2796, 4
      %v2826 = vsel %vm2553, %v2823, %v2825
      %v2827 = vrot.slane %v2797, 4
      %v2828 = vrot.slane %v2798, 4
      %v2829 = vsel %vm2553, %v2827, %v2828
      %v2830 = vrot.slane %v2799, 4
      %v2831 = vsel %vm2553, %v2828, %v2830
      %v2840 = vadd.f32 %v2754, %v2814
      %v2841 = vadd.f32 %v2755, %v2816
      %v2842 = vadd.f32 %v2756, %v2819
      %v2843 = vadd.f32 %v2757, %v2821
      %v2844 = vadd.f32 %v2758, %v2824
      %v2845 = vadd.f32 %v2759, %v2826
      %v2846 = vadd.f32 %v2760, %v2829
      %v2847 = vadd.f32 %v2761, %v2831
      %v2848 = vperm.slane %v1463, 0
      %v2849 = vunpack.c.l.bf16 %v2848
      %v2850 = vmul.f32 %v784, %v2849
      %v2851 = vmul.f32 %v785, %v2849
      %v2852 = vmul.f32 %v1108, %v2849
      %v2853 = vmul.f32 %v823, %v2849
      %v2854 = vmul.f32 %v824, %v2849
      %v2855 = vmul.f32 %v1198, %v2849
      %v2856 = vmul.f32 %v863, %v2849
      %v2857 = vmul.f32 %v864, %v2849
      %v2858 = vmul.f32 %v1287, %v2849
      %v2859 = vmul.f32 %v902, %v2849
      %v2860 = vmul.f32 %v903, %v2849
      %v2861 = vmul.f32 %v1377, %v2849
      %v2862 = vpack.c.bf16 %v2850, %v2850
      %v2863 = vpack.c.bf16 %v2851, %v2851
      %v2864 = vpack.c.bf16 %v2852, %v2852
      %v2865 = vpack.c.bf16 %v2853, %v2853
      %v2866 = vpack.c.bf16 %v2854, %v2854
      %v2867 = vpack.c.bf16 %v2855, %v2855
      %v2868 = vpack.c.bf16 %v2856, %v2856
      %v2869 = vpack.c.bf16 %v2857, %v2857
      %v2870 = vpack.c.bf16 %v2858, %v2858
      %v2871 = vpack.c.bf16 %v2859, %v2859
      %v2872 = vpack.c.bf16 %v2860, %v2860
      %v2873 = vpack.c.bf16 %v2861, %v2861
      %v2874 = vunpack.c.l.bf16 %v2862
      %v2875 = vunpack.c.l.bf16 %v2863
      %v2876 = vunpack.c.l.bf16 %v2864
      %v2877 = vunpack.c.l.bf16 %v2865
      %v2878 = vunpack.c.l.bf16 %v2866
      %v2879 = vunpack.c.l.bf16 %v2867
      %v2880 = vunpack.c.l.bf16 %v2868
      %v2881 = vunpack.c.l.bf16 %v2869
      %v2882 = vunpack.c.l.bf16 %v2870
      %v2883 = vunpack.c.l.bf16 %v2871
      %v2884 = vunpack.c.l.bf16 %v2872
      %v2885 = vunpack.c.l.bf16 %v2873
      %v2898 = vrot.slane %v2874, 4
      %v2899 = vrot.slane %v2875, 4
      %v2900 = vsel %vm2553, %v2898, %v2899
      %v2901 = vrot.slane %v2876, 4
      %v2902 = vsel %vm2553, %v2899, %v2901
      %v2903 = vrot.slane %v2877, 4
      %v2904 = vrot.slane %v2878, 4
      %v2905 = vsel %vm2553, %v2903, %v2904
      %v2906 = vrot.slane %v2879, 4
      %v2907 = vsel %vm2553, %v2904, %v2906
      %v2908 = vrot.slane %v2880, 4
      %v2909 = vrot.slane %v2881, 4
      %v2910 = vsel %vm2553, %v2908, %v2909
      %v2911 = vrot.slane %v2882, 4
      %v2912 = vsel %vm2553, %v2909, %v2911
      %v2913 = vrot.slane %v2883, 4
      %v2914 = vrot.slane %v2884, 4
      %v2915 = vsel %vm2553, %v2913, %v2914
      %v2916 = vrot.slane %v2885, 4
      %v2917 = vsel %vm2553, %v2914, %v2916
      %v2926 = vadd.f32 %v2840, %v2900
      %v2927 = vadd.f32 %v2841, %v2902
      %v2928 = vadd.f32 %v2842, %v2905
      %v2929 = vadd.f32 %v2843, %v2907
      %v2930 = vadd.f32 %v2844, %v2910
      %v2931 = vadd.f32 %v2845, %v2912
      %v2932 = vadd.f32 %v2846, %v2915
      %v2933 = vadd.f32 %v2847, %v2917
      %v2934 = vperm.slane %v939, 3
      %v2935 = vunpack.c.l.bf16 %v2934
      %v2936 = vmul.f32 %v823, %v2935
      %v2937 = vmul.f32 %v824, %v2935
      %v2938 = vmul.f32 %v1198, %v2935
      %v2939 = vmul.f32 %v863, %v2935
      %v2940 = vmul.f32 %v864, %v2935
      %v2941 = vmul.f32 %v1287, %v2935
      %v2942 = vmul.f32 %v902, %v2935
      %v2943 = vmul.f32 %v903, %v2935
      %v2944 = vmul.f32 %v1377, %v2935
      %v2945 = vmul.f32 %v942, %v2935
      %v2946 = vmul.f32 %v943, %v2935
      %v2947 = vmul.f32 %v1466, %v2935
      %v2948 = vpack.c.bf16 %v2936, %v2936
      %v2949 = vpack.c.bf16 %v2937, %v2937
      %v2950 = vpack.c.bf16 %v2938, %v2938
      %v2951 = vpack.c.bf16 %v2939, %v2939
      %v2952 = vpack.c.bf16 %v2940, %v2940
      %v2953 = vpack.c.bf16 %v2941, %v2941
      %v2954 = vpack.c.bf16 %v2942, %v2942
      %v2955 = vpack.c.bf16 %v2943, %v2943
      %v2956 = vpack.c.bf16 %v2944, %v2944
      %v2957 = vpack.c.bf16 %v2945, %v2945
      %v2958 = vpack.c.bf16 %v2946, %v2946
      %v2959 = vpack.c.bf16 %v2947, %v2947
      %v2960 = vunpack.c.l.bf16 %v2948
      %v2961 = vunpack.c.l.bf16 %v2949
      %v2962 = vunpack.c.l.bf16 %v2950
      %v2963 = vunpack.c.l.bf16 %v2951
      %v2964 = vunpack.c.l.bf16 %v2952
      %v2965 = vunpack.c.l.bf16 %v2953
      %v2966 = vunpack.c.l.bf16 %v2954
      %v2967 = vunpack.c.l.bf16 %v2955
      %v2968 = vunpack.c.l.bf16 %v2956
      %v2969 = vunpack.c.l.bf16 %v2957
      %v2970 = vunpack.c.l.bf16 %v2958
      %v2971 = vunpack.c.l.bf16 %v2959
      %v2984 = vrot.slane %v2960, 4
      %v2985 = vrot.slane %v2961, 4
      %v2986 = vsel %vm2553, %v2984, %v2985
      %v2987 = vrot.slane %v2962, 4
      %v2988 = vsel %vm2553, %v2985, %v2987
      %v2989 = vrot.slane %v2963, 4
      %v2990 = vrot.slane %v2964, 4
      %v2991 = vsel %vm2553, %v2989, %v2990
      %v2992 = vrot.slane %v2965, 4
      %v2993 = vsel %vm2553, %v2990, %v2992
      %v2994 = vrot.slane %v2966, 4
      %v2995 = vrot.slane %v2967, 4
      %v2996 = vsel %vm2553, %v2994, %v2995
      %v2997 = vrot.slane %v2968, 4
      %v2998 = vsel %vm2553, %v2995, %v2997
      %v2999 = vrot.slane %v2969, 4
      %v3000 = vrot.slane %v2970, 4
      %v3001 = vsel %vm2553, %v2999, %v3000
      %v3002 = vrot.slane %v2971, 4
      %v3003 = vsel %vm2553, %v3000, %v3002
      %v3012 = vadd.f32 %v2926, %v2986
      %v3013 = vadd.f32 %v2927, %v2988
      %v3014 = vadd.f32 %v2928, %v2991
      %v3015 = vadd.f32 %v2929, %v2993
      %v3016 = vadd.f32 %v2930, %v2996
      %v3017 = vadd.f32 %v2931, %v2998
      %v3018 = vadd.f32 %v2932, %v3001
      %v3019 = vadd.f32 %v2933, %v3003
      %v3020 = vperm.slane %v978, 3
      %v3021 = vunpack.c.l.bf16 %v3020
      %v3022 = vmul.f32 %v863, %v3021
      %v3023 = vmul.f32 %v864, %v3021
      %v3024 = vmul.f32 %v1287, %v3021
      %v3025 = vmul.f32 %v902, %v3021
      %v3026 = vmul.f32 %v903, %v3021
      %v3027 = vmul.f32 %v1377, %v3021
      %v3028 = vmul.f32 %v942, %v3021
      %v3029 = vmul.f32 %v943, %v3021
      %v3030 = vmul.f32 %v1466, %v3021
      %v3031 = vmul.f32 %v981, %v3021
      %v3032 = vmul.f32 %v982, %v3021
      %v3033 = vmul.f32 %v1556, %v3021
      %v3034 = vpack.c.bf16 %v3022, %v3022
      %v3035 = vpack.c.bf16 %v3023, %v3023
      %v3036 = vpack.c.bf16 %v3024, %v3024
      %v3037 = vpack.c.bf16 %v3025, %v3025
      %v3038 = vpack.c.bf16 %v3026, %v3026
      %v3039 = vpack.c.bf16 %v3027, %v3027
      %v3040 = vpack.c.bf16 %v3028, %v3028
      %v3041 = vpack.c.bf16 %v3029, %v3029
      %v3042 = vpack.c.bf16 %v3030, %v3030
      %v3043 = vpack.c.bf16 %v3031, %v3031
      %v3044 = vpack.c.bf16 %v3032, %v3032
      %v3045 = vpack.c.bf16 %v3033, %v3033
      %v3046 = vunpack.c.l.bf16 %v3034
      %v3047 = vunpack.c.l.bf16 %v3035
      %v3048 = vunpack.c.l.bf16 %v3036
      %v3049 = vunpack.c.l.bf16 %v3037
      %v3050 = vunpack.c.l.bf16 %v3038
      %v3051 = vunpack.c.l.bf16 %v3039
      %v3052 = vunpack.c.l.bf16 %v3040
      %v3053 = vunpack.c.l.bf16 %v3041
      %v3054 = vunpack.c.l.bf16 %v3042
      %v3055 = vunpack.c.l.bf16 %v3043
      %v3056 = vunpack.c.l.bf16 %v3044
      %v3057 = vunpack.c.l.bf16 %v3045
      %v3070 = vrot.slane %v3046, 4
      %v3071 = vrot.slane %v3047, 4
      %v3072 = vsel %vm2553, %v3070, %v3071
      %v3073 = vrot.slane %v3048, 4
      %v3074 = vsel %vm2553, %v3071, %v3073
      %v3075 = vrot.slane %v3049, 4
      %v3076 = vrot.slane %v3050, 4
      %v3077 = vsel %vm2553, %v3075, %v3076
      %v3078 = vrot.slane %v3051, 4
      %v3079 = vsel %vm2553, %v3076, %v3078
      %v3080 = vrot.slane %v3052, 4
      %v3081 = vrot.slane %v3053, 4
      %v3082 = vsel %vm2553, %v3080, %v3081
      %v3083 = vrot.slane %v3054, 4
      %v3084 = vsel %vm2553, %v3081, %v3083
      %v3085 = vrot.slane %v3055, 4
      %v3086 = vrot.slane %v3056, 4
      %v3087 = vsel %vm2553, %v3085, %v3086
      %v3088 = vrot.slane %v3057, 4
      %v3089 = vsel %vm2553, %v3086, %v3088
      %v3098 = vadd.f32 %v3012, %v3072
      %v3099 = vadd.f32 %v3013, %v3074
      %v3100 = vadd.f32 %v3014, %v3077
      %v3101 = vadd.f32 %v3015, %v3079
      %v3102 = vadd.f32 %v3016, %v3082
      %v3103 = vadd.f32 %v3017, %v3084
      %v3104 = vadd.f32 %v3018, %v3087
      %v3105 = vadd.f32 %v3019, %v3089
      %v3106 = vperm.slane %v781, 2
      %v3107 = vunpack.c.l.bf16 %v3106
      %v3108 = vmul.f32 %v739, %v3107
      %v3109 = vmul.f32 %v740, %v3107
      %v3110 = vmul.f32 %v1017, %v3107
      %v3111 = vmul.f32 %v741, %v3107
      %v3112 = vmul.f32 %v742, %v3107
      %v3113 = vmul.f32 %v1018, %v3107
      %v3114 = vmul.f32 %v743, %v3107
      %v3115 = vmul.f32 %v744, %v3107
      %v3116 = vmul.f32 %v1019, %v3107
      %v3117 = vmul.f32 %v745, %v3107
      %v3118 = vmul.f32 %v746, %v3107
      %v3119 = vmul.f32 %v1020, %v3107
      %v3120 = vpack.c.bf16 %v3108, %v3108
      %v3121 = vpack.c.bf16 %v3109, %v3109
      %v3122 = vpack.c.bf16 %v3110, %v3110
      %v3123 = vpack.c.bf16 %v3111, %v3111
      %v3124 = vpack.c.bf16 %v3112, %v3112
      %v3125 = vpack.c.bf16 %v3113, %v3113
      %v3126 = vpack.c.bf16 %v3114, %v3114
      %v3127 = vpack.c.bf16 %v3115, %v3115
      %v3128 = vpack.c.bf16 %v3116, %v3116
      %v3129 = vpack.c.bf16 %v3117, %v3117
      %v3130 = vpack.c.bf16 %v3118, %v3118
      %v3131 = vpack.c.bf16 %v3119, %v3119
      %v3132 = vunpack.c.l.bf16 %v3120
      %v3133 = vunpack.c.l.bf16 %v3121
      %v3134 = vunpack.c.l.bf16 %v3122
      %v3135 = vunpack.c.l.bf16 %v3123
      %v3136 = vunpack.c.l.bf16 %v3124
      %v3137 = vunpack.c.l.bf16 %v3125
      %v3138 = vunpack.c.l.bf16 %v3126
      %v3139 = vunpack.c.l.bf16 %v3127
      %v3140 = vunpack.c.l.bf16 %v3128
      %v3141 = vunpack.c.l.bf16 %v3129
      %v3142 = vunpack.c.l.bf16 %v3130
      %v3143 = vunpack.c.l.bf16 %v3131
      %vm3156 = vcmask 1042432
      %v3157 = vrot.slane %v3132, 5
      %v3158 = vrot.slane %v3133, 5
      %v3159 = vsel %vm3156, %v3157, %v3158
      %v3160 = vrot.slane %v3134, 5
      %v3161 = vsel %vm3156, %v3158, %v3160
      %v3162 = vrot.slane %v3135, 5
      %v3163 = vrot.slane %v3136, 5
      %v3164 = vsel %vm3156, %v3162, %v3163
      %v3165 = vrot.slane %v3137, 5
      %v3166 = vsel %vm3156, %v3163, %v3165
      %v3167 = vrot.slane %v3138, 5
      %v3168 = vrot.slane %v3139, 5
      %v3169 = vsel %vm3156, %v3167, %v3168
      %v3170 = vrot.slane %v3140, 5
      %v3171 = vsel %vm3156, %v3168, %v3170
      %v3172 = vrot.slane %v3141, 5
      %v3173 = vrot.slane %v3142, 5
      %v3174 = vsel %vm3156, %v3172, %v3173
      %v3175 = vrot.slane %v3143, 5
      %v3176 = vsel %vm3156, %v3173, %v3175
      %v3185 = vadd.f32 %v3098, %v3159
      %v3186 = vadd.f32 %v3099, %v3161
      %v3187 = vadd.f32 %v3100, %v3164
      %v3188 = vadd.f32 %v3101, %v3166
      %v3189 = vadd.f32 %v3102, %v3169
      %v3190 = vadd.f32 %v3103, %v3171
      %v3191 = vadd.f32 %v3104, %v3174
      %v3192 = vadd.f32 %v3105, %v3176
      %v3193 = vperm.slane %v820, 2
      %v3194 = vunpack.c.l.bf16 %v3193
      %v3195 = vmul.f32 %v741, %v3194
      %v3196 = vmul.f32 %v742, %v3194
      %v3197 = vmul.f32 %v1018, %v3194
      %v3198 = vmul.f32 %v743, %v3194
      %v3199 = vmul.f32 %v744, %v3194
      %v3200 = vmul.f32 %v1019, %v3194
      %v3201 = vmul.f32 %v745, %v3194
      %v3202 = vmul.f32 %v746, %v3194
      %v3203 = vmul.f32 %v1020, %v3194
      %v3204 = vmul.f32 %v784, %v3194
      %v3205 = vmul.f32 %v785, %v3194
      %v3206 = vmul.f32 %v1108, %v3194
      %v3207 = vpack.c.bf16 %v3195, %v3195
      %v3208 = vpack.c.bf16 %v3196, %v3196
      %v3209 = vpack.c.bf16 %v3197, %v3197
      %v3210 = vpack.c.bf16 %v3198, %v3198
      %v3211 = vpack.c.bf16 %v3199, %v3199
      %v3212 = vpack.c.bf16 %v3200, %v3200
      %v3213 = vpack.c.bf16 %v3201, %v3201
      %v3214 = vpack.c.bf16 %v3202, %v3202
      %v3215 = vpack.c.bf16 %v3203, %v3203
      %v3216 = vpack.c.bf16 %v3204, %v3204
      %v3217 = vpack.c.bf16 %v3205, %v3205
      %v3218 = vpack.c.bf16 %v3206, %v3206
      %v3219 = vunpack.c.l.bf16 %v3207
      %v3220 = vunpack.c.l.bf16 %v3208
      %v3221 = vunpack.c.l.bf16 %v3209
      %v3222 = vunpack.c.l.bf16 %v3210
      %v3223 = vunpack.c.l.bf16 %v3211
      %v3224 = vunpack.c.l.bf16 %v3212
      %v3225 = vunpack.c.l.bf16 %v3213
      %v3226 = vunpack.c.l.bf16 %v3214
      %v3227 = vunpack.c.l.bf16 %v3215
      %v3228 = vunpack.c.l.bf16 %v3216
      %v3229 = vunpack.c.l.bf16 %v3217
      %v3230 = vunpack.c.l.bf16 %v3218
      %v3243 = vrot.slane %v3219, 5
      %v3244 = vrot.slane %v3220, 5
      %v3245 = vsel %vm3156, %v3243, %v3244
      %v3246 = vrot.slane %v3221, 5
      %v3247 = vsel %vm3156, %v3244, %v3246
      %v3248 = vrot.slane %v3222, 5
      %v3249 = vrot.slane %v3223, 5
      %v3250 = vsel %vm3156, %v3248, %v3249
      %v3251 = vrot.slane %v3224, 5
      %v3252 = vsel %vm3156, %v3249, %v3251
      %v3253 = vrot.slane %v3225, 5
      %v3254 = vrot.slane %v3226, 5
      %v3255 = vsel %vm3156, %v3253, %v3254
      %v3256 = vrot.slane %v3227, 5
      %v3257 = vsel %vm3156, %v3254, %v3256
      %v3258 = vrot.slane %v3228, 5
      %v3259 = vrot.slane %v3229, 5
      %v3260 = vsel %vm3156, %v3258, %v3259
      %v3261 = vrot.slane %v3230, 5
      %v3262 = vsel %vm3156, %v3259, %v3261
      %v3271 = vadd.f32 %v3185, %v3245
      %v3272 = vadd.f32 %v3186, %v3247
      %v3273 = vadd.f32 %v3187, %v3250
      %v3274 = vadd.f32 %v3188, %v3252
      %v3275 = vadd.f32 %v3189, %v3255
      %v3276 = vadd.f32 %v3190, %v3257
      %v3277 = vadd.f32 %v3191, %v3260
      %v3278 = vadd.f32 %v3192, %v3262
      %v3279 = vperm.slane %v860, 1
      %v3280 = vunpack.c.l.bf16 %v3279
      %v3281 = vmul.f32 %v743, %v3280
      %v3282 = vmul.f32 %v744, %v3280
      %v3283 = vmul.f32 %v1019, %v3280
      %v3284 = vmul.f32 %v745, %v3280
      %v3285 = vmul.f32 %v746, %v3280
      %v3286 = vmul.f32 %v1020, %v3280
      %v3287 = vmul.f32 %v784, %v3280
      %v3288 = vmul.f32 %v785, %v3280
      %v3289 = vmul.f32 %v1108, %v3280
      %v3290 = vmul.f32 %v823, %v3280
      %v3291 = vmul.f32 %v824, %v3280
      %v3292 = vmul.f32 %v1198, %v3280
      %v3293 = vpack.c.bf16 %v3281, %v3281
      %v3294 = vpack.c.bf16 %v3282, %v3282
      %v3295 = vpack.c.bf16 %v3283, %v3283
      %v3296 = vpack.c.bf16 %v3284, %v3284
      %v3297 = vpack.c.bf16 %v3285, %v3285
      %v3298 = vpack.c.bf16 %v3286, %v3286
      %v3299 = vpack.c.bf16 %v3287, %v3287
      %v3300 = vpack.c.bf16 %v3288, %v3288
      %v3301 = vpack.c.bf16 %v3289, %v3289
      %v3302 = vpack.c.bf16 %v3290, %v3290
      %v3303 = vpack.c.bf16 %v3291, %v3291
      %v3304 = vpack.c.bf16 %v3292, %v3292
      %v3305 = vunpack.c.l.bf16 %v3293
      %v3306 = vunpack.c.l.bf16 %v3294
      %v3307 = vunpack.c.l.bf16 %v3295
      %v3308 = vunpack.c.l.bf16 %v3296
      %v3309 = vunpack.c.l.bf16 %v3297
      %v3310 = vunpack.c.l.bf16 %v3298
      %v3311 = vunpack.c.l.bf16 %v3299
      %v3312 = vunpack.c.l.bf16 %v3300
      %v3313 = vunpack.c.l.bf16 %v3301
      %v3314 = vunpack.c.l.bf16 %v3302
      %v3315 = vunpack.c.l.bf16 %v3303
      %v3316 = vunpack.c.l.bf16 %v3304
      %v3329 = vrot.slane %v3305, 5
      %v3330 = vrot.slane %v3306, 5
      %v3331 = vsel %vm3156, %v3329, %v3330
      %v3332 = vrot.slane %v3307, 5
      %v3333 = vsel %vm3156, %v3330, %v3332
      %v3334 = vrot.slane %v3308, 5
      %v3335 = vrot.slane %v3309, 5
      %v3336 = vsel %vm3156, %v3334, %v3335
      %v3337 = vrot.slane %v3310, 5
      %v3338 = vsel %vm3156, %v3335, %v3337
      %v3339 = vrot.slane %v3311, 5
      %v3340 = vrot.slane %v3312, 5
      %v3341 = vsel %vm3156, %v3339, %v3340
      %v3342 = vrot.slane %v3313, 5
      %v3343 = vsel %vm3156, %v3340, %v3342
      %v3344 = vrot.slane %v3314, 5
      %v3345 = vrot.slane %v3315, 5
      %v3346 = vsel %vm3156, %v3344, %v3345
      %v3347 = vrot.slane %v3316, 5
      %v3348 = vsel %vm3156, %v3345, %v3347
      %v3357 = vadd.f32 %v3271, %v3331
      %v3358 = vadd.f32 %v3272, %v3333
      %v3359 = vadd.f32 %v3273, %v3336
      %v3360 = vadd.f32 %v3274, %v3338
      %v3361 = vadd.f32 %v3275, %v3341
      %v3362 = vadd.f32 %v3276, %v3343
      %v3363 = vadd.f32 %v3277, %v3346
      %v3364 = vadd.f32 %v3278, %v3348
      %v3365 = vperm.slane %v899, 1
      %v3366 = vunpack.c.l.bf16 %v3365
      %v3367 = vmul.f32 %v745, %v3366
      %v3368 = vmul.f32 %v746, %v3366
      %v3369 = vmul.f32 %v1020, %v3366
      %v3370 = vmul.f32 %v784, %v3366
      %v3371 = vmul.f32 %v785, %v3366
      %v3372 = vmul.f32 %v1108, %v3366
      %v3373 = vmul.f32 %v823, %v3366
      %v3374 = vmul.f32 %v824, %v3366
      %v3375 = vmul.f32 %v1198, %v3366
      %v3376 = vmul.f32 %v863, %v3366
      %v3377 = vmul.f32 %v864, %v3366
      %v3378 = vmul.f32 %v1287, %v3366
      %v3379 = vpack.c.bf16 %v3367, %v3367
      %v3380 = vpack.c.bf16 %v3368, %v3368
      %v3381 = vpack.c.bf16 %v3369, %v3369
      %v3382 = vpack.c.bf16 %v3370, %v3370
      %v3383 = vpack.c.bf16 %v3371, %v3371
      %v3384 = vpack.c.bf16 %v3372, %v3372
      %v3385 = vpack.c.bf16 %v3373, %v3373
      %v3386 = vpack.c.bf16 %v3374, %v3374
      %v3387 = vpack.c.bf16 %v3375, %v3375
      %v3388 = vpack.c.bf16 %v3376, %v3376
      %v3389 = vpack.c.bf16 %v3377, %v3377
      %v3390 = vpack.c.bf16 %v3378, %v3378
      %v3391 = vunpack.c.l.bf16 %v3379
      %v3392 = vunpack.c.l.bf16 %v3380
      %v3393 = vunpack.c.l.bf16 %v3381
      %v3394 = vunpack.c.l.bf16 %v3382
      %v3395 = vunpack.c.l.bf16 %v3383
      %v3396 = vunpack.c.l.bf16 %v3384
      %v3397 = vunpack.c.l.bf16 %v3385
      %v3398 = vunpack.c.l.bf16 %v3386
      %v3399 = vunpack.c.l.bf16 %v3387
      %v3400 = vunpack.c.l.bf16 %v3388
      %v3401 = vunpack.c.l.bf16 %v3389
      %v3402 = vunpack.c.l.bf16 %v3390
      %v3415 = vrot.slane %v3391, 5
      %v3416 = vrot.slane %v3392, 5
      %v3417 = vsel %vm3156, %v3415, %v3416
      %v3418 = vrot.slane %v3393, 5
      %v3419 = vsel %vm3156, %v3416, %v3418
      %v3420 = vrot.slane %v3394, 5
      %v3421 = vrot.slane %v3395, 5
      %v3422 = vsel %vm3156, %v3420, %v3421
      %v3423 = vrot.slane %v3396, 5
      %v3424 = vsel %vm3156, %v3421, %v3423
      %v3425 = vrot.slane %v3397, 5
      %v3426 = vrot.slane %v3398, 5
      %v3427 = vsel %vm3156, %v3425, %v3426
      %v3428 = vrot.slane %v3399, 5
      %v3429 = vsel %vm3156, %v3426, %v3428
      %v3430 = vrot.slane %v3400, 5
      %v3431 = vrot.slane %v3401, 5
      %v3432 = vsel %vm3156, %v3430, %v3431
      %v3433 = vrot.slane %v3402, 5
      %v3434 = vsel %vm3156, %v3431, %v3433
      %v3443 = vadd.f32 %v3357, %v3417
      %v3444 = vadd.f32 %v3358, %v3419
      %v3445 = vadd.f32 %v3359, %v3422
      %v3446 = vadd.f32 %v3360, %v3424
      %v3447 = vadd.f32 %v3361, %v3427
      %v3448 = vadd.f32 %v3362, %v3429
      %v3449 = vadd.f32 %v3363, %v3432
      %v3450 = vadd.f32 %v3364, %v3434
      %v3451 = vperm.slane %v939, 0
      %v3452 = vunpack.c.l.bf16 %v3451
      %v3453 = vmul.f32 %v784, %v3452
      %v3454 = vmul.f32 %v785, %v3452
      %v3455 = vmul.f32 %v1108, %v3452
      %v3456 = vmul.f32 %v823, %v3452
      %v3457 = vmul.f32 %v824, %v3452
      %v3458 = vmul.f32 %v1198, %v3452
      %v3459 = vmul.f32 %v863, %v3452
      %v3460 = vmul.f32 %v864, %v3452
      %v3461 = vmul.f32 %v1287, %v3452
      %v3462 = vmul.f32 %v902, %v3452
      %v3463 = vmul.f32 %v903, %v3452
      %v3464 = vmul.f32 %v1377, %v3452
      %v3465 = vpack.c.bf16 %v3453, %v3453
      %v3466 = vpack.c.bf16 %v3454, %v3454
      %v3467 = vpack.c.bf16 %v3455, %v3455
      %v3468 = vpack.c.bf16 %v3456, %v3456
      %v3469 = vpack.c.bf16 %v3457, %v3457
      %v3470 = vpack.c.bf16 %v3458, %v3458
      %v3471 = vpack.c.bf16 %v3459, %v3459
      %v3472 = vpack.c.bf16 %v3460, %v3460
      %v3473 = vpack.c.bf16 %v3461, %v3461
      %v3474 = vpack.c.bf16 %v3462, %v3462
      %v3475 = vpack.c.bf16 %v3463, %v3463
      %v3476 = vpack.c.bf16 %v3464, %v3464
      %v3477 = vunpack.c.l.bf16 %v3465
      %v3478 = vunpack.c.l.bf16 %v3466
      %v3479 = vunpack.c.l.bf16 %v3467
      %v3480 = vunpack.c.l.bf16 %v3468
      %v3481 = vunpack.c.l.bf16 %v3469
      %v3482 = vunpack.c.l.bf16 %v3470
      %v3483 = vunpack.c.l.bf16 %v3471
      %v3484 = vunpack.c.l.bf16 %v3472
      %v3485 = vunpack.c.l.bf16 %v3473
      %v3486 = vunpack.c.l.bf16 %v3474
      %v3487 = vunpack.c.l.bf16 %v3475
      %v3488 = vunpack.c.l.bf16 %v3476
      %v3501 = vrot.slane %v3477, 5
      %v3502 = vrot.slane %v3478, 5
      %v3503 = vsel %vm3156, %v3501, %v3502
      %v3504 = vrot.slane %v3479, 5
      %v3505 = vsel %vm3156, %v3502, %v3504
      %v3506 = vrot.slane %v3480, 5
      %v3507 = vrot.slane %v3481, 5
      %v3508 = vsel %vm3156, %v3506, %v3507
      %v3509 = vrot.slane %v3482, 5
      %v3510 = vsel %vm3156, %v3507, %v3509
      %v3511 = vrot.slane %v3483, 5
      %v3512 = vrot.slane %v3484, 5
      %v3513 = vsel %vm3156, %v3511, %v3512
      %v3514 = vrot.slane %v3485, 5
      %v3515 = vsel %vm3156, %v3512, %v3514
      %v3516 = vrot.slane %v3486, 5
      %v3517 = vrot.slane %v3487, 5
      %v3518 = vsel %vm3156, %v3516, %v3517
      %v3519 = vrot.slane %v3488, 5
      %v3520 = vsel %vm3156, %v3517, %v3519
      %v3529 = vadd.f32 %v3443, %v3503
      %v3530 = vadd.f32 %v3444, %v3505
      %v3531 = vadd.f32 %v3445, %v3508
      %v3532 = vadd.f32 %v3446, %v3510
      %v3533 = vadd.f32 %v3447, %v3513
      %v3534 = vadd.f32 %v3448, %v3515
      %v3535 = vadd.f32 %v3449, %v3518
      %v3536 = vadd.f32 %v3450, %v3520
      %v3537 = vperm.slane %v978, 0
      %v3538 = vunpack.c.l.bf16 %v3537
      %v3539 = vmul.f32 %v823, %v3538
      %v3540 = vmul.f32 %v824, %v3538
      %v3541 = vmul.f32 %v1198, %v3538
      %v3542 = vmul.f32 %v863, %v3538
      %v3543 = vmul.f32 %v864, %v3538
      %v3544 = vmul.f32 %v1287, %v3538
      %v3545 = vmul.f32 %v902, %v3538
      %v3546 = vmul.f32 %v903, %v3538
      %v3547 = vmul.f32 %v1377, %v3538
      %v3548 = vmul.f32 %v942, %v3538
      %v3549 = vmul.f32 %v943, %v3538
      %v3550 = vmul.f32 %v1466, %v3538
      %v3551 = vpack.c.bf16 %v3539, %v3539
      %v3552 = vpack.c.bf16 %v3540, %v3540
      %v3553 = vpack.c.bf16 %v3541, %v3541
      %v3554 = vpack.c.bf16 %v3542, %v3542
      %v3555 = vpack.c.bf16 %v3543, %v3543
      %v3556 = vpack.c.bf16 %v3544, %v3544
      %v3557 = vpack.c.bf16 %v3545, %v3545
      %v3558 = vpack.c.bf16 %v3546, %v3546
      %v3559 = vpack.c.bf16 %v3547, %v3547
      %v3560 = vpack.c.bf16 %v3548, %v3548
      %v3561 = vpack.c.bf16 %v3549, %v3549
      %v3562 = vpack.c.bf16 %v3550, %v3550
      %v3563 = vunpack.c.l.bf16 %v3551
      %v3564 = vunpack.c.l.bf16 %v3552
      %v3565 = vunpack.c.l.bf16 %v3553
      %v3566 = vunpack.c.l.bf16 %v3554
      %v3567 = vunpack.c.l.bf16 %v3555
      %v3568 = vunpack.c.l.bf16 %v3556
      %v3569 = vunpack.c.l.bf16 %v3557
      %v3570 = vunpack.c.l.bf16 %v3558
      %v3571 = vunpack.c.l.bf16 %v3559
      %v3572 = vunpack.c.l.bf16 %v3560
      %v3573 = vunpack.c.l.bf16 %v3561
      %v3574 = vunpack.c.l.bf16 %v3562
      %v3587 = vrot.slane %v3563, 5
      %v3588 = vrot.slane %v3564, 5
      %v3589 = vsel %vm3156, %v3587, %v3588
      %v3590 = vrot.slane %v3565, 5
      %v3591 = vsel %vm3156, %v3588, %v3590
      %v3592 = vrot.slane %v3566, 5
      %v3593 = vrot.slane %v3567, 5
      %v3594 = vsel %vm3156, %v3592, %v3593
      %v3595 = vrot.slane %v3568, 5
      %v3596 = vsel %vm3156, %v3593, %v3595
      %v3597 = vrot.slane %v3569, 5
      %v3598 = vrot.slane %v3570, 5
      %v3599 = vsel %vm3156, %v3597, %v3598
      %v3600 = vrot.slane %v3571, 5
      %v3601 = vsel %vm3156, %v3598, %v3600
      %v3602 = vrot.slane %v3572, 5
      %v3603 = vrot.slane %v3573, 5
      %v3604 = vsel %vm3156, %v3602, %v3603
      %v3605 = vrot.slane %v3574, 5
      %v3606 = vsel %vm3156, %v3603, %v3605
      %v3615 = vadd.f32 %v3529, %v3589
      %v3616 = vadd.f32 %v3530, %v3591
      %v3617 = vadd.f32 %v3531, %v3594
      %v3618 = vadd.f32 %v3532, %v3596
      %v3619 = vadd.f32 %v3533, %v3599
      %v3620 = vadd.f32 %v3534, %v3601
      %v3621 = vadd.f32 %v3535, %v3604
      %v3622 = vadd.f32 %v3536, %v3606
      %v3623 = vperm.slane %v1553, 3
      %v3624 = vunpack.c.l.bf16 %v3623
      %v3625 = vmul.f32 %v863, %v3624
      %v3626 = vmul.f32 %v864, %v3624
      %v3627 = vmul.f32 %v1287, %v3624
      %v3628 = vmul.f32 %v902, %v3624
      %v3629 = vmul.f32 %v903, %v3624
      %v3630 = vmul.f32 %v1377, %v3624
      %v3631 = vmul.f32 %v942, %v3624
      %v3632 = vmul.f32 %v943, %v3624
      %v3633 = vmul.f32 %v1466, %v3624
      %v3634 = vmul.f32 %v981, %v3624
      %v3635 = vmul.f32 %v982, %v3624
      %v3636 = vmul.f32 %v1556, %v3624
      %v3637 = vpack.c.bf16 %v3625, %v3625
      %v3638 = vpack.c.bf16 %v3626, %v3626
      %v3639 = vpack.c.bf16 %v3627, %v3627
      %v3640 = vpack.c.bf16 %v3628, %v3628
      %v3641 = vpack.c.bf16 %v3629, %v3629
      %v3642 = vpack.c.bf16 %v3630, %v3630
      %v3643 = vpack.c.bf16 %v3631, %v3631
      %v3644 = vpack.c.bf16 %v3632, %v3632
      %v3645 = vpack.c.bf16 %v3633, %v3633
      %v3646 = vpack.c.bf16 %v3634, %v3634
      %v3647 = vpack.c.bf16 %v3635, %v3635
      %v3648 = vpack.c.bf16 %v3636, %v3636
      %v3649 = vunpack.c.l.bf16 %v3637
      %v3650 = vunpack.c.l.bf16 %v3638
      %v3651 = vunpack.c.l.bf16 %v3639
      %v3652 = vunpack.c.l.bf16 %v3640
      %v3653 = vunpack.c.l.bf16 %v3641
      %v3654 = vunpack.c.l.bf16 %v3642
      %v3655 = vunpack.c.l.bf16 %v3643
      %v3656 = vunpack.c.l.bf16 %v3644
      %v3657 = vunpack.c.l.bf16 %v3645
      %v3658 = vunpack.c.l.bf16 %v3646
      %v3659 = vunpack.c.l.bf16 %v3647
      %v3660 = vunpack.c.l.bf16 %v3648
      %v3673 = vrot.slane %v3649, 5
      %v3674 = vrot.slane %v3650, 5
      %v3675 = vsel %vm3156, %v3673, %v3674
      %v3676 = vrot.slane %v3651, 5
      %v3677 = vsel %vm3156, %v3674, %v3676
      %v3678 = vrot.slane %v3652, 5
      %v3679 = vrot.slane %v3653, 5
      %v3680 = vsel %vm3156, %v3678, %v3679
      %v3681 = vrot.slane %v3654, 5
      %v3682 = vsel %vm3156, %v3679, %v3681
      %v3683 = vrot.slane %v3655, 5
      %v3684 = vrot.slane %v3656, 5
      %v3685 = vsel %vm3156, %v3683, %v3684
      %v3686 = vrot.slane %v3657, 5
      %v3687 = vsel %vm3156, %v3684, %v3686
      %v3688 = vrot.slane %v3658, 5
      %v3689 = vrot.slane %v3659, 5
      %v3690 = vsel %vm3156, %v3688, %v3689
      %v3691 = vrot.slane %v3660, 5
      %v3692 = vsel %vm3156, %v3689, %v3691
      %v3701 = vadd.f32 %v3615, %v3675
      %v3702 = vadd.f32 %v3616, %v3677
      %v3703 = vadd.f32 %v3617, %v3680
      %v3704 = vadd.f32 %v3618, %v3682
      %v3705 = vadd.f32 %v3619, %v3685
      %v3706 = vadd.f32 %v3620, %v3687
      %v3707 = vadd.f32 %v3621, %v3690
      %v3708 = vadd.f32 %v3622, %v3692
      %v3709 = vperm.slane %v736, 3
      %v3710 = vunpack.c.l.bf16 %v3709
      %v3711 = vmul.f32 %v739, %v3710
      %v3712 = vmul.f32 %v740, %v3710
      %v3713 = vmul.f32 %v1017, %v3710
      %v3714 = vmul.f32 %v741, %v3710
      %v3715 = vmul.f32 %v742, %v3710
      %v3716 = vmul.f32 %v1018, %v3710
      %v3717 = vmul.f32 %v743, %v3710
      %v3718 = vmul.f32 %v744, %v3710
      %v3719 = vmul.f32 %v1019, %v3710
      %v3720 = vmul.f32 %v745, %v3710
      %v3721 = vmul.f32 %v746, %v3710
      %v3722 = vmul.f32 %v1020, %v3710
      %v3723 = vpack.c.bf16 %v3711, %v3711
      %v3724 = vpack.c.bf16 %v3712, %v3712
      %v3725 = vpack.c.bf16 %v3713, %v3713
      %v3726 = vpack.c.bf16 %v3714, %v3714
      %v3727 = vpack.c.bf16 %v3715, %v3715
      %v3728 = vpack.c.bf16 %v3716, %v3716
      %v3729 = vpack.c.bf16 %v3717, %v3717
      %v3730 = vpack.c.bf16 %v3718, %v3718
      %v3731 = vpack.c.bf16 %v3719, %v3719
      %v3732 = vpack.c.bf16 %v3720, %v3720
      %v3733 = vpack.c.bf16 %v3721, %v3721
      %v3734 = vpack.c.bf16 %v3722, %v3722
      %v3735 = vunpack.c.l.bf16 %v3723
      %v3736 = vunpack.c.l.bf16 %v3724
      %v3737 = vunpack.c.l.bf16 %v3725
      %v3738 = vunpack.c.l.bf16 %v3726
      %v3739 = vunpack.c.l.bf16 %v3727
      %v3740 = vunpack.c.l.bf16 %v3728
      %v3741 = vunpack.c.l.bf16 %v3729
      %v3742 = vunpack.c.l.bf16 %v3730
      %v3743 = vunpack.c.l.bf16 %v3731
      %v3744 = vunpack.c.l.bf16 %v3732
      %v3745 = vunpack.c.l.bf16 %v3733
      %v3746 = vunpack.c.l.bf16 %v3734
      %vm3759 = vcmask 1041408
      %v3760 = vrot.slane %v3735, 6
      %v3761 = vrot.slane %v3736, 6
      %v3762 = vsel %vm3759, %v3760, %v3761
      %v3763 = vrot.slane %v3737, 6
      %v3764 = vsel %vm3759, %v3761, %v3763
      %v3765 = vrot.slane %v3738, 6
      %v3766 = vrot.slane %v3739, 6
      %v3767 = vsel %vm3759, %v3765, %v3766
      %v3768 = vrot.slane %v3740, 6
      %v3769 = vsel %vm3759, %v3766, %v3768
      %v3770 = vrot.slane %v3741, 6
      %v3771 = vrot.slane %v3742, 6
      %v3772 = vsel %vm3759, %v3770, %v3771
      %v3773 = vrot.slane %v3743, 6
      %v3774 = vsel %vm3759, %v3771, %v3773
      %v3775 = vrot.slane %v3744, 6
      %v3776 = vrot.slane %v3745, 6
      %v3777 = vsel %vm3759, %v3775, %v3776
      %v3778 = vrot.slane %v3746, 6
      %v3779 = vsel %vm3759, %v3776, %v3778
      %v3788 = vadd.f32 %v3701, %v3762
      %v3789 = vadd.f32 %v3702, %v3764
      %v3790 = vadd.f32 %v3703, %v3767
      %v3791 = vadd.f32 %v3704, %v3769
      %v3792 = vadd.f32 %v3705, %v3772
      %v3793 = vadd.f32 %v3706, %v3774
      %v3794 = vadd.f32 %v3707, %v3777
      %v3795 = vadd.f32 %v3708, %v3779
      %v3796 = vperm.slane %v1195, 2
      %v3797 = vunpack.c.l.bf16 %v3796
      %v3798 = vmul.f32 %v741, %v3797
      %v3799 = vmul.f32 %v742, %v3797
      %v3800 = vmul.f32 %v1018, %v3797
      %v3801 = vmul.f32 %v743, %v3797
      %v3802 = vmul.f32 %v744, %v3797
      %v3803 = vmul.f32 %v1019, %v3797
      %v3804 = vmul.f32 %v745, %v3797
      %v3805 = vmul.f32 %v746, %v3797
      %v3806 = vmul.f32 %v1020, %v3797
      %v3807 = vmul.f32 %v784, %v3797
      %v3808 = vmul.f32 %v785, %v3797
      %v3809 = vmul.f32 %v1108, %v3797
      %v3810 = vpack.c.bf16 %v3798, %v3798
      %v3811 = vpack.c.bf16 %v3799, %v3799
      %v3812 = vpack.c.bf16 %v3800, %v3800
      %v3813 = vpack.c.bf16 %v3801, %v3801
      %v3814 = vpack.c.bf16 %v3802, %v3802
      %v3815 = vpack.c.bf16 %v3803, %v3803
      %v3816 = vpack.c.bf16 %v3804, %v3804
      %v3817 = vpack.c.bf16 %v3805, %v3805
      %v3818 = vpack.c.bf16 %v3806, %v3806
      %v3819 = vpack.c.bf16 %v3807, %v3807
      %v3820 = vpack.c.bf16 %v3808, %v3808
      %v3821 = vpack.c.bf16 %v3809, %v3809
      %v3822 = vunpack.c.l.bf16 %v3810
      %v3823 = vunpack.c.l.bf16 %v3811
      %v3824 = vunpack.c.l.bf16 %v3812
      %v3825 = vunpack.c.l.bf16 %v3813
      %v3826 = vunpack.c.l.bf16 %v3814
      %v3827 = vunpack.c.l.bf16 %v3815
      %v3828 = vunpack.c.l.bf16 %v3816
      %v3829 = vunpack.c.l.bf16 %v3817
      %v3830 = vunpack.c.l.bf16 %v3818
      %v3831 = vunpack.c.l.bf16 %v3819
      %v3832 = vunpack.c.l.bf16 %v3820
      %v3833 = vunpack.c.l.bf16 %v3821
      %v3846 = vrot.slane %v3822, 6
      %v3847 = vrot.slane %v3823, 6
      %v3848 = vsel %vm3759, %v3846, %v3847
      %v3849 = vrot.slane %v3824, 6
      %v3850 = vsel %vm3759, %v3847, %v3849
      %v3851 = vrot.slane %v3825, 6
      %v3852 = vrot.slane %v3826, 6
      %v3853 = vsel %vm3759, %v3851, %v3852
      %v3854 = vrot.slane %v3827, 6
      %v3855 = vsel %vm3759, %v3852, %v3854
      %v3856 = vrot.slane %v3828, 6
      %v3857 = vrot.slane %v3829, 6
      %v3858 = vsel %vm3759, %v3856, %v3857
      %v3859 = vrot.slane %v3830, 6
      %v3860 = vsel %vm3759, %v3857, %v3859
      %v3861 = vrot.slane %v3831, 6
      %v3862 = vrot.slane %v3832, 6
      %v3863 = vsel %vm3759, %v3861, %v3862
      %v3864 = vrot.slane %v3833, 6
      %v3865 = vsel %vm3759, %v3862, %v3864
      %v3874 = vadd.f32 %v3788, %v3848
      %v3875 = vadd.f32 %v3789, %v3850
      %v3876 = vadd.f32 %v3790, %v3853
      %v3877 = vadd.f32 %v3791, %v3855
      %v3878 = vadd.f32 %v3792, %v3858
      %v3879 = vadd.f32 %v3793, %v3860
      %v3880 = vadd.f32 %v3794, %v3863
      %v3881 = vadd.f32 %v3795, %v3865
      %v3882 = vperm.slane %v1284, 2
      %v3883 = vunpack.c.l.bf16 %v3882
      %v3884 = vmul.f32 %v743, %v3883
      %v3885 = vmul.f32 %v744, %v3883
      %v3886 = vmul.f32 %v1019, %v3883
      %v3887 = vmul.f32 %v745, %v3883
      %v3888 = vmul.f32 %v746, %v3883
      %v3889 = vmul.f32 %v1020, %v3883
      %v3890 = vmul.f32 %v784, %v3883
      %v3891 = vmul.f32 %v785, %v3883
      %v3892 = vmul.f32 %v1108, %v3883
      %v3893 = vmul.f32 %v823, %v3883
      %v3894 = vmul.f32 %v824, %v3883
      %v3895 = vmul.f32 %v1198, %v3883
      %v3896 = vpack.c.bf16 %v3884, %v3884
      %v3897 = vpack.c.bf16 %v3885, %v3885
      %v3898 = vpack.c.bf16 %v3886, %v3886
      %v3899 = vpack.c.bf16 %v3887, %v3887
      %v3900 = vpack.c.bf16 %v3888, %v3888
      %v3901 = vpack.c.bf16 %v3889, %v3889
      %v3902 = vpack.c.bf16 %v3890, %v3890
      %v3903 = vpack.c.bf16 %v3891, %v3891
      %v3904 = vpack.c.bf16 %v3892, %v3892
      %v3905 = vpack.c.bf16 %v3893, %v3893
      %v3906 = vpack.c.bf16 %v3894, %v3894
      %v3907 = vpack.c.bf16 %v3895, %v3895
      %v3908 = vunpack.c.l.bf16 %v3896
      %v3909 = vunpack.c.l.bf16 %v3897
      %v3910 = vunpack.c.l.bf16 %v3898
      %v3911 = vunpack.c.l.bf16 %v3899
      %v3912 = vunpack.c.l.bf16 %v3900
      %v3913 = vunpack.c.l.bf16 %v3901
      %v3914 = vunpack.c.l.bf16 %v3902
      %v3915 = vunpack.c.l.bf16 %v3903
      %v3916 = vunpack.c.l.bf16 %v3904
      %v3917 = vunpack.c.l.bf16 %v3905
      %v3918 = vunpack.c.l.bf16 %v3906
      %v3919 = vunpack.c.l.bf16 %v3907
      %v3932 = vrot.slane %v3908, 6
      %v3933 = vrot.slane %v3909, 6
      %v3934 = vsel %vm3759, %v3932, %v3933
      %v3935 = vrot.slane %v3910, 6
      %v3936 = vsel %vm3759, %v3933, %v3935
      %v3937 = vrot.slane %v3911, 6
      %v3938 = vrot.slane %v3912, 6
      %v3939 = vsel %vm3759, %v3937, %v3938
      %v3940 = vrot.slane %v3913, 6
      %v3941 = vsel %vm3759, %v3938, %v3940
      %v3942 = vrot.slane %v3914, 6
      %v3943 = vrot.slane %v3915, 6
      %v3944 = vsel %vm3759, %v3942, %v3943
      %v3945 = vrot.slane %v3916, 6
      %v3946 = vsel %vm3759, %v3943, %v3945
      %v3947 = vrot.slane %v3917, 6
      %v3948 = vrot.slane %v3918, 6
      %v3949 = vsel %vm3759, %v3947, %v3948
      %v3950 = vrot.slane %v3919, 6
      %v3951 = vsel %vm3759, %v3948, %v3950
      %v3960 = vadd.f32 %v3874, %v3934
      %v3961 = vadd.f32 %v3875, %v3936
      %v3962 = vadd.f32 %v3876, %v3939
      %v3963 = vadd.f32 %v3877, %v3941
      %v3964 = vadd.f32 %v3878, %v3944
      %v3965 = vadd.f32 %v3879, %v3946
      %v3966 = vadd.f32 %v3880, %v3949
      %v3967 = vadd.f32 %v3881, %v3951
      %v3968 = vperm.slane %v1374, 1
      %v3969 = vunpack.c.l.bf16 %v3968
      %v3970 = vmul.f32 %v745, %v3969
      %v3971 = vmul.f32 %v746, %v3969
      %v3972 = vmul.f32 %v1020, %v3969
      %v3973 = vmul.f32 %v784, %v3969
      %v3974 = vmul.f32 %v785, %v3969
      %v3975 = vmul.f32 %v1108, %v3969
      %v3976 = vmul.f32 %v823, %v3969
      %v3977 = vmul.f32 %v824, %v3969
      %v3978 = vmul.f32 %v1198, %v3969
      %v3979 = vmul.f32 %v863, %v3969
      %v3980 = vmul.f32 %v864, %v3969
      %v3981 = vmul.f32 %v1287, %v3969
      %v3982 = vpack.c.bf16 %v3970, %v3970
      %v3983 = vpack.c.bf16 %v3971, %v3971
      %v3984 = vpack.c.bf16 %v3972, %v3972
      %v3985 = vpack.c.bf16 %v3973, %v3973
      %v3986 = vpack.c.bf16 %v3974, %v3974
      %v3987 = vpack.c.bf16 %v3975, %v3975
      %v3988 = vpack.c.bf16 %v3976, %v3976
      %v3989 = vpack.c.bf16 %v3977, %v3977
      %v3990 = vpack.c.bf16 %v3978, %v3978
      %v3991 = vpack.c.bf16 %v3979, %v3979
      %v3992 = vpack.c.bf16 %v3980, %v3980
      %v3993 = vpack.c.bf16 %v3981, %v3981
      %v3994 = vunpack.c.l.bf16 %v3982
      %v3995 = vunpack.c.l.bf16 %v3983
      %v3996 = vunpack.c.l.bf16 %v3984
      %v3997 = vunpack.c.l.bf16 %v3985
      %v3998 = vunpack.c.l.bf16 %v3986
      %v3999 = vunpack.c.l.bf16 %v3987
      %v4000 = vunpack.c.l.bf16 %v3988
      %v4001 = vunpack.c.l.bf16 %v3989
      %v4002 = vunpack.c.l.bf16 %v3990
      %v4003 = vunpack.c.l.bf16 %v3991
      %v4004 = vunpack.c.l.bf16 %v3992
      %v4005 = vunpack.c.l.bf16 %v3993
      %v4018 = vrot.slane %v3994, 6
      %v4019 = vrot.slane %v3995, 6
      %v4020 = vsel %vm3759, %v4018, %v4019
      %v4021 = vrot.slane %v3996, 6
      %v4022 = vsel %vm3759, %v4019, %v4021
      %v4023 = vrot.slane %v3997, 6
      %v4024 = vrot.slane %v3998, 6
      %v4025 = vsel %vm3759, %v4023, %v4024
      %v4026 = vrot.slane %v3999, 6
      %v4027 = vsel %vm3759, %v4024, %v4026
      %v4028 = vrot.slane %v4000, 6
      %v4029 = vrot.slane %v4001, 6
      %v4030 = vsel %vm3759, %v4028, %v4029
      %v4031 = vrot.slane %v4002, 6
      %v4032 = vsel %vm3759, %v4029, %v4031
      %v4033 = vrot.slane %v4003, 6
      %v4034 = vrot.slane %v4004, 6
      %v4035 = vsel %vm3759, %v4033, %v4034
      %v4036 = vrot.slane %v4005, 6
      %v4037 = vsel %vm3759, %v4034, %v4036
      %v4046 = vadd.f32 %v3960, %v4020
      %v4047 = vadd.f32 %v3961, %v4022
      %v4048 = vadd.f32 %v3962, %v4025
      %v4049 = vadd.f32 %v3963, %v4027
      %v4050 = vadd.f32 %v3964, %v4030
      %v4051 = vadd.f32 %v3965, %v4032
      %v4052 = vadd.f32 %v3966, %v4035
      %v4053 = vadd.f32 %v3967, %v4037
      %v4054 = vperm.slane %v1463, 1
      %v4055 = vunpack.c.l.bf16 %v4054
      %v4056 = vmul.f32 %v784, %v4055
      %v4057 = vmul.f32 %v785, %v4055
      %v4058 = vmul.f32 %v1108, %v4055
      %v4059 = vmul.f32 %v823, %v4055
      %v4060 = vmul.f32 %v824, %v4055
      %v4061 = vmul.f32 %v1198, %v4055
      %v4062 = vmul.f32 %v863, %v4055
      %v4063 = vmul.f32 %v864, %v4055
      %v4064 = vmul.f32 %v1287, %v4055
      %v4065 = vmul.f32 %v902, %v4055
      %v4066 = vmul.f32 %v903, %v4055
      %v4067 = vmul.f32 %v1377, %v4055
      %v4068 = vpack.c.bf16 %v4056, %v4056
      %v4069 = vpack.c.bf16 %v4057, %v4057
      %v4070 = vpack.c.bf16 %v4058, %v4058
      %v4071 = vpack.c.bf16 %v4059, %v4059
      %v4072 = vpack.c.bf16 %v4060, %v4060
      %v4073 = vpack.c.bf16 %v4061, %v4061
      %v4074 = vpack.c.bf16 %v4062, %v4062
      %v4075 = vpack.c.bf16 %v4063, %v4063
      %v4076 = vpack.c.bf16 %v4064, %v4064
      %v4077 = vpack.c.bf16 %v4065, %v4065
      %v4078 = vpack.c.bf16 %v4066, %v4066
      %v4079 = vpack.c.bf16 %v4067, %v4067
      %v4080 = vunpack.c.l.bf16 %v4068
      %v4081 = vunpack.c.l.bf16 %v4069
      %v4082 = vunpack.c.l.bf16 %v4070
      %v4083 = vunpack.c.l.bf16 %v4071
      %v4084 = vunpack.c.l.bf16 %v4072
      %v4085 = vunpack.c.l.bf16 %v4073
      %v4086 = vunpack.c.l.bf16 %v4074
      %v4087 = vunpack.c.l.bf16 %v4075
      %v4088 = vunpack.c.l.bf16 %v4076
      %v4089 = vunpack.c.l.bf16 %v4077
      %v4090 = vunpack.c.l.bf16 %v4078
      %v4091 = vunpack.c.l.bf16 %v4079
      %v4104 = vrot.slane %v4080, 6
      %v4105 = vrot.slane %v4081, 6
      %v4106 = vsel %vm3759, %v4104, %v4105
      %v4107 = vrot.slane %v4082, 6
      %v4108 = vsel %vm3759, %v4105, %v4107
      %v4109 = vrot.slane %v4083, 6
      %v4110 = vrot.slane %v4084, 6
      %v4111 = vsel %vm3759, %v4109, %v4110
      %v4112 = vrot.slane %v4085, 6
      %v4113 = vsel %vm3759, %v4110, %v4112
      %v4114 = vrot.slane %v4086, 6
      %v4115 = vrot.slane %v4087, 6
      %v4116 = vsel %vm3759, %v4114, %v4115
      %v4117 = vrot.slane %v4088, 6
      %v4118 = vsel %vm3759, %v4115, %v4117
      %v4119 = vrot.slane %v4089, 6
      %v4120 = vrot.slane %v4090, 6
      %v4121 = vsel %vm3759, %v4119, %v4120
      %v4122 = vrot.slane %v4091, 6
      %v4123 = vsel %vm3759, %v4120, %v4122
      %v4132 = vadd.f32 %v4046, %v4106
      %v4133 = vadd.f32 %v4047, %v4108
      %v4134 = vadd.f32 %v4048, %v4111
      %v4135 = vadd.f32 %v4049, %v4113
      %v4136 = vadd.f32 %v4050, %v4116
      %v4137 = vadd.f32 %v4051, %v4118
      %v4138 = vadd.f32 %v4052, %v4121
      %v4139 = vadd.f32 %v4053, %v4123
      %v4140 = vperm.slane %v1553, 0
      %v4141 = vunpack.c.l.bf16 %v4140
      %v4142 = vmul.f32 %v823, %v4141
      %v4143 = vmul.f32 %v824, %v4141
      %v4144 = vmul.f32 %v1198, %v4141
      %v4145 = vmul.f32 %v863, %v4141
      %v4146 = vmul.f32 %v864, %v4141
      %v4147 = vmul.f32 %v1287, %v4141
      %v4148 = vmul.f32 %v902, %v4141
      %v4149 = vmul.f32 %v903, %v4141
      %v4150 = vmul.f32 %v1377, %v4141
      %v4151 = vmul.f32 %v942, %v4141
      %v4152 = vmul.f32 %v943, %v4141
      %v4153 = vmul.f32 %v1466, %v4141
      %v4154 = vpack.c.bf16 %v4142, %v4142
      %v4155 = vpack.c.bf16 %v4143, %v4143
      %v4156 = vpack.c.bf16 %v4144, %v4144
      %v4157 = vpack.c.bf16 %v4145, %v4145
      %v4158 = vpack.c.bf16 %v4146, %v4146
      %v4159 = vpack.c.bf16 %v4147, %v4147
      %v4160 = vpack.c.bf16 %v4148, %v4148
      %v4161 = vpack.c.bf16 %v4149, %v4149
      %v4162 = vpack.c.bf16 %v4150, %v4150
      %v4163 = vpack.c.bf16 %v4151, %v4151
      %v4164 = vpack.c.bf16 %v4152, %v4152
      %v4165 = vpack.c.bf16 %v4153, %v4153
      %v4166 = vunpack.c.l.bf16 %v4154
      %v4167 = vunpack.c.l.bf16 %v4155
      %v4168 = vunpack.c.l.bf16 %v4156
      %v4169 = vunpack.c.l.bf16 %v4157
      %v4170 = vunpack.c.l.bf16 %v4158
      %v4171 = vunpack.c.l.bf16 %v4159
      %v4172 = vunpack.c.l.bf16 %v4160
      %v4173 = vunpack.c.l.bf16 %v4161
      %v4174 = vunpack.c.l.bf16 %v4162
      %v4175 = vunpack.c.l.bf16 %v4163
      %v4176 = vunpack.c.l.bf16 %v4164
      %v4177 = vunpack.c.l.bf16 %v4165
      %v4190 = vrot.slane %v4166, 6
      %v4191 = vrot.slane %v4167, 6
      %v4192 = vsel %vm3759, %v4190, %v4191
      %v4193 = vrot.slane %v4168, 6
      %v4194 = vsel %vm3759, %v4191, %v4193
      %v4195 = vrot.slane %v4169, 6
      %v4196 = vrot.slane %v4170, 6
      %v4197 = vsel %vm3759, %v4195, %v4196
      %v4198 = vrot.slane %v4171, 6
      %v4199 = vsel %vm3759, %v4196, %v4198
      %v4200 = vrot.slane %v4172, 6
      %v4201 = vrot.slane %v4173, 6
      %v4202 = vsel %vm3759, %v4200, %v4201
      %v4203 = vrot.slane %v4174, 6
      %v4204 = vsel %vm3759, %v4201, %v4203
      %v4205 = vrot.slane %v4175, 6
      %v4206 = vrot.slane %v4176, 6
      %v4207 = vsel %vm3759, %v4205, %v4206
      %v4208 = vrot.slane %v4177, 6
      %v4209 = vsel %vm3759, %v4206, %v4208
      %v4218 = vadd.f32 %v4132, %v4192
      %v4219 = vadd.f32 %v4133, %v4194
      %v4220 = vadd.f32 %v4134, %v4197
      %v4221 = vadd.f32 %v4135, %v4199
      %v4222 = vadd.f32 %v4136, %v4202
      %v4223 = vadd.f32 %v4137, %v4204
      %v4224 = vadd.f32 %v4138, %v4207
      %v4225 = vadd.f32 %v4139, %v4209
      %v4227 = vpack.i.b16 %v734, %v734
      %v4229 = vperm.slane %v4227, 0
      %v4230 = vunpack.c.l.bf16 %v4229
      %v4231 = vmul.f32 %v863, %v4230
      %v4232 = vmul.f32 %v864, %v4230
      %v4233 = vmul.f32 %v1287, %v4230
      %v4234 = vmul.f32 %v902, %v4230
      %v4235 = vmul.f32 %v903, %v4230
      %v4236 = vmul.f32 %v1377, %v4230
      %v4237 = vmul.f32 %v942, %v4230
      %v4238 = vmul.f32 %v943, %v4230
      %v4239 = vmul.f32 %v1466, %v4230
      %v4240 = vmul.f32 %v981, %v4230
      %v4241 = vmul.f32 %v982, %v4230
      %v4242 = vmul.f32 %v1556, %v4230
      %v4243 = vpack.c.bf16 %v4231, %v4231
      %v4244 = vpack.c.bf16 %v4232, %v4232
      %v4245 = vpack.c.bf16 %v4233, %v4233
      %v4246 = vpack.c.bf16 %v4234, %v4234
      %v4247 = vpack.c.bf16 %v4235, %v4235
      %v4248 = vpack.c.bf16 %v4236, %v4236
      %v4249 = vpack.c.bf16 %v4237, %v4237
      %v4250 = vpack.c.bf16 %v4238, %v4238
      %v4251 = vpack.c.bf16 %v4239, %v4239
      %v4252 = vpack.c.bf16 %v4240, %v4240
      %v4253 = vpack.c.bf16 %v4241, %v4241
      %v4254 = vpack.c.bf16 %v4242, %v4242
      %v4255 = vunpack.c.l.bf16 %v4243
      %v4256 = vunpack.c.l.bf16 %v4244
      %v4257 = vunpack.c.l.bf16 %v4245
      %v4258 = vunpack.c.l.bf16 %v4246
      %v4259 = vunpack.c.l.bf16 %v4247
      %v4260 = vunpack.c.l.bf16 %v4248
      %v4261 = vunpack.c.l.bf16 %v4249
      %v4262 = vunpack.c.l.bf16 %v4250
      %v4263 = vunpack.c.l.bf16 %v4251
      %v4264 = vunpack.c.l.bf16 %v4252
      %v4265 = vunpack.c.l.bf16 %v4253
      %v4266 = vunpack.c.l.bf16 %v4254
      %v4279 = vrot.slane %v4255, 6
      %v4280 = vrot.slane %v4256, 6
      %v4281 = vsel %vm3759, %v4279, %v4280
      %v4282 = vrot.slane %v4257, 6
      %v4283 = vsel %vm3759, %v4280, %v4282
      %v4284 = vrot.slane %v4258, 6
      %v4285 = vrot.slane %v4259, 6
      %v4286 = vsel %vm3759, %v4284, %v4285
      %v4287 = vrot.slane %v4260, 6
      %v4288 = vsel %vm3759, %v4285, %v4287
      %v4289 = vrot.slane %v4261, 6
      %v4290 = vrot.slane %v4262, 6
      %v4291 = vsel %vm3759, %v4289, %v4290
      %v4292 = vrot.slane %v4263, 6
      %v4293 = vsel %vm3759, %v4290, %v4292
      %v4294 = vrot.slane %v4264, 6
      %v4295 = vrot.slane %v4265, 6
      %v4296 = vsel %vm3759, %v4294, %v4295
      %v4297 = vrot.slane %v4266, 6
      %v4298 = vsel %vm3759, %v4295, %v4297
      %v4307 = vadd.f32 %v4218, %v4281
      %v4308 = vadd.f32 %v4219, %v4283
      %v4309 = vadd.f32 %v4220, %v4286
      %v4310 = vadd.f32 %v4221, %v4288
      %v4311 = vadd.f32 %v4222, %v4291
      %v4312 = vadd.f32 %v4223, %v4293
      %v4313 = vadd.f32 %v4224, %v4296
      %v4314 = vadd.f32 %v4225, %v4298
      %v4315 = vld [vmem:[%s2] sm:$0x1]
      %v4317 = vperm.slane %v4315, 0
      %v4319 = vadd.f32 %v4307, %v4317
      %v4320 = vadd.f32 %v4308, %v4317
      %v4321 = vadd.f32 %v4309, %v4317
      %v4322 = vadd.f32 %v4310, %v4317
      %v4323 = vadd.f32 %v4311, %v4317
      %v4324 = vadd.f32 %v4312, %v4317
      %v4325 = vadd.f32 %v4313, %v4317
      %v4326 = vadd.f32 %v4314, %v4317
      %4327 = vadd.xlane.f32.xlu0 %v4319
      %v4328 = vpop.xlane.xlu0 %4327
      %4329 = vadd.xlane.f32.xlu0 %v4320
      %v4330 = vpop.xlane.xlu0 %4329
      %4331 = vadd.xlane.f32.xlu0 %v4321
      %v4332 = vpop.xlane.xlu0 %4331
      %4333 = vadd.xlane.f32.xlu0 %v4322
      %v4334 = vpop.xlane.xlu0 %4333
      %4335 = vadd.xlane.f32.xlu0 %v4323
      %v4336 = vpop.xlane.xlu0 %4335
      %4337 = vadd.xlane.f32.xlu0 %v4324
      %v4338 = vpop.xlane.xlu0 %4337
      %4339 = vadd.xlane.f32.xlu0 %v4325
      %v4340 = vpop.xlane.xlu0 %4339
      %4341 = vadd.xlane.f32.xlu0 %v4326
      %v4342 = vpop.xlane.xlu0 %4341
      %v4343 = vmul.f32 %v4328, 0.25
      %v4344 = vmul.f32 %v4330, 0.25
      %v4345 = vmul.f32 %v4332, 0.25
      %v4346 = vmul.f32 %v4334, 0.25
      %v4347 = vmul.f32 %v4336, 0.25
      %v4348 = vmul.f32 %v4338, 0.25
      %v4349 = vmul.f32 %v4340, 0.25
      %v4350 = vmul.f32 %v4342, 0.25
      %v4351 = vsub.f32 %v4319, %v4343
      %v4352 = vsub.f32 %v4320, %v4344
      %v4353 = vsub.f32 %v4321, %v4345
      %v4354 = vsub.f32 %v4322, %v4346
      %v4355 = vsub.f32 %v4323, %v4347
      %v4356 = vsub.f32 %v4324, %v4348
      %v4357 = vsub.f32 %v4325, %v4349
      %v4358 = vsub.f32 %v4326, %v4350
      %v4359 = vlaneseq
      %v4360 = vand.u32 %v4359, 127
      %vm4361 = vcmp.lt.s32.totalorder %v4360, 4
      %v4362 = vsel %vm4361, 1, 0
      %vm4363 = vcmp.eq.s32.totalorder %v4362, 1
      %v4364 = vsel %vm4363, %v4351, 0.0
      %v4365 = vsel %vm4363, %v4352, 0.0
      %v4366 = vsel %vm4363, %v4353, 0.0
      %v4367 = vsel %vm4363, %v4354, 0.0
      %v4368 = vsel %vm4363, %v4355, 0.0
      %v4369 = vsel %vm4363, %v4356, 0.0
      %v4370 = vsel %vm4363, %v4357, 0.0
      %v4371 = vsel %vm4363, %v4358, 0.0
      %v4372 = vmul.f32 %v4364, %v4364
      %v4373 = vmul.f32 %v4365, %v4365
      %v4374 = vmul.f32 %v4366, %v4366
      %v4375 = vmul.f32 %v4367, %v4367
      %v4376 = vmul.f32 %v4368, %v4368
      %v4377 = vmul.f32 %v4369, %v4369
      %v4378 = vmul.f32 %v4370, %v4370
      %v4379 = vmul.f32 %v4371, %v4371
      %4380 = vadd.xlane.f32.xlu0 %v4372
      %v4381 = vpop.xlane.xlu0 %4380
      %4382 = vadd.xlane.f32.xlu0 %v4373
      %v4383 = vpop.xlane.xlu0 %4382
      %4384 = vadd.xlane.f32.xlu0 %v4374
      %v4385 = vpop.xlane.xlu0 %4384
      %4386 = vadd.xlane.f32.xlu0 %v4375
      %v4387 = vpop.xlane.xlu0 %4386
      %4388 = vadd.xlane.f32.xlu0 %v4376
      %v4389 = vpop.xlane.xlu0 %4388
      %4390 = vadd.xlane.f32.xlu0 %v4377
      %v4391 = vpop.xlane.xlu0 %4390
      %4392 = vadd.xlane.f32.xlu0 %v4378
      %v4393 = vpop.xlane.xlu0 %4392
      %4394 = vadd.xlane.f32.xlu0 %v4379
      %v4395 = vpop.xlane.xlu0 %4394
      %v4396 = vmul.f32 %v4381, 0.25
      %v4397 = vmul.f32 %v4383, 0.25
      %v4398 = vmul.f32 %v4385, 0.25
      %v4399 = vmul.f32 %v4387, 0.25
      %v4400 = vmul.f32 %v4389, 0.25
      %v4401 = vmul.f32 %v4391, 0.25
      %v4402 = vmul.f32 %v4393, 0.25
      %v4403 = vmul.f32 %v4395, 0.25
      %v4404 = vadd.f32 %v4396, 1e-06
      %v4405 = vadd.f32 %v4397, 1e-06
      %v4406 = vadd.f32 %v4398, 1e-06
      %v4407 = vadd.f32 %v4399, 1e-06
      %v4408 = vadd.f32 %v4400, 1e-06
      %v4409 = vadd.f32 %v4401, 1e-06
      %v4410 = vadd.f32 %v4402, 1e-06
      %v4411 = vadd.f32 %v4403, 1e-06
      %v4412 = vrsqrt.pop %v4404
      %v4413 = vmul.f32 %v4412, %v4404
      %v4414 = vmul.f32 %v4413, %v4412
      %v4415 = vmul.f32 0.5, %v4414
      %v4416 = vsub.f32 1.5, %v4415
      %v4417 = vmul.f32 %v4412, %v4416
      %vm4418 = vweird.f32 %v4404
      %vm4419 = vweird.f32 %v4412
      %vm4420 = vmor %vm4418, %vm4419
      %v4421 = vsel %vm4420, %v4412, %v4417
      %v4422 = vrsqrt.pop %v4405
      %v4423 = vmul.f32 %v4422, %v4405
      %v4424 = vmul.f32 %v4423, %v4422
      %v4425 = vmul.f32 0.5, %v4424
      %v4426 = vsub.f32 1.5, %v4425
      %v4427 = vmul.f32 %v4422, %v4426
      %vm4428 = vweird.f32 %v4405
      %vm4429 = vweird.f32 %v4422
      %vm4430 = vmor %vm4428, %vm4429
      %v4431 = vsel %vm4430, %v4422, %v4427
      %v4432 = vrsqrt.pop %v4406
      %v4433 = vmul.f32 %v4432, %v4406
      %v4434 = vmul.f32 %v4433, %v4432
      %v4435 = vmul.f32 0.5, %v4434
      %v4436 = vsub.f32 1.5, %v4435
      %v4437 = vmul.f32 %v4432, %v4436
      %vm4438 = vweird.f32 %v4406
      %vm4439 = vweird.f32 %v4432
      %vm4440 = vmor %vm4438, %vm4439
      %v4441 = vsel %vm4440, %v4432, %v4437
      %v4442 = vrsqrt.pop %v4407
      %v4443 = vmul.f32 %v4442, %v4407
      %v4444 = vmul.f32 %v4443, %v4442
      %v4445 = vmul.f32 0.5, %v4444
      %v4446 = vsub.f32 1.5, %v4445
      %v4447 = vmul.f32 %v4442, %v4446
      %vm4448 = vweird.f32 %v4407
      %vm4449 = vweird.f32 %v4442
      %vm4450 = vmor %vm4448, %vm4449
      %v4451 = vsel %vm4450, %v4442, %v4447
      %v4452 = vrsqrt.pop %v4408
      %v4453 = vmul.f32 %v4452, %v4408
      %v4454 = vmul.f32 %v4453, %v4452
      %v4455 = vmul.f32 0.5, %v4454
      %v4456 = vsub.f32 1.5, %v4455
      %v4457 = vmul.f32 %v4452, %v4456
      %vm4458 = vweird.f32 %v4408
      %vm4459 = vweird.f32 %v4452
      %vm4460 = vmor %vm4458, %vm4459
      %v4461 = vsel %vm4460, %v4452, %v4457
      %v4462 = vrsqrt.pop %v4409
      %v4463 = vmul.f32 %v4462, %v4409
      %v4464 = vmul.f32 %v4463, %v4462
      %v4465 = vmul.f32 0.5, %v4464
      %v4466 = vsub.f32 1.5, %v4465
      %v4467 = vmul.f32 %v4462, %v4466
      %vm4468 = vweird.f32 %v4409
      %vm4469 = vweird.f32 %v4462
      %vm4470 = vmor %vm4468, %vm4469
      %v4471 = vsel %vm4470, %v4462, %v4467
      %v4472 = vrsqrt.pop %v4410
      %v4473 = vmul.f32 %v4472, %v4410
      %v4474 = vmul.f32 %v4473, %v4472
      %v4475 = vmul.f32 0.5, %v4474
      %v4476 = vsub.f32 1.5, %v4475
      %v4477 = vmul.f32 %v4472, %v4476
      %vm4478 = vweird.f32 %v4410
      %vm4479 = vweird.f32 %v4472
      %vm4480 = vmor %vm4478, %vm4479
      %v4481 = vsel %vm4480, %v4472, %v4477
      %v4482 = vrsqrt.pop %v4411
      %v4483 = vmul.f32 %v4482, %v4411
      %v4484 = vmul.f32 %v4483, %v4482
      %v4485 = vmul.f32 0.5, %v4484
      %v4486 = vsub.f32 1.5, %v4485
      %v4487 = vmul.f32 %v4482, %v4486
      %vm4488 = vweird.f32 %v4411
      %vm4489 = vweird.f32 %v4482
      %vm4490 = vmor %vm4488, %vm4489
      %v4491 = vsel %vm4490, %v4482, %v4487
      %v4492 = vmul.f32 %v4351, %v4421
      %v4493 = vmul.f32 %v4352, %v4431
      %v4494 = vmul.f32 %v4353, %v4441
      %v4495 = vmul.f32 %v4354, %v4451
      %v4496 = vmul.f32 %v4355, %v4461
      %v4497 = vmul.f32 %v4356, %v4471
      %v4498 = vmul.f32 %v4357, %v4481
      %v4499 = vmul.f32 %v4358, %v4491
      %v4500 = vld [vmem:[%s3] sm:$0x1]
      %v4502 = vperm.slane %v4500, 0
      %v4504 = vmul.f32 %v4492, %v4502
      %v4505 = vmul.f32 %v4493, %v4502
      %v4506 = vmul.f32 %v4494, %v4502
      %v4507 = vmul.f32 %v4495, %v4502
      %v4508 = vmul.f32 %v4496, %v4502
      %v4509 = vmul.f32 %v4497, %v4502
      %v4510 = vmul.f32 %v4498, %v4502
      %v4511 = vmul.f32 %v4499, %v4502
      %v4512 = vld [vmem:[%s4] sm:$0x1]
      %v4514 = vperm.slane %v4512, 0
      %v4516 = vadd.f32 %v4504, %v4514
      %v4517 = vadd.f32 %v4505, %v4514
      %v4518 = vadd.f32 %v4506, %v4514
      %v4519 = vadd.f32 %v4507, %v4514
      %v4520 = vadd.f32 %v4508, %v4514
      %v4521 = vadd.f32 %v4509, %v4514
      %v4522 = vadd.f32 %v4510, %v4514
      %v4523 = vadd.f32 %v4511, %v4514
      %v4524 = vpack.c.bf16 %v4517, %v4516
      %v4525 = vpack.c.bf16 %v4519, %v4518
      %v4526 = vpack.c.bf16 %v4521, %v4520
      %v4527 = vpack.c.bf16 %v4523, %v4522
      %v4528 = vld [vmem:[%s5] sm:$0xf]
      %v4529 = vld [vmem:[%s5 + $0x4] sm:$0xf]
      %v4530 = vld [vmem:[%s5 + $0x8] sm:$0xf]
      %v4531 = vld [vmem:[%s5 + $0xc] sm:$0xf]
      %v4532 = vld [vmem:[%s5 + $0x10] sm:$0xf]
      %v4533 = vld [vmem:[%s5 + $0x14] sm:$0xf]
      %v4534 = vld [vmem:[%s5 + $0x18] sm:$0xf]
      %v4535 = vld [vmem:[%s5 + $0x1c] sm:$0xf]
      %v4536 = vld [vmem:[%s5 + $0x20] sm:$0xf]
      %v4537 = vld [vmem:[%s5 + $0x24] sm:$0xf]
      %v4538 = vld [vmem:[%s5 + $0x28] sm:$0xf]
      %v4539 = vld [vmem:[%s5 + $0x2c] sm:$0xf]
      %v4540 = vld [vmem:[%s5 + $0x30] sm:$0xf]
      %v4541 = vld [vmem:[%s5 + $0x34] sm:$0xf]
      %v4542 = vld [vmem:[%s5 + $0x38] sm:$0xf]
      %v4543 = vld [vmem:[%s5 + $0x3c] sm:$0xf]
      %v4544 = vld [vmem:[%s6] sm:$0x1]
      %v4546 = vperm.slane %v4544, 0
      %v4564 = vunpack.c.l.b16 %v4528
      %v4565 = vunpack.c.l.b16 %v4529
      %v4566 = vunpack.c.l.b16 %v4530
      %v4567 = vunpack.c.l.b16 %v4531
      %v4568 = vunpack.c.l.b16 %v4532
      %v4569 = vunpack.c.l.b16 %v4533
      %v4570 = vunpack.c.l.b16 %v4534
      %v4571 = vunpack.c.l.b16 %v4535
      %v4572 = vunpack.c.l.b16 %v4536
      %v4573 = vunpack.c.l.b16 %v4537
      %v4574 = vunpack.c.l.b16 %v4538
      %v4575 = vunpack.c.l.b16 %v4539
      %v4576 = vunpack.c.l.b16 %v4540
      %v4577 = vunpack.c.l.b16 %v4541
      %v4578 = vunpack.c.l.b16 %v4542
      %v4579 = vunpack.c.l.b16 %v4543
      %v4580 = vpack.c.b16 %v4565, %v4564
      %v4581 = vpack.c.b16 %v4567, %v4566
      %v4582 = vpack.c.b16 %v4569, %v4568
      %v4583 = vpack.c.b16 %v4571, %v4570
      %v4584 = vpack.c.b16 %v4573, %v4572
      %v4585 = vpack.c.b16 %v4575, %v4574
      %v4586 = vpack.c.b16 %v4577, %v4576
      %v4587 = vpack.c.b16 %v4579, %v4578
      %4596 = vmatpush.bf16.msra.mxu0 %v4587
      %4597 = vmatpush.bf16.msra.mxu0 %v4586
      %4598 = vmatpush.bf16.msra.mxu0 %v4585
      %4599 = vmatpush.bf16.msra.mxu0 %v4584
      %4600 = vmatpush.bf16.msra.mxu0 %v4583
      %4601 = vmatpush.bf16.msra.mxu0 %v4582
      %4602 = vmatpush.bf16.msra.mxu0 %v4581
      %4603 = vmatpush.bf16.msra.mxu0 %v4580
      %4604 = vmatmul.bf16.gmra.mxu0 %v4524
      %v4605 = vpop.f32.mrf.mxu0
      %v4606 = vadd.f32 %v4546, %v4605
      %v4607 = vpop.f32.mrf.mxu0
      %v4608 = vadd.f32 %v4546, %v4607
      %4609 = vmatmul.bf16.gmra.mxu0 %v4525
      %v4610 = vpop.f32.mrf.mxu0
      %v4611 = vadd.f32 %v4546, %v4610
      %v4612 = vpop.f32.mrf.mxu0
      %v4613 = vadd.f32 %v4546, %v4612
      %4614 = vmatmul.bf16.gmra.mxu0 %v4526
      %v4615 = vpop.f32.mrf.mxu0
      %v4616 = vadd.f32 %v4546, %v4615
      %v4617 = vpop.f32.mrf.mxu0
      %v4618 = vadd.f32 %v4546, %v4617
      %4619 = vmatmul.bf16.gmra.mxu0 %v4527
      %v4620 = vpop.f32.mrf.mxu0
      %v4621 = vadd.f32 %v4546, %v4620
      %v4622 = vpop.f32.mrf.mxu0
      %v4623 = vadd.f32 %v4546, %v4622
      %4624 = vdwg.mxu0
      %v4625 = vmul.f32 %v4606, 0.70710677
      %v4626 = vmul.f32 %v4608, 0.70710677
      %v4627 = vmul.f32 %v4611, 0.70710677
      %v4628 = vmul.f32 %v4613, 0.70710677
      %v4629 = vmul.f32 %v4616, 0.70710677
      %v4630 = vmul.f32 %v4618, 0.70710677
      %v4631 = vmul.f32 %v4621, 0.70710677
      %v4632 = vmul.f32 %v4623, 0.70710677
      %v4633 = vmul.f32 %v4625, %v4625
      %v4634 = vmin.f32 16.0, %v4633
      %v4635 = vmul.f32 %v4634, 2.1237322e-06
      %v4636 = vadd.f32 %v4635, 0.00028619796
      %v4637 = vmul.f32 %v4634, %v4636
      %v4638 = vadd.f32 %v4637, 0.0036580483
      %v4639 = vmul.f32 %v4634, %v4638
      %v4640 = vadd.f32 %v4639, 0.05243302
      %v4641 = vmul.f32 %v4634, %v4640
      %v4642 = vadd.f32 %v4641, 0.18741608
      %v4643 = vmul.f32 %v4634, %v4642
      %v4644 = vadd.f32 %v4643, 1.1283791
      %v4645 = vmul.f32 %v4625, %v4644
      %v4646 = vmul.f32 %v4634, 3.8918573e-05
      %v4647 = vadd.f32 %v4646, 0.001143296
      %v4648 = vmul.f32 %v4634, %v4647
      %v4649 = vadd.f32 %v4648, 0.014752088
      %v4650 = vmul.f32 %v4634, %v4649
      %v4651 = vadd.f32 %v4650, 0.112945676
      %v4652 = vmul.f32 %v4634, %v4651
      %v4653 = vadd.f32 %v4652, 0.4994258
      %v4654 = vmul.f32 %v4634, %v4653
      %v4655 = vadd.f32 %v4654, 1.0
      %v4656 = vrcp.pop %v4655
      %v4657 = vmul.f32 %v4655, %v4656
      %v4658 = vsub.f32 1.0, %v4657
      %v4659 = vmul.f32 %v4656, %v4658
      %v4660 = vadd.f32 %v4656, %v4659
      %vm4661 = vweird.f32 %v4655
      %vm4662 = vweird.f32 %v4656
      %vm4663 = vmor %vm4661, %vm4662
      %v4664 = vsel %vm4663, %v4656, %v4660
      %v4665 = vand.u32 2147483647, %v4655
      %vm4666 = vcmp.eq.f32.partialorder %v4665, 8.507059e+37
      %v4667 = vand.u32 %v4655, 2147483648
      %v4668 = vor.u32 1.1754944e-38, %v4667
      %v4669 = vsel %vm4666, %v4668, %v4664
      %v4670 = vmul.f32 %v4645, %v4669
      %v4671 = vmin.f32 %v4670, 1.0
      %v4672 = vmax.f32 %v4671, -1.0
      %v4673 = vmul.f32 %v4626, %v4626
      %v4674 = vmin.f32 16.0, %v4673
      %v4675 = vmul.f32 %v4674, 2.1237322e-06
      %v4676 = vadd.f32 %v4675, 0.00028619796
      %v4677 = vmul.f32 %v4674, %v4676
      %v4678 = vadd.f32 %v4677, 0.0036580483
      %v4679 = vmul.f32 %v4674, %v4678
      %v4680 = vadd.f32 %v4679, 0.05243302
      %v4681 = vmul.f32 %v4674, %v4680
      %v4682 = vadd.f32 %v4681, 0.18741608
      %v4683 = vmul.f32 %v4674, %v4682
      %v4684 = vadd.f32 %v4683, 1.1283791
      %v4685 = vmul.f32 %v4626, %v4684
      %v4686 = vmul.f32 %v4674, 3.8918573e-05
      %v4687 = vadd.f32 %v4686, 0.001143296
      %v4688 = vmul.f32 %v4674, %v4687
      %v4689 = vadd.f32 %v4688, 0.014752088
      %v4690 = vmul.f32 %v4674, %v4689
      %v4691 = vadd.f32 %v4690, 0.112945676
      %v4692 = vmul.f32 %v4674, %v4691
      %v4693 = vadd.f32 %v4692, 0.4994258
      %v4694 = vmul.f32 %v4674, %v4693
      %v4695 = vadd.f32 %v4694, 1.0
      %v4696 = vrcp.pop %v4695
      %v4697 = vmul.f32 %v4695, %v4696
      %v4698 = vsub.f32 1.0, %v4697
      %v4699 = vmul.f32 %v4696, %v4698
      %v4700 = vadd.f32 %v4696, %v4699
      %vm4701 = vweird.f32 %v4695
      %vm4702 = vweird.f32 %v4696
      %vm4703 = vmor %vm4701, %vm4702
      %v4704 = vsel %vm4703, %v4696, %v4700
      %v4705 = vand.u32 2147483647, %v4695
      %vm4706 = vcmp.eq.f32.partialorder %v4705, 8.507059e+37
      %v4707 = vand.u32 %v4695, 2147483648
      %v4708 = vor.u32 1.1754944e-38, %v4707
      %v4709 = vsel %vm4706, %v4708, %v4704
      %v4710 = vmul.f32 %v4685, %v4709
      %v4711 = vmin.f32 %v4710, 1.0
      %v4712 = vmax.f32 %v4711, -1.0
      %v4713 = vmul.f32 %v4627, %v4627
      %v4714 = vmin.f32 16.0, %v4713
      %v4715 = vmul.f32 %v4714, 2.1237322e-06
      %v4716 = vadd.f32 %v4715, 0.00028619796
      %v4717 = vmul.f32 %v4714, %v4716
      %v4718 = vadd.f32 %v4717, 0.0036580483
      %v4719 = vmul.f32 %v4714, %v4718
      %v4720 = vadd.f32 %v4719, 0.05243302
      %v4721 = vmul.f32 %v4714, %v4720
      %v4722 = vadd.f32 %v4721, 0.18741608
      %v4723 = vmul.f32 %v4714, %v4722
      %v4724 = vadd.f32 %v4723, 1.1283791
      %v4725 = vmul.f32 %v4627, %v4724
      %v4726 = vmul.f32 %v4714, 3.8918573e-05
      %v4727 = vadd.f32 %v4726, 0.001143296
      %v4728 = vmul.f32 %v4714, %v4727
      %v4729 = vadd.f32 %v4728, 0.014752088
      %v4730 = vmul.f32 %v4714, %v4729
      %v4731 = vadd.f32 %v4730, 0.112945676
      %v4732 = vmul.f32 %v4714, %v4731
      %v4733 = vadd.f32 %v4732, 0.4994258
      %v4734 = vmul.f32 %v4714, %v4733
      %v4735 = vadd.f32 %v4734, 1.0
      %v4736 = vrcp.pop %v4735
      %v4737 = vmul.f32 %v4735, %v4736
      %v4738 = vsub.f32 1.0, %v4737
      %v4739 = vmul.f32 %v4736, %v4738
      %v4740 = vadd.f32 %v4736, %v4739
      %vm4741 = vweird.f32 %v4735
      %vm4742 = vweird.f32 %v4736
      %vm4743 = vmor %vm4741, %vm4742
      %v4744 = vsel %vm4743, %v4736, %v4740
      %v4745 = vand.u32 2147483647, %v4735
      %vm4746 = vcmp.eq.f32.partialorder %v4745, 8.507059e+37
      %v4747 = vand.u32 %v4735, 2147483648
      %v4748 = vor.u32 1.1754944e-38, %v4747
      %v4749 = vsel %vm4746, %v4748, %v4744
      %v4750 = vmul.f32 %v4725, %v4749
      %v4751 = vmin.f32 %v4750, 1.0
      %v4752 = vmax.f32 %v4751, -1.0
      %v4753 = vmul.f32 %v4628, %v4628
      %v4754 = vmin.f32 16.0, %v4753
      %v4755 = vmul.f32 %v4754, 2.1237322e-06
      %v4756 = vadd.f32 %v4755, 0.00028619796
      %v4757 = vmul.f32 %v4754, %v4756
      %v4758 = vadd.f32 %v4757, 0.0036580483
      %v4759 = vmul.f32 %v4754, %v4758
      %v4760 = vadd.f32 %v4759, 0.05243302
      %v4761 = vmul.f32 %v4754, %v4760
      %v4762 = vadd.f32 %v4761, 0.18741608
      %v4763 = vmul.f32 %v4754, %v4762
      %v4764 = vadd.f32 %v4763, 1.1283791
      %v4765 = vmul.f32 %v4628, %v4764
      %v4766 = vmul.f32 %v4754, 3.8918573e-05
      %v4767 = vadd.f32 %v4766, 0.001143296
      %v4768 = vmul.f32 %v4754, %v4767
      %v4769 = vadd.f32 %v4768, 0.014752088
      %v4770 = vmul.f32 %v4754, %v4769
      %v4771 = vadd.f32 %v4770, 0.112945676
      %v4772 = vmul.f32 %v4754, %v4771
      %v4773 = vadd.f32 %v4772, 0.4994258
      %v4774 = vmul.f32 %v4754, %v4773
      %v4775 = vadd.f32 %v4774, 1.0
      %v4776 = vrcp.pop %v4775
      %v4777 = vmul.f32 %v4775, %v4776
      %v4778 = vsub.f32 1.0, %v4777
      %v4779 = vmul.f32 %v4776, %v4778
      %v4780 = vadd.f32 %v4776, %v4779
      %vm4781 = vweird.f32 %v4775
      %vm4782 = vweird.f32 %v4776
      %vm4783 = vmor %vm4781, %vm4782
      %v4784 = vsel %vm4783, %v4776, %v4780
      %v4785 = vand.u32 2147483647, %v4775
      %vm4786 = vcmp.eq.f32.partialorder %v4785, 8.507059e+37
      %v4787 = vand.u32 %v4775, 2147483648
      %v4788 = vor.u32 1.1754944e-38, %v4787
      %v4789 = vsel %vm4786, %v4788, %v4784
      %v4790 = vmul.f32 %v4765, %v4789
      %v4791 = vmin.f32 %v4790, 1.0
      %v4792 = vmax.f32 %v4791, -1.0
      %v4793 = vmul.f32 %v4629, %v4629
      %v4794 = vmin.f32 16.0, %v4793
      %v4795 = vmul.f32 %v4794, 2.1237322e-06
      %v4796 = vadd.f32 %v4795, 0.00028619796
      %v4797 = vmul.f32 %v4794, %v4796
      %v4798 = vadd.f32 %v4797, 0.0036580483
      %v4799 = vmul.f32 %v4794, %v4798
      %v4800 = vadd.f32 %v4799, 0.05243302
      %v4801 = vmul.f32 %v4794, %v4800
      %v4802 = vadd.f32 %v4801, 0.18741608
      %v4803 = vmul.f32 %v4794, %v4802
      %v4804 = vadd.f32 %v4803, 1.1283791
      %v4805 = vmul.f32 %v4629, %v4804
      %v4806 = vmul.f32 %v4794, 3.8918573e-05
      %v4807 = vadd.f32 %v4806, 0.001143296
      %v4808 = vmul.f32 %v4794, %v4807
      %v4809 = vadd.f32 %v4808, 0.014752088
      %v4810 = vmul.f32 %v4794, %v4809
      %v4811 = vadd.f32 %v4810, 0.112945676
      %v4812 = vmul.f32 %v4794, %v4811
      %v4813 = vadd.f32 %v4812, 0.4994258
      %v4814 = vmul.f32 %v4794, %v4813
      %v4815 = vadd.f32 %v4814, 1.0
      %v4816 = vrcp.pop %v4815
      %v4817 = vmul.f32 %v4815, %v4816
      %v4818 = vsub.f32 1.0, %v4817
      %v4819 = vmul.f32 %v4816, %v4818
      %v4820 = vadd.f32 %v4816, %v4819
      %vm4821 = vweird.f32 %v4815
      %vm4822 = vweird.f32 %v4816
      %vm4823 = vmor %vm4821, %vm4822
      %v4824 = vsel %vm4823, %v4816, %v4820
      %v4825 = vand.u32 2147483647, %v4815
      %vm4826 = vcmp.eq.f32.partialorder %v4825, 8.507059e+37
      %v4827 = vand.u32 %v4815, 2147483648
      %v4828 = vor.u32 1.1754944e-38, %v4827
      %v4829 = vsel %vm4826, %v4828, %v4824
      %v4830 = vmul.f32 %v4805, %v4829
      %v4831 = vmin.f32 %v4830, 1.0
      %v4832 = vmax.f32 %v4831, -1.0
      %v4833 = vmul.f32 %v4630, %v4630
      %v4834 = vmin.f32 16.0, %v4833
      %v4835 = vmul.f32 %v4834, 2.1237322e-06
      %v4836 = vadd.f32 %v4835, 0.00028619796
      %v4837 = vmul.f32 %v4834, %v4836
      %v4838 = vadd.f32 %v4837, 0.0036580483
      %v4839 = vmul.f32 %v4834, %v4838
      %v4840 = vadd.f32 %v4839, 0.05243302
      %v4841 = vmul.f32 %v4834, %v4840
      %v4842 = vadd.f32 %v4841, 0.18741608
      %v4843 = vmul.f32 %v4834, %v4842
      %v4844 = vadd.f32 %v4843, 1.1283791
      %v4845 = vmul.f32 %v4630, %v4844
      %v4846 = vmul.f32 %v4834, 3.8918573e-05
      %v4847 = vadd.f32 %v4846, 0.001143296
      %v4848 = vmul.f32 %v4834, %v4847
      %v4849 = vadd.f32 %v4848, 0.014752088
      %v4850 = vmul.f32 %v4834, %v4849
      %v4851 = vadd.f32 %v4850, 0.112945676
      %v4852 = vmul.f32 %v4834, %v4851
      %v4853 = vadd.f32 %v4852, 0.4994258
      %v4854 = vmul.f32 %v4834, %v4853
      %v4855 = vadd.f32 %v4854, 1.0
      %v4856 = vrcp.pop %v4855
      %v4857 = vmul.f32 %v4855, %v4856
      %v4858 = vsub.f32 1.0, %v4857
      %v4859 = vmul.f32 %v4856, %v4858
      %v4860 = vadd.f32 %v4856, %v4859
      %vm4861 = vweird.f32 %v4855
      %vm4862 = vweird.f32 %v4856
      %vm4863 = vmor %vm4861, %vm4862
      %v4864 = vsel %vm4863, %v4856, %v4860
      %v4865 = vand.u32 2147483647, %v4855
      %vm4866 = vcmp.eq.f32.partialorder %v4865, 8.507059e+37
      %v4867 = vand.u32 %v4855, 2147483648
      %v4868 = vor.u32 1.1754944e-38, %v4867
      %v4869 = vsel %vm4866, %v4868, %v4864
      %v4870 = vmul.f32 %v4845, %v4869
      %v4871 = vmin.f32 %v4870, 1.0
      %v4872 = vmax.f32 %v4871, -1.0
      %v4873 = vmul.f32 %v4631, %v4631
      %v4874 = vmin.f32 16.0, %v4873
      %v4875 = vmul.f32 %v4874, 2.1237322e-06
      %v4876 = vadd.f32 %v4875, 0.00028619796
      %v4877 = vmul.f32 %v4874, %v4876
      %v4878 = vadd.f32 %v4877, 0.0036580483
      %v4879 = vmul.f32 %v4874, %v4878
      %v4880 = vadd.f32 %v4879, 0.05243302
      %v4881 = vmul.f32 %v4874, %v4880
      %v4882 = vadd.f32 %v4881, 0.18741608
      %v4883 = vmul.f32 %v4874, %v4882
      %v4884 = vadd.f32 %v4883, 1.1283791
      %v4885 = vmul.f32 %v4631, %v4884
      %v4886 = vmul.f32 %v4874, 3.8918573e-05
      %v4887 = vadd.f32 %v4886, 0.001143296
      %v4888 = vmul.f32 %v4874, %v4887
      %v4889 = vadd.f32 %v4888, 0.014752088
      %v4890 = vmul.f32 %v4874, %v4889
      %v4891 = vadd.f32 %v4890, 0.112945676
      %v4892 = vmul.f32 %v4874, %v4891
      %v4893 = vadd.f32 %v4892, 0.4994258
      %v4894 = vmul.f32 %v4874, %v4893
      %v4895 = vadd.f32 %v4894, 1.0
      %v4896 = vrcp.pop %v4895
      %v4897 = vmul.f32 %v4895, %v4896
      %v4898 = vsub.f32 1.0, %v4897
      %v4899 = vmul.f32 %v4896, %v4898
      %v4900 = vadd.f32 %v4896, %v4899
      %vm4901 = vweird.f32 %v4895
      %vm4902 = vweird.f32 %v4896
      %vm4903 = vmor %vm4901, %vm4902
      %v4904 = vsel %vm4903, %v4896, %v4900
      %v4905 = vand.u32 2147483647, %v4895
      %vm4906 = vcmp.eq.f32.partialorder %v4905, 8.507059e+37
      %v4907 = vand.u32 %v4895, 2147483648
      %v4908 = vor.u32 1.1754944e-38, %v4907
      %v4909 = vsel %vm4906, %v4908, %v4904
      %v4910 = vmul.f32 %v4885, %v4909
      %v4911 = vmin.f32 %v4910, 1.0
      %v4912 = vmax.f32 %v4911, -1.0
      %v4913 = vmul.f32 %v4632, %v4632
      %v4914 = vmin.f32 16.0, %v4913
      %v4915 = vmul.f32 %v4914, 2.1237322e-06
      %v4916 = vadd.f32 %v4915, 0.00028619796
      %v4917 = vmul.f32 %v4914, %v4916
      %v4918 = vadd.f32 %v4917, 0.0036580483
      %v4919 = vmul.f32 %v4914, %v4918
      %v4920 = vadd.f32 %v4919, 0.05243302
      %v4921 = vmul.f32 %v4914, %v4920
      %v4922 = vadd.f32 %v4921, 0.18741608
      %v4923 = vmul.f32 %v4914, %v4922
      %v4924 = vadd.f32 %v4923, 1.1283791
      %v4925 = vmul.f32 %v4632, %v4924
      %v4926 = vmul.f32 %v4914, 3.8918573e-05
      %v4927 = vadd.f32 %v4926, 0.001143296
      %v4928 = vmul.f32 %v4914, %v4927
      %v4929 = vadd.f32 %v4928, 0.014752088
      %v4930 = vmul.f32 %v4914, %v4929
      %v4931 = vadd.f32 %v4930, 0.112945676
      %v4932 = vmul.f32 %v4914, %v4931
      %v4933 = vadd.f32 %v4932, 0.4994258
      %v4934 = vmul.f32 %v4914, %v4933
      %v4935 = vadd.f32 %v4934, 1.0
      %v4936 = vrcp.pop %v4935
      %v4937 = vmul.f32 %v4935, %v4936
      %v4938 = vsub.f32 1.0, %v4937
      %v4939 = vmul.f32 %v4936, %v4938
      %v4940 = vadd.f32 %v4936, %v4939
      %vm4941 = vweird.f32 %v4935
      %vm4942 = vweird.f32 %v4936
      %vm4943 = vmor %vm4941, %vm4942
      %v4944 = vsel %vm4943, %v4936, %v4940
      %v4945 = vand.u32 2147483647, %v4935
      %vm4946 = vcmp.eq.f32.partialorder %v4945, 8.507059e+37
      %v4947 = vand.u32 %v4935, 2147483648
      %v4948 = vor.u32 1.1754944e-38, %v4947
      %v4949 = vsel %vm4946, %v4948, %v4944
      %v4950 = vmul.f32 %v4925, %v4949
      %v4951 = vmin.f32 %v4950, 1.0
      %v4952 = vmax.f32 %v4951, -1.0
      %v4953 = vmul.f32 %v4672, 0.5
      %v4954 = vmul.f32 %v4712, 0.5
      %v4955 = vmul.f32 %v4752, 0.5
      %v4956 = vmul.f32 %v4792, 0.5
      %v4957 = vmul.f32 %v4832, 0.5
      %v4958 = vmul.f32 %v4872, 0.5
      %v4959 = vmul.f32 %v4912, 0.5
      %v4960 = vmul.f32 %v4952, 0.5
      %v4961 = vadd.f32 %v4953, 0.5
      %v4962 = vadd.f32 %v4954, 0.5
      %v4963 = vadd.f32 %v4955, 0.5
      %v4964 = vadd.f32 %v4956, 0.5
      %v4965 = vadd.f32 %v4957, 0.5
      %v4966 = vadd.f32 %v4958, 0.5
      %v4967 = vadd.f32 %v4959, 0.5
      %v4968 = vadd.f32 %v4960, 0.5
      %v4969 = vmul.f32 %v4606, %v4961
      %v4970 = vmul.f32 %v4608, %v4962
      %v4971 = vmul.f32 %v4611, %v4963
      %v4972 = vmul.f32 %v4613, %v4964
      %v4973 = vmul.f32 %v4616, %v4965
      %v4974 = vmul.f32 %v4618, %v4966
      %v4975 = vmul.f32 %v4621, %v4967
      %v4976 = vmul.f32 %v4623, %v4968
      %v4977 = vpack.c.bf16 %v4970, %v4969
      %v4978 = vpack.c.bf16 %v4972, %v4971
      %v4979 = vpack.c.bf16 %v4974, %v4973
      %v4980 = vpack.c.bf16 %v4976, %v4975
      %v4981 = vld [vmem:[%s7] sm:$0xf]
      %v4982 = vld [vmem:[%s7 + $0x4] sm:$0xf]
      %v4983 = vld [vmem:[%s7 + $0x8] sm:$0xf]
      %v4984 = vld [vmem:[%s7 + $0xc] sm:$0xf]
      %v4985 = vld [vmem:[%s7 + $0x10] sm:$0xf]
      %v4986 = vld [vmem:[%s7 + $0x14] sm:$0xf]
      %v4987 = vld [vmem:[%s7 + $0x18] sm:$0xf]
      %v4988 = vld [vmem:[%s7 + $0x1c] sm:$0xf]
      %v4989 = vld [vmem:[%s7 + $0x20] sm:$0xf]
      %v4990 = vld [vmem:[%s7 + $0x24] sm:$0xf]
      %v4991 = vld [vmem:[%s7 + $0x28] sm:$0xf]
      %v4992 = vld [vmem:[%s7 + $0x2c] sm:$0xf]
      %v4993 = vld [vmem:[%s7 + $0x30] sm:$0xf]
      %v4994 = vld [vmem:[%s7 + $0x34] sm:$0xf]
      %v4995 = vld [vmem:[%s7 + $0x38] sm:$0xf]
      %v4996 = vld [vmem:[%s7 + $0x3c] sm:$0xf]
      %v4997 = vld [vmem:[%s8] sm:$0x1]
      %v4999 = vperm.slane %v4997, 0
      %v5017 = vunpack.c.l.b16 %v4981
      %v5018 = vunpack.c.l.b16 %v4982
      %v5019 = vunpack.c.l.b16 %v4983
      %v5020 = vunpack.c.l.b16 %v4984
      %v5021 = vunpack.c.l.b16 %v4985
      %v5022 = vunpack.c.l.b16 %v4986
      %v5023 = vunpack.c.l.b16 %v4987
      %v5024 = vunpack.c.l.b16 %v4988
      %v5025 = vunpack.c.l.b16 %v4989
      %v5026 = vunpack.c.l.b16 %v4990
      %v5027 = vunpack.c.l.b16 %v4991
      %v5028 = vunpack.c.l.b16 %v4992
      %v5029 = vunpack.c.l.b16 %v4993
      %v5030 = vunpack.c.l.b16 %v4994
      %v5031 = vunpack.c.l.b16 %v4995
      %v5032 = vunpack.c.l.b16 %v4996
      %v5033 = vpack.c.b16 %v5018, %v5017
      %v5034 = vpack.c.b16 %v5020, %v5019
      %v5035 = vpack.c.b16 %v5022, %v5021
      %v5036 = vpack.c.b16 %v5024, %v5023
      %v5037 = vpack.c.b16 %v5026, %v5025
      %v5038 = vpack.c.b16 %v5028, %v5027
      %v5039 = vpack.c.b16 %v5030, %v5029
      %v5040 = vpack.c.b16 %v5032, %v5031
      %5049 = vmatpush.bf16.msra.mxu0 %v5040
      %5050 = vmatpush.bf16.msra.mxu0 %v5039
      %5051 = vmatpush.bf16.msra.mxu0 %v5038
      %5052 = vmatpush.bf16.msra.mxu0 %v5037
      %5053 = vmatpush.bf16.msra.mxu0 %v5036
      %5054 = vmatpush.bf16.msra.mxu0 %v5035
      %5055 = vmatpush.bf16.msra.mxu0 %v5034
      %5056 = vmatpush.bf16.msra.mxu0 %v5033
      %5057 = vmatmul.bf16.gmra.mxu0 %v4977
      %v5058 = vpop.f32.mrf.mxu0
      %v5059 = vadd.f32 %v4999, %v5058
      %v5060 = vpop.f32.mrf.mxu0
      %v5061 = vadd.f32 %v4999, %v5060
      %5062 = vmatmul.bf16.gmra.mxu0 %v4978
      %v5063 = vpop.f32.mrf.mxu0
      %v5064 = vadd.f32 %v4999, %v5063
      %v5065 = vpop.f32.mrf.mxu0
      %v5066 = vadd.f32 %v4999, %v5065
      %5067 = vmatmul.bf16.gmra.mxu0 %v4979
      %v5068 = vpop.f32.mrf.mxu0
      %v5069 = vadd.f32 %v4999, %v5068
      %v5070 = vpop.f32.mrf.mxu0
      %v5071 = vadd.f32 %v4999, %v5070
      %5072 = vmatmul.bf16.gmra.mxu0 %v4980
      %v5073 = vpop.f32.mrf.mxu0
      %v5074 = vadd.f32 %v4999, %v5073
      %v5075 = vpop.f32.mrf.mxu0
      %v5076 = vadd.f32 %v4999, %v5075
      %5077 = vdwg.mxu0
      %v5078 = vld [vmem:[%s9] sm:$0x1]
      %v5080 = vperm.slane %v5078, 0
      %v5082 = vmul.f32 %v5059, %v5080
      %v5083 = vmul.f32 %v5061, %v5080
      %v5084 = vmul.f32 %v5064, %v5080
      %v5085 = vmul.f32 %v5066, %v5080
      %v5086 = vmul.f32 %v5069, %v5080
      %v5087 = vmul.f32 %v5071, %v5080
      %v5088 = vmul.f32 %v5074, %v5080
      %v5089 = vmul.f32 %v5076, %v5080
      %v5090 = vadd.f32 %v2252, %v5082
      %v5091 = vadd.f32 %v2253, %v5083
      %v5092 = vadd.f32 %v2288, %v5084
      %v5093 = vadd.f32 %v2289, %v5085
      %v5094 = vadd.f32 %v2324, %v5086
      %v5095 = vadd.f32 %v2325, %v5087
      %v5096 = vadd.f32 %v2360, %v5088
      %v5097 = vadd.f32 %v2361, %v5089
      %v5098 = vpack.c.bf16 %v5090, %v5090
      %v5099 = vpack.c.bf16 %v5091, %v5091
      %v5100 = vpack.c.bf16 %v5092, %v5092
      %v5101 = vpack.c.bf16 %v5093, %v5093
      %v5102 = vpack.c.bf16 %v5094, %v5094
      %v5103 = vpack.c.bf16 %v5095, %v5095
      %v5104 = vpack.c.bf16 %v5096, %v5096
      %v5105 = vpack.c.bf16 %v5097, %v5097
      %5106 = vst [vmem:[%s337] sm:$0xf] %v5098
      %5107 = vst [vmem:[%s337 + $0x4] sm:$0xf] %v5099
      %5108 = vst [vmem:[%s337 + $0x8] sm:$0xf] %v5100
      %5109 = vst [vmem:[%s337 + $0xc] sm:$0xf] %v5101
      %5110 = vst [vmem:[%s337 + $0x10] sm:$0xf] %v5102
      %5111 = vst [vmem:[%s337 + $0x14] sm:$0xf] %v5103
      %5112 = vst [vmem:[%s337 + $0x18] sm:$0xf] %v5104
      %5113 = vst [vmem:[%s337 + $0x1c] sm:$0xf] %v5105
      %s5114 = smul.u32 4, %s26
      %p5115 = scmp.lt.s32.totalorder %s25, 1
      %s5116 = scalar_select %p5115, %s25, 1
      %p5117 = scmp.lt.s32.totalorder %s5114, 15
      %s5118 = scalar_select %p5117, %s5114, 15
      %s5119 = smul.addr %s5118, 2
      %s5120 = smul.addr %s5116, 32
      %s5121 = sadd.s32 %s5119, %s5120
      %s5122 = smul.addr %s5121, 4
      %s5123 = scalar_lea.vmem %s10, %s5122
      // Predicated region
      $region138: #{cxlayer_forward.2} parent=55 // pred_check
        %p5124 = pneg %p242
      $region139: #{cxlayer_forward.2} parent=55 // pred_check_branch
        %5126 = sbr.rel (%p5124) target = $region141
      $region140: #{cxlayer_forward.2} parent=55 // pred_region
        %s5127 = smul.u32 4, %s26
      $region141: #{cxlayer_forward.2} parent=55 // pred_fallthru
        _
    $region56: #{cxlayer_forward.2} parent=5 // pred_fallthru
      _
    %p5128 = scmp.le.s32.totalorder 2, %s16
    // Predicated region
    $region142: #{cxlayer_forward.2} parent=5 // pred_check
      %p5129 = pneg %p5128
    $region143: #{cxlayer_forward.2} parent=5 // pred_check_branch
      %5131 = sbr.rel (%p5129) target = $region145
    $region144: #{cxlayer_forward.2} parent=5 // pred_region
      %s5132 = ssub.s32 %s16, 2
      // Predicated region
      $region146: #{cxlayer_forward.2} parent=144 // pred_check
        %p5133 = pneg %p248
      $region147: #{cxlayer_forward.2} parent=144 // pred_check_branch
        %5135 = sbr.rel (%p5133) target = $region149
      $region148: #{cxlayer_forward.2} parent=144 // pred_region
        %s5136 = smul.u32 4, %s28
        %p5137 = scmp.lt.s32.totalorder %s27, 1
        %s5138 = scalar_select %p5137, %s27, 1
        %p5139 = scmp.lt.s32.totalorder %s5136, 15
        %s5140 = scalar_select %p5139, %s5136, 15
        %s5141 = smul.addr %s5140, 2
        %s5142 = smul.addr %s5138, 32
        %s5143 = sadd.s32 %s5141, %s5142
        %s5144 = smul.addr %s5143, 4
        %s5145 = scalar_lea.vmem %s10, %s5144
      $region149: #{cxlayer_forward.2} parent=144 // pred_fallthru
        _
    $region145: #{cxlayer_forward.2} parent=5 // pred_fallthru
      _
  $region6: #{cxlayer_forward.2} parent=0 // loop_footer
    %s20 = sadd.s32 1, %s16
  $region7: #{cxlayer_forward.2} parent=0 // loop_footer_branch
    %15 = sbr.rel target = $region3
  $region8: #{cxlayer_forward.2} parent=0 // loop_exit
    _
  %5146 = vsyncmov [#allocation3]
  %s5147 = vpop.sfrf %5146
  %p5148 = scmp.eq.s32.totalorder %s5147, 0
  %p5149 = pneg %p5148
  %5151 = shalt.err (%p5149)
  %s5152 = scalar_lea.sflag [#allocation3], 1
  %5153 = vsyncmov %s5152
  %s5154 = vpop.sfrf %5153
  %p5155 = scmp.eq.s32.totalorder %s5154, 0
  %p5156 = pneg %p5155
  %5158 = shalt.err (%p5156)

</llo_original>
